<compile_context>
chip_gen: v7x
topology: tpu7x:2x2x1
jax: 0.10.0
libtpu: 0.0.40
codegen_flags: <defaults>
</compile_context>

<pallas_src>
import functools

import jax
import jax.numpy as jnp
import numpy as np
from jax.experimental import pallas as pl
from jax.experimental.pallas import tpu as pltpu

EPS = 1e-5


def _vmem_limit_bytes():
    """Scoped-VMEM budget: ~3/4 of physical, capped (v7x -> 48 MiB, v5e/v6e -> 96 MiB)."""
    try:
        phys = int(pltpu.get_tpu_info().vmem_capacity_bytes)
    except Exception:  # conservative fallback if the query is unavailable
        phys = 64 * 1024 * 1024
    return max(32 * 1024 * 1024, min(phys * 3 // 4, 96 * 1024 * 1024))


_MINOR_CONCAT_OK = None


def _minor_concat_supported():
    """Feature-probe unaligned lane-dim concatenate (needed for the single
    K=9*Cin im2col matmul).  Falls back to per-tap dots when unsupported so the
    block always compiles and runs."""
    global _MINOR_CONCAT_OK
    if _MINOR_CONCAT_OK is None:
        def probe(x_ref, o_ref):
            a = x_ref[...]
            o_ref[...] = jnp.concatenate([a, a, a], axis=-1)

        try:
            out = pl.pallas_call(
                probe, out_shape=jax.ShapeDtypeStruct((8, 12), jnp.float32),
            )(jnp.ones((8, 4), jnp.float32))
            _MINOR_CONCAT_OK = bool(jax.block_until_ready(jnp.all(out == 1.0)))
        except Exception:
            _MINOR_CONCAT_OK = False
    return _MINOR_CONCAT_OK


# ---------------------------------------------------------------------------
# Pallas kernels
# ---------------------------------------------------------------------------
def _conv3x3_bn_stats_kernel(*refs, stride, apply_input_act, use_im2col):
    """Fused 3x3 conv stage (padding=1, any stride) for one batch element.

    refs (apply_input_act=True):
        x_ref (1,H,W,Cin), w_ref (9,Cin,Cout), scale_ref (1,Cin), bias_ref (1,Cin),
        y_ref (1,Ho,Wo,Cout), sum_ref (1,1,Cout), ssq_ref (1,1,Cout), xpad_ref scratch
    refs (apply_input_act=False): same without scale/bias.

    * Zero padding is emulated by writing the (optionally BN1+ReLU-activated)
      tile into a zeroed VMEM scratch -> exactly conv(pad(relu(bn(x)))), with no
      padded HBM copy and no mask arithmetic.
    * The 9 taps are contracted with a single K=9*Cin im2col matmul (or per-tap
      dots on toolchains without unaligned lane concat).
    * Per-channel sum / sum^2 of the f32 accumulator are emitted for BN stats.
    """
    if apply_input_act:
        x_ref, w_ref, scale_ref, bias_ref, y_ref, sum_ref, ssq_ref, xpad_ref = refs
    else:
        x_ref, w_ref, y_ref, sum_ref, ssq_ref, xpad_ref = refs
        scale_ref = bias_ref = None

    _, H, W, Cin = x_ref.shape
    _, Ho, Wo, Cout = y_ref.shape

    x = x_ref[0]  # (H, W, Cin), activation dtype
    if apply_input_act:
        # Folded BN1 + ReLU applied to conv2's *input* (never round-trips HBM).
        s = scale_ref[...].reshape(1, 1, Cin)
        b = bias_ref[...].reshape(1, 1, Cin)
        x = jnp.maximum(x.astype(jnp.float32) * s + b, 0.0).astype(x_ref.dtype)

    # Zero-padding emulated in VMEM scratch.  Zero every step: the scratch
    # persists across grid steps and megacore splits the grid, so a
    # program_id==0 guard would leave a stale halo on the second core.
    xpad_ref[...] = jnp.zeros(xpad_ref.shape, xpad_ref.dtype)
    xpad_ref[pl.ds(1, H), pl.ds(1, W), :] = x
    xp = xpad_ref[...]  # (H+2, W+2, Cin)

    def tap_patch(tap):
        dy, dx = tap // 3, tap % 3
        p = jax.lax.slice(
            xp,
            (dy, dx, 0),
            (dy + (Ho - 1) * stride + 1, dx + (Wo - 1) * stride + 1, Cin),
            (stride, stride, 1),
        )  # (Ho, Wo, Cin)
        return p.reshape(Ho * Wo, Cin)  # merge leading dims, minor dim unchanged

    if use_im2col:
        # Single K = 9*Cin contraction: raises MXU utilization vs 9 tiny dots.
        patches = jnp.concatenate([tap_patch(t) for t in range(9)], axis=-1)
        acc = jnp.dot(patches, w_ref[...].reshape(9 * Cin, Cout),
                      preferred_element_type=jnp.float32)
    else:
        acc = jnp.zeros((Ho * Wo, Cout), jnp.float32)
        for t in range(9):
            acc += jnp.dot(tap_patch(t), w_ref[t],
                           preferred_element_type=jnp.float32)

    y_ref[0] = acc.reshape(Ho, Wo, Cout).astype(y_ref.dtype)
    # Per-batch-element partial BN statistics from the f32 accumulator.
    sum_ref[0] = jnp.sum(acc, axis=0, keepdims=True)
    ssq_ref[0] = jnp.sum(acc * acc, axis=0, keepdims=True)


def _bn_relu_kernel(y_ref, scale_ref, bias_ref, o_ref):
    """Final fused per-channel affine (folded BN2) + ReLU on one batch tile."""
    y = y_ref[...].astype(jnp.float32)           # (1, H, W, C)
    s = scale_ref[...].reshape(1, 1, 1, -1)
    b = bias_ref[...].reshape(1, 1, 1, -1)
    o_ref[...] = jnp.maximum(y * s + b, 0.0).astype(o_ref.dtype)


# ---------------------------------------------------------------------------
# Wrappers around pallas_call
# ---------------------------------------------------------------------------
def conv3x3_bn_stats(x_nhwc, w9, stride=1, in_scale=None, in_bias=None):
    """3x3 conv (padding=1) + fused per-image BN statistics.

    Returns (y, per-n channel sums, per-n channel sums of squares).  If
    in_scale/in_bias are given, folded BN+ReLU is applied to the input inside
    the kernel (conv2's path).
    """
    N, H, W, Cin = x_nhwc.shape
    Cout = w9.shape[-1]
    Ho = (H + 2 - 3) // stride + 1
    Wo = (W + 2 - 3) // stride + 1
    apply_act = in_scale is not None
    itemsize = x_nhwc.dtype.itemsize

    kernel = functools.partial(
        _conv3x3_bn_stats_kernel,
        stride=stride,
        apply_input_act=apply_act,
        use_im2col=_minor_concat_supported(),
    )

    in_specs = [
        pl.BlockSpec((1, H, W, Cin), lambda n: (n, 0, 0, 0)),
        pl.BlockSpec((9, Cin, Cout), lambda n: (0, 0, 0)),
    ]
    operands = [x_nhwc, w9.astype(x_nhwc.dtype)]
    if apply_act:
        in_specs += [pl.BlockSpec((1, Cin), lambda n: (0, 0)),
                     pl.BlockSpec((1, Cin), lambda n: (0, 0))]
        operands += [in_scale.reshape(1, Cin).astype(jnp.float32),
                     in_bias.reshape(1, Cin).astype(jnp.float32)]

    cost = pl.CostEstimate(
        flops=2 * 9 * Cin * Cout * N * Ho * Wo,
        transcendentals=0,
        bytes_accessed=(N * H * W * Cin * itemsize
                        + 9 * Cin * Cout * itemsize
                        + N * Ho * Wo * Cout * itemsize
                        + 2 * N * Cout * 4),
    )

    return pl.pallas_call(
        kernel,
        out_shape=(
            jax.ShapeDtypeStruct((N, Ho, Wo, Cout), x_nhwc.dtype),
            jax.ShapeDtypeStruct((N, 1, Cout), jnp.float32),
            jax.ShapeDtypeStruct((N, 1, Cout), jnp.float32),
        ),
        grid_spec=pltpu.PrefetchScalarGridSpec(
            num_scalar_prefetch=0,
            grid=(N,),
            in_specs=in_specs,
            out_specs=[
                pl.BlockSpec((1, Ho, Wo, Cout), lambda n: (n, 0, 0, 0)),
                pl.BlockSpec((1, 1, Cout), lambda n: (n, 0, 0)),
                pl.BlockSpec((1, 1, Cout), lambda n: (n, 0, 0)),
            ],
            scratch_shapes=[pltpu.VMEM((H + 2, W + 2, Cin), x_nhwc.dtype)],
        ),
        compiler_params=pltpu.CompilerParams(
            dimension_semantics=("parallel",),
            vmem_limit_bytes=_vmem_limit_bytes(),
        ),
        cost_estimate=cost,
    )(*operands)


def bn_relu_nhwc(y_nhwc, scale, bias):
    """Final BN2 + ReLU, applied in place over y2 (input_output_aliases)."""
    N, H, W, C = y_nhwc.shape
    itemsize = y_nhwc.dtype.itemsize
    return pl.pallas_call(
        _bn_relu_kernel,
        out_shape=jax.ShapeDtypeStruct((N, H, W, C), y_nhwc.dtype),
        grid_spec=pltpu.PrefetchScalarGridSpec(
            num_scalar_prefetch=0,
            grid=(N,),
            in_specs=[
                pl.BlockSpec((1, H, W, C), lambda n: (n, 0, 0, 0)),
                pl.BlockSpec((1, C), lambda n: (0, 0)),
                pl.BlockSpec((1, C), lambda n: (0, 0)),
            ],
            out_specs=pl.BlockSpec((1, H, W, C), lambda n: (n, 0, 0, 0)),
        ),
        compiler_params=pltpu.CompilerParams(
            dimension_semantics=("parallel",),
            vmem_limit_bytes=_vmem_limit_bytes(),
        ),
        input_output_aliases={0: 0},
        cost_estimate=pl.CostEstimate(
            flops=2 * N * H * W * C,
            transcendentals=0,
            bytes_accessed=2 * N * H * W * C * itemsize + 2 * C * 4,
        ),
    )(y_nhwc, scale.reshape(1, C).astype(jnp.float32),
      bias.reshape(1, C).astype(jnp.float32))


def _fold_bn_from_stats(csum, cssq, count, gamma, beta):
    """Combine per-batch-element channel sums into folded BN scale/bias (biased var)."""
    mean = jnp.sum(csum, axis=(0, 1)) / count
    ex2 = jnp.sum(cssq, axis=(0, 1)) / count
    var = jnp.maximum(ex2 - mean * mean, 0.0)   # f32; fine at test magnitudes
    scale = gamma / jnp.sqrt(var + EPS)
    bias = beta - mean * scale
    return scale, bias


def basic_block_forward(x_nchw, params, stride=1):
    """Full BasicBlock forward. Input/output layout: NCHW (PyTorch convention)."""
    x = jnp.transpose(x_nchw, (0, 2, 3, 1))  # NCHW -> NHWC (edge transpose only)
    N = x.shape[0]

    # Stage 1: conv1 (stride s) + fused per-image BN stats.  BN1+ReLU is NOT
    # applied here -- it is folded into conv2's input path below.
    y1, s1, q1 = conv3x3_bn_stats(x, params["w1"], stride=stride)
    _, Ho, Wo, _ = y1.shape
    scale1, bias1 = _fold_bn_from_stats(s1, q1, N * Ho * Wo,
                                        params["g1"], params["b1"])

    # Stage 2: conv2 (stride 1) with BN1+ReLU fused into its input, + fused stats.
    y2, s2, q2 = conv3x3_bn_stats(y1, params["w2"], stride=1,
                                  in_scale=scale1, in_bias=bias1)
    scale2, bias2 = _fold_bn_from_stats(s2, q2, N * Ho * Wo,
                                        params["g2"], params["b2"])

    # Stage 3: BN2 + ReLU epilogue (needs full-batch stats), in place over y2.
    out = bn_relu_nhwc(y2, scale2, bias2)
    return jnp.transpose(out, (0, 3, 1, 2))  # NHWC -> NCHW


# ---------------------------------------------------------------------------
# Pure-JAX reference (mirrors the PyTorch module, NCHW)
# ---------------------------------------------------------------------------
def reference_forward(x, w1_oihw, w2_oihw, g1, b1, g2, b2, stride=1):
    def conv(x, w, s):
        return jax.lax.conv_general_dilated(
            x, w, (s, s), ((1, 1), (1, 1)),
            dimension_numbers=("NCHW", "OIHW", "NCHW"))

    def bn(y, g, b):
        mean = jnp.mean(y, axis=(0, 2, 3), keepdims=True)
        var = jnp.var(y, axis=(0, 2, 3), keepdims=True)
        yhat = (y - mean) / jnp.sqrt(var + EPS)
        return yhat * g.reshape(1, -1, 1, 1) + b.reshape(1, -1, 1, 1)

    out = jax.nn.relu(bn(conv(x, w1_oihw, stride), g1, b1))
    out = jax.nn.relu(bn(conv(out, w2_oihw, 1), g2, b2))
    return out


def _oihw_to_tap_major(w_oihw):
    # (Cout, Cin, 3, 3) -> (9, Cin, Cout), tap index = ky*3 + kx
    Cout, Cin, _, _ = w_oihw.shape
    return jnp.transpose(w_oihw, (2, 3, 1, 0)).reshape(9, Cin, Cout)


if __name__ == "__main__":
    key = jax.random.PRNGKey(0)
    k_x, k_w1, k_w2, k_g1, k_b1, k_g2, k_b2 = jax.random.split(key, 7)

    N, in_planes, planes, H, W = 2, 4, 8, 16, 16

    x = jax.random.normal(k_x, (N, in_planes, H, W), jnp.float32)

    w1_oihw = 0.1 * jax.random.normal(k_w1, (planes, in_planes, 3, 3), jnp.float32)
    w2_oihw = 0.1 * jax.random.normal(k_w2, (planes, planes, 3, 3), jnp.float32)
    g1 = 1.0 + 0.1 * jax.random.normal(k_g1, (planes,), jnp.float32)
    b1 = 0.1 * jax.random.normal(k_b1, (planes,), jnp.float32)
    g2 = 1.0 + 0.1 * jax.random.normal(k_g2, (planes,), jnp.float32)
    b2 = 0.1 * jax.random.normal(k_b2, (planes,), jnp.float32)

    params = {
        "w1": _oihw_to_tap_major(w1_oihw),
        "w2": _oihw_to_tap_major(w2_oihw),
        "g1": g1, "b1": b1, "g2": g2, "b2": b2,
    }

    for stride in (1, 2):
        out = jax.block_until_ready(basic_block_forward(x, params, stride=stride))
        ref = jax.block_until_ready(
            reference_forward(x, w1_oihw, w2_oihw, g1, b1, g2, b2, stride=stride))
        assert out.shape == ref.shape
        np.testing.assert_allclose(np.asarray(out), np.asarray(ref),
                                   rtol=1e-4, atol=1e-4)

    print("KERNEL_OK")
</pallas_src>

<mosaic_0001>
module attributes {stable_mosaic.version = 11 : i64} {
  func.func @probe(%arg0: memref<8x4xf32, #tpu.memory_space<vmem>>, %arg1: memref<8x12xf32, #tpu.memory_space<vmem>>) attributes {dimension_semantics = [], scalar_prefetch = 0 : i64, scratch_operands = 0 : i64, tpu.core_type = #tpu.core_type<tc>} {
    %c0 = arith.constant 0 : index
    %c0_0 = arith.constant 0 : index
    %0 = vector.load %arg0[%c0, %c0_0] : memref<8x4xf32, #tpu.memory_space<vmem>>, vector<8x4xf32>
    %1 = tpu.concatenate %0, %0, %0 in 1 : vector<8x4xf32>, vector<8x4xf32>, vector<8x4xf32> -> vector<8x12xf32>
    %c0_1 = arith.constant 0 : index
    %c0_2 = arith.constant 0 : index
    %2 = vector.load %arg1[%c0_1, %c0_2] : memref<8x12xf32, #tpu.memory_space<vmem>>, vector<8x12xf32>
    tpu.vector_store %arg1[%c0_1, %c0_2], %1 {strides = array<i32>} : memref<8x12xf32, #tpu.memory_space<vmem>>, vector<8x12xf32>,
    return
  }
}

module attributes {stable_mosaic.version = 11 : i64} {
  func.func @_conv3x3_bn_stats_kernel(%arg0: i32, %arg1: memref<1x16x16x4xf32, #tpu.memory_space<vmem>>, %arg2: memref<9x4x8xf32, #tpu.memory_space<vmem>>, %arg3: memref<1x16x16x8xf32, #tpu.memory_space<vmem>>, %arg4: memref<1x1x8xf32, #tpu.memory_space<vmem>>, %arg5: memref<1x1x8xf32, #tpu.memory_space<vmem>>, %arg6: memref<18x18x4xf32, #tpu.memory_space<vmem>>) attributes {dimension_semantics = [#tpu.dimension_semantics<parallel>], iteration_bounds = array<i64: 2>, scalar_prefetch = 0 : i64, scratch_operands = 1 : i64, tpu.core_type = #tpu.core_type<tc>, window_params = [{transform_indices = @transform_0, window_bounds = array<i64: 1, 16, 16, 4>}, {pipeline_mode = #tpu.pipeline_mode<synchronous>, transform_indices = @transform_1, window_bounds = array<i64: 9, 4, 8>}, {transform_indices = @transform_2, window_bounds = array<i64: 1, 16, 16, 8>}, {transform_indices = @transform_3, window_bounds = array<i64: 1, 1, 8>}, {transform_indices = @transform_4, window_bounds = array<i64: 1, 1, 8>}]} {
    %c0 = arith.constant 0 : index
    %c0_0 = arith.constant 0 : index
    %c0_1 = arith.constant 0 : index
    %c0_2 = arith.constant 0 : index
    %0 = vector.load %arg1[%c0, %c0_0, %c0_1, %c0_2] : memref<1x16x16x4xf32, #tpu.memory_space<vmem>>, vector<1x16x16x4xf32>
    %1 = vector.shape_cast %0 : vector<1x16x16x4xf32> to vector<16x16x4xf32>
    %cst = arith.constant 0.000000e+00 : f32
    %2 = vector.broadcast %cst : f32 to vector<18x18x4xf32>
    %c0_3 = arith.constant 0 : index
    %c0_4 = arith.constant 0 : index
    %c0_5 = arith.constant 0 : index
    %3 = vector.load %arg6[%c0_3, %c0_4, %c0_5] : memref<18x18x4xf32, #tpu.memory_space<vmem>>, vector<18x18x4xf32>
    tpu.vector_store %arg6[%c0_3, %c0_4, %c0_5], %2 {strides = array<i32>} : memref<18x18x4xf32, #tpu.memory_space<vmem>>, vector<18x18x4xf32>,
    %c1 = arith.constant 1 : index
    %c1_6 = arith.constant 1 : index
    %c0_7 = arith.constant 0 : index
    %4 = vector.load %arg6[%c1, %c1_6, %c0_7] : memref<18x18x4xf32, #tpu.memory_space<vmem>>, vector<16x16x4xf32>
    tpu.vector_store %arg6[%c1, %c1_6, %c0_7], %1 {strides = array<i32>} : memref<18x18x4xf32, #tpu.memory_space<vmem>>, vector<16x16x4xf32>,
    %c0_8 = arith.constant 0 : index
    %c0_9 = arith.constant 0 : index
    %c0_10 = arith.constant 0 : index
    %5 = vector.load %arg6[%c0_8, %c0_9, %c0_10] : memref<18x18x4xf32, #tpu.memory_space<vmem>>, vector<18x18x4xf32>
    %cst_11 = arith.constant 0.000000e+00 : f32
    %6 = vector.broadcast %cst_11 : f32 to vector<256x8xf32>
    %7 = vector.extract_strided_slice %5 {offsets = [0, 0, 0], sizes = [16, 16, 4], strides = [1, 1, 1]} : vector<18x18x4xf32> to vector<16x16x4xf32>
    %8 = vector.shape_cast %7 : vector<16x16x4xf32> to vector<256x4xf32>
    %c0_12 = arith.constant 0 : index
    %c0_13 = arith.constant 0 : index
    %c0_14 = arith.constant 0 : index
    %9 = vector.load %arg2[%c0_12, %c0_13, %c0_14] : memref<9x4x8xf32, #tpu.memory_space<vmem>>, vector<1x4x8xf32>
    %10 = vector.shape_cast %9 : vector<1x4x8xf32> to vector<4x8xf32>
    %cst_15 = arith.constant dense<0.000000e+00> : vector<256x8xf32>
    %11 = tpu.matmul %8, %10, %cst_15 {dimension_numbers = #tpu.dot_dimension_numbers<[1], [0], [0], [1], [0, 0, 1, 1], [], []>} : vector<256x4xf32>, vector<4x8xf32>, vector<256x8xf32> -> vector<256x8xf32>
    %12 = arith.addf %6, %11 : vector<256x8xf32>
    %13 = vector.extract_strided_slice %5 {offsets = [0, 1, 0], sizes = [16, 16, 4], strides = [1, 1, 1]} : vector<18x18x4xf32> to vector<16x16x4xf32>
    %14 = vector.shape_cast %13 : vector<16x16x4xf32> to vector<256x4xf32>
    %c1_16 = arith.constant 1 : index
    %c0_17 = arith.constant 0 : index
    %c0_18 = arith.constant 0 : index
    %15 = vector.load %arg2[%c1_16, %c0_17, %c0_18] : memref<9x4x8xf32, #tpu.memory_space<vmem>>, vector<1x4x8xf32>
    %16 = vector.shape_cast %15 : vector<1x4x8xf32> to vector<4x8xf32>
    %cst_19 = arith.constant dense<0.000000e+00> : vector<256x8xf32>
    %17 = tpu.matmul %14, %16, %cst_19 {dimension_numbers = #tpu.dot_dimension_numbers<[1], [0], [0], [1], [0, 0, 1, 1], [], []>} : vector<256x4xf32>, vector<4x8xf32>, vector<256x8xf32> -> vector<256x8xf32>
    %18 = arith.addf %12, %17 : vector<256x8xf32>
    %19 = vector.extract_strided_slice %5 {offsets = [0, 2, 0], sizes = [16, 16, 4], strides = [1, 1, 1]} : vector<18x18x4xf32> to vector<16x16x4xf32>
    %20 = vector.shape_cast %19 : vector<16x16x4xf32> to vector<256x4xf32>
    %c2 = arith.constant 2 : index
    %c0_20 = arith.constant 0 : index
    %c0_21 = arith.constant 0 : index
    %21 = vector.load %arg2[%c2, %c0_20, %c0_21] : memref<9x4x8xf32, #tpu.memory_space<vmem>>, vector<1x4x8xf32>
    %22 = vector.shape_cast %21 : vector<1x4x8xf32> to vector<4x8xf32>
    %cst_22 = arith.constant dense<0.000000e+00> : vector<256x8xf32>
    %23 = tpu.matmul %20, %22, %cst_22 {dimension_numbers = #tpu.dot_dimension_numbers<[1], [0], [0], [1], [0, 0, 1, 1], [], []>} : vector<256x4xf32>, vector<4x8xf32>, vector<256x8xf32> -> vector<256x8xf32>
    %24 = arith.addf %18, %23 : vector<256x8xf32>
    %25 = vector.extract_strided_slice %5 {offsets = [1, 0, 0], sizes = [16, 16, 4], strides = [1, 1, 1]} : vector<18x18x4xf32> to vector<16x16x4xf32>
    %26 = vector.shape_cast %25 : vector<16x16x4xf32> to vector<256x4xf32>
    %c3 = arith.constant 3 : index
    %c0_23 = arith.constant 0 : index
    %c0_24 = arith.constant 0 : index
    %27 = vector.load %arg2[%c3, %c0_23, %c0_24] : memref<9x4x8xf32, #tpu.memory_space<vmem>>, vector<1x4x8xf32>
    %28 = vector.shape_cast %27 : vector<1x4x8xf32> to vector<4x8xf32>
    %cst_25 = arith.constant dense<0.000000e+00> : vector<256x8xf32>
    %29 = tpu.matmul %26, %28, %cst_25 {dimension_numbers = #tpu.dot_dimension_numbers<[1], [0], [0], [1], [0, 0, 1, 1], [], []>} : vector<256x4xf32>, vector<4x8xf32>, vector<256x8xf32> -> vector<256x8xf32>
    %30 = arith.addf %24, %29 : vector<256x8xf32>
    %31 = vector.extract_strided_slice %5 {offsets = [1, 1, 0], sizes = [16, 16, 4], strides = [1, 1, 1]} : vector<18x18x4xf32> to vector<16x16x4xf32>
    %32 = vector.shape_cast %31 : vector<16x16x4xf32> to vector<256x4xf32>
    %c4 = arith.constant 4 : index
    %c0_26 = arith.constant 0 : index
    %c0_27 = arith.constant 0 : index
    %33 = vector.load %arg2[%c4, %c0_26, %c0_27] : memref<9x4x8xf32, #tpu.memory_space<vmem>>, vector<1x4x8xf32>
    %34 = vector.shape_cast %33 : vector<1x4x8xf32> to vector<4x8xf32>
    %cst_28 = arith.constant dense<0.000000e+00> : vector<256x8xf32>
    %35 = tpu.matmul %32, %34, %cst_28 {dimension_numbers = #tpu.dot_dimension_numbers<[1], [0], [0], [1], [0, 0, 1, 1], [], []>} : vector<256x4xf32>, vector<4x8xf32>, vector<256x8xf32> -> vector<256x8xf32>
    %36 = arith.addf %30, %35 : vector<256x8xf32>
    %37 = vector.extract_strided_slice %5 {offsets = [1, 2, 0], sizes = [16, 16, 4], strides = [1, 1, 1]} : vector<18x18x4xf32> to vector<16x16x4xf32>
    %38 = vector.shape_cast %37 : vector<16x16x4xf32> to vector<256x4xf32>
    %c5 = arith.constant 5 : index
    %c0_29 = arith.constant 0 : index
    %c0_30 = arith.constant 0 : index
    %39 = vector.load %arg2[%c5, %c0_29, %c0_30] : memref<9x4x8xf32, #tpu.memory_space<vmem>>, vector<1x4x8xf32>
    %40 = vector.shape_cast %39 : vector<1x4x8xf32> to vector<4x8xf32>
    %cst_31 = arith.constant dense<0.000000e+00> : vector<256x8xf32>
    %41 = tpu.matmul %38, %40, %cst_31 {dimension_numbers = #tpu.dot_dimension_numbers<[1], [0], [0], [1], [0, 0, 1, 1], [], []>} : vector<256x4xf32>, vector<4x8xf32>, vector<256x8xf32> -> vector<256x8xf32>
    %42 = arith.addf %36, %41 : vector<256x8xf32>
    %43 = vector.extract_strided_slice %5 {offsets = [2, 0, 0], sizes = [16, 16, 4], strides = [1, 1, 1]} : vector<18x18x4xf32> to vector<16x16x4xf32>
    %44 = vector.shape_cast %43 : vector<16x16x4xf32> to vector<256x4xf32>
    %c6 = arith.constant 6 : index
    %c0_32 = arith.constant 0 : index
    %c0_33 = arith.constant 0 : index
    %45 = vector.load %arg2[%c6, %c0_32, %c0_33] : memref<9x4x8xf32, #tpu.memory_space<vmem>>, vector<1x4x8xf32>
    %46 = vector.shape_cast %45 : vector<1x4x8xf32> to vector<4x8xf32>
    %cst_34 = arith.constant dense<0.000000e+00> : vector<256x8xf32>
    %47 = tpu.matmul %44, %46, %cst_34 {dimension_numbers = #tpu.dot_dimension_numbers<[1], [0], [0], [1], [0, 0, 1, 1], [], []>} : vector<256x4xf32>, vector<4x8xf32>, vector<256x8xf32> -> vector<256x8xf32>
    %48 = arith.addf %42, %47 : vector<256x8xf32>
    %49 = vector.extract_strided_slice %5 {offsets = [2, 1, 0], sizes = [16, 16, 4], strides = [1, 1, 1]} : vector<18x18x4xf32> to vector<16x16x4xf32>
    %50 = vector.shape_cast %49 : vector<16x16x4xf32> to vector<256x4xf32>
    %c7 = arith.constant 7 : index
    %c0_35 = arith.constant 0 : index
    %c0_36 = arith.constant 0 : index
    %51 = vector.load %arg2[%c7, %c0_35, %c0_36] : memref<9x4x8xf32, #tpu.memory_space<vmem>>, vector<1x4x8xf32>
    %52 = vector.shape_cast %51 : vector<1x4x8xf32> to vector<4x8xf32>
    %cst_37 = arith.constant dense<0.000000e+00> : vector<256x8xf32>
    %53 = tpu.matmul %50, %52, %cst_37 {dimension_numbers = #tpu.dot_dimension_numbers<[1], [0], [0], [1], [0, 0, 1, 1], [], []>} : vector<256x4xf32>, vector<4x8xf32>, vector<256x8xf32> -> vector<256x8xf32>
    %54 = arith.addf %48, %53 : vector<256x8xf32>
    %55 = vector.extract_strided_slice %5 {offsets = [2, 2, 0], sizes = [16, 16, 4], strides = [1, 1, 1]} : vector<18x18x4xf32> to vector<16x16x4xf32>
    %56 = vector.shape_cast %55 : vector<16x16x4xf32> to vector<256x4xf32>
    %c8 = arith.constant 8 : index
    %c0_38 = arith.constant 0 : index
    %c0_39 = arith.constant 0 : index
    %57 = vector.load %arg2[%c8, %c0_38, %c0_39] : memref<9x4x8xf32, #tpu.memory_space<vmem>>, vector<1x4x8xf32>
    %58 = vector.shape_cast %57 : vector<1x4x8xf32> to vector<4x8xf32>
    %cst_40 = arith.constant dense<0.000000e+00> : vector<256x8xf32>
    %59 = tpu.matmul %56, %58, %cst_40 {dimension_numbers = #tpu.dot_dimension_numbers<[1], [0], [0], [1], [0, 0, 1, 1], [], []>} : vector<256x4xf32>, vector<4x8xf32>, vector<256x8xf32> -> vector<256x8xf32>
    %60 = arith.addf %54, %59 : vector<256x8xf32>
    %61 = vector.shape_cast %60 : vector<256x8xf32> to vector<16x16x8xf32>
    %c0_41 = arith.constant 0 : index
    %c0_42 = arith.constant 0 : index
    %c0_43 = arith.constant 0 : index
    %c0_44 = arith.constant 0 : index
    %62 = vector.load %arg3[%c0_41, %c0_42, %c0_43, %c0_44] : memref<1x16x16x8xf32, #tpu.memory_space<vmem>>, vector<1x16x16x8xf32>
    %63 = vector.shape_cast %62 : vector<1x16x16x8xf32> to vector<16x16x8xf32>
    %64 = vector.shape_cast %61 : vector<16x16x8xf32> to vector<1x16x16x8xf32>
    tpu.vector_store %arg3[%c0_41, %c0_42, %c0_43, %c0_44], %64 {strides = array<i32>} : memref<1x16x16x8xf32, #tpu.memory_space<vmem>>, vector<1x16x16x8xf32>,
    %cst_45 = arith.constant dense<0.000000e+00> : vector<8xf32>
    %65 = vector.multi_reduction <add>, %60, %cst_45 [0] : vector<256x8xf32> to vector<8xf32>
    %66 = vector.shape_cast %65 : vector<8xf32> to vector<1x8xf32>
    %c0_46 = arith.constant 0 : index
    %c0_47 = arith.constant 0 : index
    %c0_48 = arith.constant 0 : index
    %67 = vector.load %arg4[%c0_46, %c0_47, %c0_48] : memref<1x1x8xf32, #tpu.memory_space<vmem>>, vector<1x1x8xf32>
    %68 = vector.shape_cast %67 : vector<1x1x8xf32> to vector<1x8xf32>
    %69 = vector.shape_cast %66 : vector<1x8xf32> to vector<1x1x8xf32>
    tpu.vector_store %arg4[%c0_46, %c0_47, %c0_48], %69 {strides = array<i32>} : memref<1x1x8xf32, #tpu.memory_space<vmem>>, vector<1x1x8xf32>,
    %70 = arith.mulf %60, %60 : vector<256x8xf32>
    %cst_49 = arith.constant dense<0.000000e+00> : vector<8xf32>
    %71 = vector.multi_reduction <add>, %70, %cst_49 [0] : vector<256x8xf32> to vector<8xf32>
    %72 = vector.shape_cast %71 : vector<8xf32> to vector<1x8xf32>
    %c0_50 = arith.constant 0 : index
    %c0_51 = arith.constant 0 : index
    %c0_52 = arith.constant 0 : index
    %73 = vector.load %arg5[%c0_50, %c0_51, %c0_52] : memref<1x1x8xf32, #tpu.memory_space<vmem>>, vector<1x1x8xf32>
    %74 = vector.shape_cast %73 : vector<1x1x8xf32> to vector<1x8xf32>
    %75 = vector.shape_cast %72 : vector<1x8xf32> to vector<1x1x8xf32>
    tpu.vector_store %arg5[%c0_50, %c0_51, %c0_52], %75 {strides = array<i32>} : memref<1x1x8xf32, #tpu.memory_space<vmem>>, vector<1x1x8xf32>,
    return
  }
  func.func @transform_0(%arg0: i32) -> (i32, i32, i32, i32) {
    %c0_i32 = arith.constant 0 : i32
    %c0_i32_0 = arith.constant 0 : i32
    %c0_i32_1 = arith.constant 0 : i32
    %c0_i32_2 = arith.constant 0 : i32
    return %arg0, %c0_i32, %c0_i32_0, %c0_i32_1 : i32, i32, i32, i32
  }
  func.func @transform_1(%arg0: i32) -> (i32, i32, i32) {
    %c0_i32 = arith.constant 0 : i32
    %c0_i32_0 = arith.constant 0 : i32
    %c0_i32_1 = arith.constant 0 : i32
    %c0_i32_2 = arith.constant 0 : i32
    return %c0_i32, %c0_i32_0, %c0_i32_1 : i32, i32, i32
  }
  func.func @transform_2(%arg0: i32) -> (i32, i32, i32, i32) {
    %c0_i32 = arith.constant 0 : i32
    %c0_i32_0 = arith.constant 0 : i32
    %c0_i32_1 = arith.constant 0 : i32
    %c0_i32_2 = arith.constant 0 : i32
    return %arg0, %c0_i32, %c0_i32_0, %c0_i32_1 : i32, i32, i32, i32
  }
  func.func @transform_3(%arg0: i32) -> (i32, i32, i32) {
    %c0_i32 = arith.constant 0 : i32
    %c0_i32_0 = arith.constant 0 : i32
    %c0_i32_1 = arith.constant 0 : i32
    return %arg0, %c0_i32, %c0_i32_0 : i32, i32, i32
  }
  func.func @transform_4(%arg0: i32) -> (i32, i32, i32) {
    %c0_i32 = arith.constant 0 : i32
    %c0_i32_0 = arith.constant 0 : i32
    %c0_i32_1 = arith.constant 0 : i32
    return %arg0, %c0_i32, %c0_i32_0 : i32, i32, i32
  }
}

</mosaic_0001>

<llo_original>
// kernel: tpu_custom_call.1
$region0: #{tpu_custom_call.1}
  #allocation0 [shape = 'u32[]', space=smem, size = 0x4, offset = 0x4, fixed_abs, tag = 'smem constant byte address 0x4 - core index']
  #allocation1 [shape = 'u32[144,128]{1,0:T(1,128)}', space=vmem, size = 0x12000, scoped, tag = 'internal scratch']
  %s0 = inlined_call_operand.vmem [shape: f32[8,4], index: 0, kind: input, shape index: {}]
  %s1 = inlined_call_operand.hbm [shape: f32[8,12], index: 1, kind: output, shape index: {}]
  %s2 = sld [smem:[#allocation0]]
  $region14: #{tpu_custom_call.1} parent=0
    _
  %s4 = ssub.s32 1, %s2
  %s5 = scalar_select 0, %s4, %s2
  $region1: #{tpu_custom_call.1} parent=0
    #allocation2 [shape = 'u8[4096]{0}', space=vmem, size = 0x1000, scoped, tag = 'output window, operand 0, single buffered']
    #allocation3 [shape = 's32[1]{0}', space=sflag, size = 0x4, scoped, tag = 'scoped memory for tpu_custom_call.1']
    %6 = vsyncpa [#allocation3], 0
    // Predicated region
    $region2: #{tpu_custom_call.1} parent=1 // pred_check
      _
    $region3: #{tpu_custom_call.1} parent=1 // pred_check_branch
      %8 = sbr.rel (0) target = $region5
    $region4: #{tpu_custom_call.1} parent=1 // pred_region
      _
    $region5: #{tpu_custom_call.1} parent=1 // pred_fallthru
      _
    %v9 = vld [vmem:[%s0] sm:$0xff]
    %11 = vrot.lane.b32.xlu0 %v9, 4
    %v12 = vpop.permute.xlu0 %11
    %14 = vrot.lane.b32.xlu0 %v9, 8
    %v15 = vpop.permute.xlu0 %14
    %vm17 = vcmask 31744
    %v18 = vsel %vm17, %v9, %v12
    %vm19 = vcmask 64512
    %v20 = vsel %vm19, %v18, %v15
    %vm21 = vcmask 97280
    %22 = vst.msk [vmem:[#allocation2] sm:$0xff] %vm21, %v20
    // Predicated region
    $region6: #{tpu_custom_call.1} parent=1 // pred_check
      _
    $region7: #{tpu_custom_call.1} parent=1 // pred_check_branch
      %24 = sbr.rel (0) target = $region9
    $region8: #{tpu_custom_call.1} parent=1 // pred_region
      %s26 = ssub.s32 128, 128
      %27 = vsyncadd [#allocation3], %s26
      %s29 = sshll.u32 [#allocation2], 4
      %s30 = int_to_ptr.vmem [resolvable:$true] %s29
      %32 = dma.vmem_to_hbm [thread:$0]  %s30, 128, %s1, [#allocation3]
    $region9: #{tpu_custom_call.1} parent=1 // pred_fallthru
      _
    // Predicated region
    $region10: #{tpu_custom_call.1} parent=1 // pred_check
      _
    $region11: #{tpu_custom_call.1} parent=1 // pred_check_branch
      %34 = sbr.rel (0) target = $region13
    $region12: #{tpu_custom_call.1} parent=1 // pred_region
      %35 = dma.done [#allocation3], 128
    $region13: #{tpu_custom_call.1} parent=1 // pred_fallthru
      _
    %36 = vsyncpa [#allocation3], 1

// kernel: tpu_custom_call.1
$region0: #{tpu_custom_call.1}
  #allocation0 [shape = 'u32[]', space=smem, size = 0x4, offset = 0x4, fixed_abs, tag = 'smem constant byte address 0x4 - core index']
  #allocation1 [shape = 'u32[144,128]{1,0:T(1,128)}', space=vmem, size = 0x12000, scoped, tag = 'internal scratch']
  #allocation2 [shape = 'f32[18,18,4]{2,1,0:T(8,128)}', space=vmem, size = 0x36000, scoped, tag = 'scratch operand']
  %s0 = inlined_call_operand.vmem [shape: f32[2,16,16,4], index: 0, kind: input, shape index: {}]
  %s1 = inlined_call_operand.vmem [shape: f32[9,4,8], index: 1, kind: input, shape index: {}]
  %s2 = inlined_call_operand.vmem [shape: f32[2,16,16,8], index: 2, kind: output, shape index: {0}]
  %s3 = inlined_call_operand.hbm [shape: f32[2,1,8], index: 3, kind: output, shape index: {1}]
  %s4 = inlined_call_operand.hbm [shape: f32[2,1,8], index: 4, kind: output, shape index: {2}]
  %5 = xla_tuple %s2, %s3, %s4
  %s6 = sld [smem:[#allocation0]]
  $region57: #{tpu_custom_call.1} parent=0
    _
  %s8 = ssub.s32 1, %s6
  %s9 = scalar_select 0, %s8, %s6
  $region1: #{tpu_custom_call.1} parent=0
    #allocation3 [shape = 'u8[1024]{0}', space=vmem, size = 0x400, scoped, tag = 'output window, operand 1']
    #allocation4 [shape = 's32[2]{0}', space=sflag, size = 0x8, scoped, tag = 'scoped memory for tpu_custom_call.1']
    #allocation5 [shape = 'u8[1024]{0}', space=vmem, size = 0x400, scoped, tag = 'output window, operand 2']
    #allocation6 [shape = 's32[2]{0}', space=sflag, size = 0x8, scoped, tag = 'scoped memory for tpu_custom_call.1']
    %10 = vsyncpa [#allocation4], 0
    %s11 = scalar_lea.sflag [#allocation4], 1
    %12 = vsyncpa %s11, 0
    %13 = vsyncpa [#allocation6], 0
    %s14 = scalar_lea.sflag [#allocation6], 1
    %15 = vsyncpa %s14, 0
    loop: start=0, step=1, limit=4
    $region2: #{tpu_custom_call.1} parent=1 // loop_pre_header
      _
    $region3: #{tpu_custom_call.1} parent=1 // loop_header
      %s17 = sphi 0, %s21
      %p18 = scmp.ge.s32.totalorder %s17, 4
      %s27 = sphi 0, %s29
      %s30 = sphi 0, %s27
      %s31 = sphi 0, %s30
      %s47 = sphi 0, %s31
      %s51 = sphi 0, %s51
      %s53 = sphi 0, %s51
      %s54 = sphi 0, %s53
      %s68 = sphi 0, %s54
      %s74 = sphi 0, %s76
      %s77 = sphi 0, %s74
      %s78 = sphi 0, %s77
      %s94 = sphi 0, %s78
      %s100 = sphi 0, %s102
      %s103 = sphi 0, %s100
      %s104 = sphi 0, %s103
      %s120 = sphi 0, %s104
      %s126 = sphi 0, %s128
      %s129 = sphi 0, %s126
      %s130 = sphi 0, %s129
      %s146 = sphi 0, %s130
    $region4: #{tpu_custom_call.1} parent=1 // loop_header_branch
      %20 = sbr.rel (%p18) target = $region8
    $region5: #{tpu_custom_call.1} parent=1 // loop_body
      %s22 = ssub.s32 %s17, 1
      %s23 = ssub.s32 %s17, 2
      %s24 = sadd.s32 %s17, 1
      %s25 = ssub.s32 %s17, %s24
      %p26 = scmp.eq.s32.totalorder %s25, 0
      %s28 = sadd.s32 %s27, 1
      %s29 = scalar_select %p26, %s27, %s28
      %p32 = pneg %p26
      %p33 = scmp.eq.s32.totalorder %s17, 1
      %p34 = por %p32, %p33
      %p35 = scmp.ne.s32.totalorder %s27, %s30
      %p36 = scmp.eq.s32.totalorder %s17, 0
      %p37 = por %p35, %p36
      %p38 = scmp.ne.s32.totalorder %s27, %s30
      %p39 = scmp.eq.s32.totalorder %s22, 1
      %p40 = por %p38, %p39
      %p41 = scmp.ne.s32.totalorder %s30, %s31
      %p42 = scmp.eq.s32.totalorder %s22, 0
      %p43 = por %p41, %p42
      %p44 = scmp.ne.s32.totalorder %s30, %s31
      %p45 = scmp.eq.s32.totalorder %s23, 1
      %p46 = por %p44, %p45
      %p48 = scmp.ne.s32.totalorder %s31, %s47
      %p49 = scmp.eq.s32.totalorder %s23, 0
      %p50 = por %p48, %p49
      %s52 = sadd.s32 %s51, 1
      %p55 = scmp.eq.s32.totalorder %s17, 1
      %p56 = scmp.ne.s32.totalorder %s51, %s53
      %p57 = scmp.eq.s32.totalorder %s17, 0
      %p58 = por %p56, %p57
      %p59 = scmp.ne.s32.totalorder %s51, %s53
      %p60 = scmp.eq.s32.totalorder %s22, 1
      %p61 = por %p59, %p60
      %p62 = scmp.ne.s32.totalorder %s53, %s54
      %p63 = scmp.eq.s32.totalorder %s22, 0
      %p64 = por %p62, %p63
      %p65 = scmp.ne.s32.totalorder %s53, %s54
      %p66 = scmp.eq.s32.totalorder %s23, 1
      %p67 = por %p65, %p66
      %p69 = scmp.ne.s32.totalorder %s54, %s68
      %p70 = scmp.eq.s32.totalorder %s23, 0
      %p71 = por %p69, %p70
      %s72 = ssub.s32 %s17, %s24
      %p73 = scmp.eq.s32.totalorder %s72, 0
      %s75 = sadd.s32 %s74, 1
      %s76 = scalar_select %p73, %s74, %s75
      %p79 = pneg %p73
      %p80 = scmp.eq.s32.totalorder %s17, 1
      %p81 = por %p79, %p80
      %p82 = scmp.ne.s32.totalorder %s74, %s77
      %p83 = scmp.eq.s32.totalorder %s17, 0
      %p84 = por %p82, %p83
      %p85 = scmp.ne.s32.totalorder %s74, %s77
      %p86 = scmp.eq.s32.totalorder %s22, 1
      %p87 = por %p85, %p86
      %p88 = scmp.ne.s32.totalorder %s77, %s78
      %p89 = scmp.eq.s32.totalorder %s22, 0
      %p90 = por %p88, %p89
      %p91 = scmp.ne.s32.totalorder %s77, %s78
      %p92 = scmp.eq.s32.totalorder %s23, 1
      %p93 = por %p91, %p92
      %p95 = scmp.ne.s32.totalorder %s78, %s94
      %p96 = scmp.eq.s32.totalorder %s23, 0
      %p97 = por %p95, %p96
      %s98 = ssub.s32 %s17, %s24
      %p99 = scmp.eq.s32.totalorder %s98, 0
      %s101 = sadd.s32 %s100, 1
      %s102 = scalar_select %p99, %s100, %s101
      %p105 = pneg %p99
      %p106 = scmp.eq.s32.totalorder %s17, 1
      %p107 = por %p105, %p106
      %p108 = scmp.ne.s32.totalorder %s100, %s103
      %p109 = scmp.eq.s32.totalorder %s17, 0
      %p110 = por %p108, %p109
      %p111 = scmp.ne.s32.totalorder %s100, %s103
      %p112 = scmp.eq.s32.totalorder %s22, 1
      %p113 = por %p111, %p112
      %p114 = scmp.ne.s32.totalorder %s103, %s104
      %p115 = scmp.eq.s32.totalorder %s22, 0
      %p116 = por %p114, %p115
      %p117 = scmp.ne.s32.totalorder %s103, %s104
      %p118 = scmp.eq.s32.totalorder %s23, 1
      %p119 = por %p117, %p118
      %p121 = scmp.ne.s32.totalorder %s104, %s120
      %p122 = scmp.eq.s32.totalorder %s23, 0
      %p123 = por %p121, %p122
      %s124 = ssub.s32 %s17, %s24
      %p125 = scmp.eq.s32.totalorder %s124, 0
      %s127 = sadd.s32 %s126, 1
      %s128 = scalar_select %p125, %s126, %s127
      %p131 = pneg %p125
      %p132 = scmp.eq.s32.totalorder %s17, 1
      %p133 = por %p131, %p132
      %p134 = scmp.ne.s32.totalorder %s126, %s129
      %p135 = scmp.eq.s32.totalorder %s17, 0
      %p136 = por %p134, %p135
      %p137 = scmp.ne.s32.totalorder %s126, %s129
      %p138 = scmp.eq.s32.totalorder %s22, 1
      %p139 = por %p137, %p138
      %p140 = scmp.ne.s32.totalorder %s129, %s130
      %p141 = scmp.eq.s32.totalorder %s22, 0
      %p142 = por %p140, %p141
      %p143 = scmp.ne.s32.totalorder %s129, %s130
      %p144 = scmp.eq.s32.totalorder %s23, 1
      %p145 = por %p143, %p144
      %p147 = scmp.ne.s32.totalorder %s130, %s146
      %p148 = scmp.eq.s32.totalorder %s23, 0
      %p149 = por %p147, %p148
      %p150 = scmp.le.s32.totalorder 1, %s17
      %p151 = scmp.lt.s32.totalorder %s17, 3
      %p152 = pnand %p150, %p151
      %p153 = pneg %p152
      // Predicated region
      $region9: #{tpu_custom_call.1} parent=5 // pred_check
        _
      $region10: #{tpu_custom_call.1} parent=5 // pred_check_branch
        %155 = sbr.rel (%p152) target = $region12
      $region11: #{tpu_custom_call.1} parent=5 // pred_region
        %s156 = ssub.s32 %s17, 1
        // Predicated region
        $region13: #{tpu_custom_call.1} parent=11 // pred_check
          %p157 = pneg %p64
        $region14: #{tpu_custom_call.1} parent=11 // pred_check_branch
          %159 = sbr.rel (%p157) target = $region16
        $region15: #{tpu_custom_call.1} parent=11 // pred_region
          _
        $region16: #{tpu_custom_call.1} parent=11 // pred_fallthru
          _
      $region12: #{tpu_custom_call.1} parent=5 // pred_fallthru
        _
      %p160 = scmp.lt.s32.totalorder %s17, 2
      // Predicated region
      $region17: #{tpu_custom_call.1} parent=5 // pred_check
        %p161 = pneg %p160
      $region18: #{tpu_custom_call.1} parent=5 // pred_check_branch
        %163 = sbr.rel (%p161) target = $region20
      $region19: #{tpu_custom_call.1} parent=5 // pred_region
        // Predicated region
        $region21: #{tpu_custom_call.1} parent=19 // pred_check
          %p164 = pneg %p37
        $region22: #{tpu_custom_call.1} parent=19 // pred_check_branch
          %166 = sbr.rel (%p164) target = $region24
        $region23: #{tpu_custom_call.1} parent=19 // pred_region
          %p167 = scmp.lt.s32.totalorder %s17, 1
          %s168 = scalar_select %p167, %s17, 1
          %s169 = smul.addr %s168, 32
          %s170 = smul.addr %s169, 8
          %s171 = scalar_lea.vmem %s0, %s170
        $region24: #{tpu_custom_call.1} parent=19 // pred_fallthru
          _
      $region20: #{tpu_custom_call.1} parent=5 // pred_fallthru
        _
      %p172 = scmp.le.s32.totalorder 1, %s17
      %p173 = scmp.lt.s32.totalorder %s17, 3
      %p174 = pnand %p172, %p173
      %p175 = pneg %p174
      // Predicated region
      $region25: #{tpu_custom_call.1} parent=5 // pred_check
        _
      $region26: #{tpu_custom_call.1} parent=5 // pred_check_branch
        %177 = sbr.rel (%p174) target = $region28
      $region27: #{tpu_custom_call.1} parent=5 // pred_region
        %s178 = ssub.s32 %s17, 1
        %p179 = scmp.lt.s32.totalorder %s22, 1
        %s180 = scalar_select %p179, %s22, 1
        %s181 = smul.addr %s180, 32
        %s182 = smul.addr %s181, 8
        %s183 = scalar_lea.vmem %s0, %s182
        %p184 = pneg %p43
        %p185 = pneg %p40
        %p186 = pneg %p64
        %p187 = pneg %p61
        %p188 = pneg %p90
        %p189 = pneg %p87
        %p190 = scmp.lt.s32.totalorder %s22, 1
        %s191 = scalar_select %p190, %s22, 1
        %s192 = smul.addr %s191, 32
        %s193 = smul.addr %s192, 8
        %s194 = scalar_lea.vmem %s2, %s193
        %p195 = pneg %p116
        %p196 = pneg %p113
        %s197 = sand.u32 %s103, 1
        %s198 = scalar_lea.sflag [#allocation4], %s197
        %s199 = sand.u32 %s103, 1
        %s200 = scalar_lea.vmem [#allocation3], %s199
        %p201 = pneg %p142
        %p202 = pneg %p139
        %s203 = sand.u32 %s129, 1
        %s204 = scalar_lea.sflag [#allocation6], %s203
        %s205 = sand.u32 %s129, 1
        %s206 = scalar_lea.vmem [#allocation5], %s205
        %p207 = scmp.lt.s32.totalorder %s22, 1
        %s208 = scalar_select %p207, %s22, 1
        %s209 = smul.addr %s208, 32
        %s210 = smul.addr %s209, 8
        %s211 = scalar_lea.vmem %s0, %s210
        %p212 = scmp.lt.s32.totalorder %s22, 1
        %s213 = scalar_select %p212, %s22, 1
        %s214 = smul.addr %s213, 32
        %s215 = smul.addr %s214, 8
        %s216 = scalar_lea.vmem %s2, %s215
        %v217 = vld [vmem:[%s211] sm:$0xff]
        %v218 = vld [vmem:[%s211 + $0x8] sm:$0xff]
        %v219 = vld [vmem:[%s211 + $0x10] sm:$0xff]
        %v220 = vld [vmem:[%s211 + $0x18] sm:$0xff]
        %v221 = vld [vmem:[%s211 + $0x20] sm:$0xff]
        %v222 = vld [vmem:[%s211 + $0x28] sm:$0xff]
        %v223 = vld [vmem:[%s211 + $0x30] sm:$0xff]
        %v224 = vld [vmem:[%s211 + $0x38] sm:$0xff]
        %v225 = vld [vmem:[%s211 + $0x40] sm:$0xff]
        %v226 = vld [vmem:[%s211 + $0x48] sm:$0xff]
        %v227 = vld [vmem:[%s211 + $0x50] sm:$0xff]
        %v228 = vld [vmem:[%s211 + $0x58] sm:$0xff]
        %v229 = vld [vmem:[%s211 + $0x60] sm:$0xff]
        %v230 = vld [vmem:[%s211 + $0x68] sm:$0xff]
        %v231 = vld [vmem:[%s211 + $0x70] sm:$0xff]
        %v232 = vld [vmem:[%s211 + $0x78] sm:$0xff]
        %v233 = vld [vmem:[%s211 + $0x80] sm:$0xff]
        %v234 = vld [vmem:[%s211 + $0x88] sm:$0xff]
        %v235 = vld [vmem:[%s211 + $0x90] sm:$0xff]
        %v236 = vld [vmem:[%s211 + $0x98] sm:$0xff]
        %v237 = vld [vmem:[%s211 + $0xa0] sm:$0xff]
        %v238 = vld [vmem:[%s211 + $0xa8] sm:$0xff]
        %v239 = vld [vmem:[%s211 + $0xb0] sm:$0xff]
        %v240 = vld [vmem:[%s211 + $0xb8] sm:$0xff]
        %v241 = vld [vmem:[%s211 + $0xc0] sm:$0xff]
        %v242 = vld [vmem:[%s211 + $0xc8] sm:$0xff]
        %v243 = vld [vmem:[%s211 + $0xd0] sm:$0xff]
        %v244 = vld [vmem:[%s211 + $0xd8] sm:$0xff]
        %v245 = vld [vmem:[%s211 + $0xe0] sm:$0xff]
        %v246 = vld [vmem:[%s211 + $0xe8] sm:$0xff]
        %v247 = vld [vmem:[%s211 + $0xf0] sm:$0xff]
        %v248 = vld [vmem:[%s211 + $0xf8] sm:$0xff]
        %vm249 = vcmask 31744
        %250 = vst.msk [vmem:[#allocation2] sm:$0xff] %vm249, 0.0
        %251 = vst.msk [vmem:[#allocation2 + $0x8] sm:$0xff] %vm249, 0.0
        %vm252 = vcmask 25600
        %253 = vst.msk [vmem:[#allocation2 + $0x10] sm:$0x3] %vm252, 0.0
        %254 = vst.msk [vmem:[#allocation2 + $0x18] sm:$0xff] %vm249, 0.0
        %255 = vst.msk [vmem:[#allocation2 + $0x20] sm:$0xff] %vm249, 0.0
        %256 = vst.msk [vmem:[#allocation2 + $0x28] sm:$0x3] %vm252, 0.0
        %257 = vst.msk [vmem:[#allocation2 + $0x30] sm:$0xff] %vm249, 0.0
        %258 = vst.msk [vmem:[#allocation2 + $0x38] sm:$0xff] %vm249, 0.0
        %259 = vst.msk [vmem:[#allocation2 + $0x40] sm:$0x3] %vm252, 0.0
        %260 = vst.msk [vmem:[#allocation2 + $0x48] sm:$0xff] %vm249, 0.0
        %261 = vst.msk [vmem:[#allocation2 + $0x50] sm:$0xff] %vm249, 0.0
        %262 = vst.msk [vmem:[#allocation2 + $0x58] sm:$0x3] %vm252, 0.0
        %263 = vst.msk [vmem:[#allocation2 + $0x60] sm:$0xff] %vm249, 0.0
        %264 = vst.msk [vmem:[#allocation2 + $0x68] sm:$0xff] %vm249, 0.0
        %265 = vst.msk [vmem:[#allocation2 + $0x70] sm:$0x3] %vm252, 0.0
        %266 = vst.msk [vmem:[#allocation2 + $0x78] sm:$0xff] %vm249, 0.0
        %267 = vst.msk [vmem:[#allocation2 + $0x80] sm:$0xff] %vm249, 0.0
        %268 = vst.msk [vmem:[#allocation2 + $0x88] sm:$0x3] %vm252, 0.0
        %269 = vst.msk [vmem:[#allocation2 + $0x90] sm:$0xff] %vm249, 0.0
        %270 = vst.msk [vmem:[#allocation2 + $0x98] sm:$0xff] %vm249, 0.0
        %271 = vst.msk [vmem:[#allocation2 + $0xa0] sm:$0x3] %vm252, 0.0
        %272 = vst.msk [vmem:[#allocation2 + $0xa8] sm:$0xff] %vm249, 0.0
        %273 = vst.msk [vmem:[#allocation2 + $0xb0] sm:$0xff] %vm249, 0.0
        %274 = vst.msk [vmem:[#allocation2 + $0xb8] sm:$0x3] %vm252, 0.0
        %275 = vst.msk [vmem:[#allocation2 + $0xc0] sm:$0xff] %vm249, 0.0
        %276 = vst.msk [vmem:[#allocation2 + $0xc8] sm:$0xff] %vm249, 0.0
        %277 = vst.msk [vmem:[#allocation2 + $0xd0] sm:$0x3] %vm252, 0.0
        %278 = vst.msk [vmem:[#allocation2 + $0xd8] sm:$0xff] %vm249, 0.0
        %279 = vst.msk [vmem:[#allocation2 + $0xe0] sm:$0xff] %vm249, 0.0
        %280 = vst.msk [vmem:[#allocation2 + $0xe8] sm:$0x3] %vm252, 0.0
        %281 = vst.msk [vmem:[#allocation2 + $0xf0] sm:$0xff] %vm249, 0.0
        %282 = vst.msk [vmem:[#allocation2 + $0xf8] sm:$0xff] %vm249, 0.0
        %283 = vst.msk [vmem:[#allocation2 + $0x100] sm:$0x3] %vm252, 0.0
        %284 = vst.msk [vmem:[#allocation2 + $0x108] sm:$0xff] %vm249, 0.0
        %285 = vst.msk [vmem:[#allocation2 + $0x110] sm:$0xff] %vm249, 0.0
        %286 = vst.msk [vmem:[#allocation2 + $0x118] sm:$0x3] %vm252, 0.0
        %287 = vst.msk [vmem:[#allocation2 + $0x120] sm:$0xff] %vm249, 0.0
        %288 = vst.msk [vmem:[#allocation2 + $0x128] sm:$0xff] %vm249, 0.0
        %289 = vst.msk [vmem:[#allocation2 + $0x130] sm:$0x3] %vm252, 0.0
        %290 = vst.msk [vmem:[#allocation2 + $0x138] sm:$0xff] %vm249, 0.0
        %291 = vst.msk [vmem:[#allocation2 + $0x140] sm:$0xff] %vm249, 0.0
        %292 = vst.msk [vmem:[#allocation2 + $0x148] sm:$0x3] %vm252, 0.0
        %293 = vst.msk [vmem:[#allocation2 + $0x150] sm:$0xff] %vm249, 0.0
        %294 = vst.msk [vmem:[#allocation2 + $0x158] sm:$0xff] %vm249, 0.0
        %295 = vst.msk [vmem:[#allocation2 + $0x160] sm:$0x3] %vm252, 0.0
        %296 = vst.msk [vmem:[#allocation2 + $0x168] sm:$0xff] %vm249, 0.0
        %297 = vst.msk [vmem:[#allocation2 + $0x170] sm:$0xff] %vm249, 0.0
        %298 = vst.msk [vmem:[#allocation2 + $0x178] sm:$0x3] %vm252, 0.0
        %299 = vst.msk [vmem:[#allocation2 + $0x180] sm:$0xff] %vm249, 0.0
        %300 = vst.msk [vmem:[#allocation2 + $0x188] sm:$0xff] %vm249, 0.0
        %301 = vst.msk [vmem:[#allocation2 + $0x190] sm:$0x3] %vm252, 0.0
        %302 = vst.msk [vmem:[#allocation2 + $0x198] sm:$0xff] %vm249, 0.0
        %303 = vst.msk [vmem:[#allocation2 + $0x1a0] sm:$0xff] %vm249, 0.0
        %304 = vst.msk [vmem:[#allocation2 + $0x1a8] sm:$0x3] %vm252, 0.0
        %s305 = scalar_lea.vmem [#allocation2], 24
        %306 = vst.msk [vmem:[%s305 + $0x1] sm:$0xff] %vm249, %v217
        %307 = vst.msk [vmem:[%s305 + $0x9] sm:$0xff] %vm249, %v218
        %308 = vst.msk [vmem:[%s305 + $0x19] sm:$0xff] %vm249, %v219
        %309 = vst.msk [vmem:[%s305 + $0x21] sm:$0xff] %vm249, %v220
        %310 = vst.msk [vmem:[%s305 + $0x31] sm:$0xff] %vm249, %v221
        %311 = vst.msk [vmem:[%s305 + $0x39] sm:$0xff] %vm249, %v222
        %312 = vst.msk [vmem:[%s305 + $0x49] sm:$0xff] %vm249, %v223
        %313 = vst.msk [vmem:[%s305 + $0x51] sm:$0xff] %vm249, %v224
        %314 = vst.msk [vmem:[%s305 + $0x61] sm:$0xff] %vm249, %v225
        %315 = vst.msk [vmem:[%s305 + $0x69] sm:$0xff] %vm249, %v226
        %316 = vst.msk [vmem:[%s305 + $0x79] sm:$0xff] %vm249, %v227
        %317 = vst.msk [vmem:[%s305 + $0x81] sm:$0xff] %vm249, %v228
        %318 = vst.msk [vmem:[%s305 + $0x91] sm:$0xff] %vm249, %v229
        %319 = vst.msk [vmem:[%s305 + $0x99] sm:$0xff] %vm249, %v230
        %320 = vst.msk [vmem:[%s305 + $0xa9] sm:$0xff] %vm249, %v231
        %321 = vst.msk [vmem:[%s305 + $0xb1] sm:$0xff] %vm249, %v232
        %322 = vst.msk [vmem:[%s305 + $0xc1] sm:$0xff] %vm249, %v233
        %323 = vst.msk [vmem:[%s305 + $0xc9] sm:$0xff] %vm249, %v234
        %324 = vst.msk [vmem:[%s305 + $0xd9] sm:$0xff] %vm249, %v235
        %325 = vst.msk [vmem:[%s305 + $0xe1] sm:$0xff] %vm249, %v236
        %326 = vst.msk [vmem:[%s305 + $0xf1] sm:$0xff] %vm249, %v237
        %327 = vst.msk [vmem:[%s305 + $0xf9] sm:$0xff] %vm249, %v238
        %328 = vst.msk [vmem:[%s305 + $0x109] sm:$0xff] %vm249, %v239
        %329 = vst.msk [vmem:[%s305 + $0x111] sm:$0xff] %vm249, %v240
        %330 = vst.msk [vmem:[%s305 + $0x121] sm:$0xff] %vm249, %v241
        %331 = vst.msk [vmem:[%s305 + $0x129] sm:$0xff] %vm249, %v242
        %332 = vst.msk [vmem:[%s305 + $0x139] sm:$0xff] %vm249, %v243
        %333 = vst.msk [vmem:[%s305 + $0x141] sm:$0xff] %vm249, %v244
        %334 = vst.msk [vmem:[%s305 + $0x151] sm:$0xff] %vm249, %v245
        %335 = vst.msk [vmem:[%s305 + $0x159] sm:$0xff] %vm249, %v246
        %336 = vst.msk [vmem:[%s305 + $0x169] sm:$0xff] %vm249, %v247
        %337 = vst.msk [vmem:[%s305 + $0x171] sm:$0xff] %vm249, %v248
        %v338 = vld [vmem:[#allocation2] sm:$0xff]
        %v339 = vld [vmem:[#allocation2 + $0x8] sm:$0xff]
        %v340 = vld [vmem:[#allocation2 + $0x10] sm:$0x3]
        %v341 = vld [vmem:[#allocation2 + $0x18] sm:$0xff]
        %v342 = vld [vmem:[#allocation2 + $0x20] sm:$0xff]
        %v343 = vld [vmem:[#allocation2 + $0x28] sm:$0x3]
        %v344 = vld [vmem:[#allocation2 + $0x30] sm:$0xff]
        %v345 = vld [vmem:[#allocation2 + $0x38] sm:$0xff]
        %v346 = vld [vmem:[#allocation2 + $0x40] sm:$0x3]
        %v347 = vld [vmem:[#allocation2 + $0x48] sm:$0xff]
        %v348 = vld [vmem:[#allocation2 + $0x50] sm:$0xff]
        %v349 = vld [vmem:[#allocation2 + $0x58] sm:$0x3]
        %v350 = vld [vmem:[#allocation2 + $0x60] sm:$0xff]
        %v351 = vld [vmem:[#allocation2 + $0x68] sm:$0xff]
        %v352 = vld [vmem:[#allocation2 + $0x70] sm:$0x3]
        %v353 = vld [vmem:[#allocation2 + $0x78] sm:$0xff]
        %v354 = vld [vmem:[#allocation2 + $0x80] sm:$0xff]
        %v355 = vld [vmem:[#allocation2 + $0x88] sm:$0x3]
        %v356 = vld [vmem:[#allocation2 + $0x90] sm:$0xff]
        %v357 = vld [vmem:[#allocation2 + $0x98] sm:$0xff]
        %v358 = vld [vmem:[#allocation2 + $0xa0] sm:$0x3]
        %v359 = vld [vmem:[#allocation2 + $0xa8] sm:$0xff]
        %v360 = vld [vmem:[#allocation2 + $0xb0] sm:$0xff]
        %v361 = vld [vmem:[#allocation2 + $0xb8] sm:$0x3]
        %v362 = vld [vmem:[#allocation2 + $0xc0] sm:$0xff]
        %v363 = vld [vmem:[#allocation2 + $0xc8] sm:$0xff]
        %v364 = vld [vmem:[#allocation2 + $0xd0] sm:$0x3]
        %v365 = vld [vmem:[#allocation2 + $0xd8] sm:$0xff]
        %v366 = vld [vmem:[#allocation2 + $0xe0] sm:$0xff]
        %v367 = vld [vmem:[#allocation2 + $0xe8] sm:$0x3]
        %v368 = vld [vmem:[#allocation2 + $0xf0] sm:$0xff]
        %v369 = vld [vmem:[#allocation2 + $0xf8] sm:$0xff]
        %v370 = vld [vmem:[#allocation2 + $0x100] sm:$0x3]
        %v371 = vld [vmem:[#allocation2 + $0x108] sm:$0xff]
        %v372 = vld [vmem:[#allocation2 + $0x110] sm:$0xff]
        %v373 = vld [vmem:[#allocation2 + $0x118] sm:$0x3]
        %v374 = vld [vmem:[#allocation2 + $0x120] sm:$0xff]
        %v375 = vld [vmem:[#allocation2 + $0x128] sm:$0xff]
        %v376 = vld [vmem:[#allocation2 + $0x130] sm:$0x3]
        %v377 = vld [vmem:[#allocation2 + $0x138] sm:$0xff]
        %v378 = vld [vmem:[#allocation2 + $0x140] sm:$0xff]
        %v379 = vld [vmem:[#allocation2 + $0x148] sm:$0x3]
        %v380 = vld [vmem:[#allocation2 + $0x150] sm:$0xff]
        %v381 = vld [vmem:[#allocation2 + $0x158] sm:$0xff]
        %v382 = vld [vmem:[#allocation2 + $0x160] sm:$0x3]
        %v383 = vld [vmem:[#allocation2 + $0x168] sm:$0xff]
        %v384 = vld [vmem:[#allocation2 + $0x170] sm:$0xff]
        %v385 = vld [vmem:[#allocation2 + $0x178] sm:$0x3]
        %v386 = vld [vmem:[#allocation2 + $0x180] sm:$0xff]
        %v387 = vld [vmem:[#allocation2 + $0x188] sm:$0xff]
        %v388 = vld [vmem:[#allocation2 + $0x190] sm:$0x3]
        %v389 = vld [vmem:[#allocation2 + $0x198] sm:$0xff]
        %v390 = vld [vmem:[#allocation2 + $0x1a0] sm:$0xff]
        %v391 = vld [vmem:[#allocation2 + $0x1a8] sm:$0x3]
        %v392 = vld [vmem:[%s1] sm:$0xf]
        %vm441 = vcmask 1046528
        %v442 = vrot.slane %v338, 1
        %v443 = vrot.slane %v339, 1
        %v444 = vsel %vm441, %v442, %v443
        %v445 = vrot.slane %v340, 1
        %v446 = vsel %vm441, %v443, %v445
        %v447 = vrot.slane %v341, 1
        %v448 = vrot.slane %v342, 1
        %v449 = vsel %vm441, %v447, %v448
        %v450 = vrot.slane %v343, 1
        %v451 = vsel %vm441, %v448, %v450
        %v452 = vrot.slane %v344, 1
        %v453 = vrot.slane %v345, 1
        %v454 = vsel %vm441, %v452, %v453
        %v455 = vrot.slane %v346, 1
        %v456 = vsel %vm441, %v453, %v455
        %v457 = vrot.slane %v347, 1
        %v458 = vrot.slane %v348, 1
        %v459 = vsel %vm441, %v457, %v458
        %v460 = vrot.slane %v349, 1
        %v461 = vsel %vm441, %v458, %v460
        %v462 = vrot.slane %v350, 1
        %v463 = vrot.slane %v351, 1
        %v464 = vsel %vm441, %v462, %v463
        %v465 = vrot.slane %v352, 1
        %v466 = vsel %vm441, %v463, %v465
        %v467 = vrot.slane %v353, 1
        %v468 = vrot.slane %v354, 1
        %v469 = vsel %vm441, %v467, %v468
        %v470 = vrot.slane %v355, 1
        %v471 = vsel %vm441, %v468, %v470
        %v472 = vrot.slane %v356, 1
        %v473 = vrot.slane %v357, 1
        %v474 = vsel %vm441, %v472, %v473
        %v475 = vrot.slane %v358, 1
        %v476 = vsel %vm441, %v473, %v475
        %v477 = vrot.slane %v359, 1
        %v478 = vrot.slane %v360, 1
        %v479 = vsel %vm441, %v477, %v478
        %v480 = vrot.slane %v361, 1
        %v481 = vsel %vm441, %v478, %v480
        %v482 = vrot.slane %v362, 1
        %v483 = vrot.slane %v363, 1
        %v484 = vsel %vm441, %v482, %v483
        %v485 = vrot.slane %v364, 1
        %v486 = vsel %vm441, %v483, %v485
        %v487 = vrot.slane %v365, 1
        %v488 = vrot.slane %v366, 1
        %v489 = vsel %vm441, %v487, %v488
        %v490 = vrot.slane %v367, 1
        %v491 = vsel %vm441, %v488, %v490
        %v492 = vrot.slane %v368, 1
        %v493 = vrot.slane %v369, 1
        %v494 = vsel %vm441, %v492, %v493
        %v495 = vrot.slane %v370, 1
        %v496 = vsel %vm441, %v493, %v495
        %v497 = vrot.slane %v371, 1
        %v498 = vrot.slane %v372, 1
        %v499 = vsel %vm441, %v497, %v498
        %v500 = vrot.slane %v373, 1
        %v501 = vsel %vm441, %v498, %v500
        %v502 = vrot.slane %v374, 1
        %v503 = vrot.slane %v375, 1
        %v504 = vsel %vm441, %v502, %v503
        %v505 = vrot.slane %v376, 1
        %v506 = vsel %vm441, %v503, %v505
        %v507 = vrot.slane %v377, 1
        %v508 = vrot.slane %v378, 1
        %v509 = vsel %vm441, %v507, %v508
        %v510 = vrot.slane %v379, 1
        %v511 = vsel %vm441, %v508, %v510
        %v512 = vrot.slane %v380, 1
        %v513 = vrot.slane %v381, 1
        %v514 = vsel %vm441, %v512, %v513
        %v515 = vrot.slane %v382, 1
        %v516 = vsel %vm441, %v513, %v515
        %v517 = vrot.slane %v383, 1
        %v518 = vrot.slane %v384, 1
        %v519 = vsel %vm441, %v517, %v518
        %v520 = vrot.slane %v385, 1
        %v521 = vsel %vm441, %v518, %v520
        %s522 = scalar_lea.vmem %s1, 4
        %v523 = vld [vmem:[%s522] sm:$0xf]
        %v524 = vsel %vm249, %v444, 0
        %v526 = vsel %vm249, %v446, 0
        %v528 = vsel %vm249, %v449, 0
        %v530 = vsel %vm249, %v451, 0
        %v532 = vsel %vm249, %v454, 0
        %v534 = vsel %vm249, %v456, 0
        %v536 = vsel %vm249, %v459, 0
        %v538 = vsel %vm249, %v461, 0
        %v540 = vsel %vm249, %v464, 0
        %v542 = vsel %vm249, %v466, 0
        %v544 = vsel %vm249, %v469, 0
        %v546 = vsel %vm249, %v471, 0
        %v548 = vsel %vm249, %v474, 0
        %v550 = vsel %vm249, %v476, 0
        %v552 = vsel %vm249, %v479, 0
        %v554 = vsel %vm249, %v481, 0
        %v556 = vsel %vm249, %v484, 0
        %v558 = vsel %vm249, %v486, 0
        %v560 = vsel %vm249, %v489, 0
        %v562 = vsel %vm249, %v491, 0
        %v564 = vsel %vm249, %v494, 0
        %v566 = vsel %vm249, %v496, 0
        %v568 = vsel %vm249, %v499, 0
        %v570 = vsel %vm249, %v501, 0
        %v572 = vsel %vm249, %v504, 0
        %v574 = vsel %vm249, %v506, 0
        %v576 = vsel %vm249, %v509, 0
        %v578 = vsel %vm249, %v511, 0
        %v580 = vsel %vm249, %v514, 0
        %v582 = vsel %vm249, %v516, 0
        %v584 = vsel %vm249, %v519, 0
        %v586 = vsel %vm249, %v521, 0
        %vm588 = vcmask 1043456
        %v590 = vsel %vm588, %v523, 0
        %592 = vmatprep.subr.mxu0 0.0
        %593 = vmatpush1.msra.mxu0 %v590
        %594 = vmatprep.subr.mxu0 0.0
        %595 = vmatpush1.msra.mxu0 0.0
        %596 = vmatprep.subr.mxu0 0.0
        %597 = vmatpush1.msra.mxu0 0.0
        %598 = vmatprep.subr.mxu0 0.0
        %599 = vmatpush1.msra.mxu0 0.0
        %600 = vmatprep.subr.mxu0 0.0
        %601 = vmatpush1.msra.mxu0 0.0
        %602 = vmatprep.subr.mxu0 0.0
        %603 = vmatpush1.msra.mxu0 0.0
        %604 = vmatprep.subr.mxu0 0.0
        %605 = vmatpush1.msra.mxu0 0.0
        %606 = vmatprep.subr.mxu0 0.0
        %607 = vmatpush1.msra.mxu0 0.0
        %608 = vmatprep.subr.mxu0 0.0
        %609 = vmatpush1.msra.mxu0 0.0
        %610 = vmatprep.subr.mxu0 0.0
        %611 = vmatpush1.msra.mxu0 0.0
        %612 = vmatprep.subr.mxu0 0.0
        %613 = vmatpush1.msra.mxu0 0.0
        %614 = vmatprep.subr.mxu0 0.0
        %615 = vmatpush1.msra.mxu0 0.0
        %616 = vmatprep.subr.mxu0 0.0
        %617 = vmatpush1.msra.mxu0 0.0
        %618 = vmatprep.subr.mxu0 0.0
        %619 = vmatpush1.msra.mxu0 0.0
        %620 = vmatprep.subr.mxu0 0.0
        %621 = vmatpush1.msra.mxu0 0.0
        %622 = vmatprep.subr.mxu0 0.0
        %623 = vmatpush1.msra.mxu0 0.0
        %624 = vmatprep.subr.mxu0 0.0
        %625 = vmatpush1.msra.mxu0 0.0
        %626 = vmatprep.subr.mxu0 0.0
        %627 = vmatpush1.msra.mxu0 0.0
        %628 = vmatprep.subr.mxu0 0.0
        %629 = vmatpush1.msra.mxu0 0.0
        %630 = vmatprep.subr.mxu0 0.0
        %631 = vmatpush1.msra.mxu0 0.0
        %632 = vmatprep.subr.mxu0 0.0
        %633 = vmatpush1.msra.mxu0 0.0
        %634 = vmatprep.subr.mxu0 0.0
        %635 = vmatpush1.msra.mxu0 0.0
        %636 = vmatprep.subr.mxu0 0.0
        %637 = vmatpush1.msra.mxu0 0.0
        %638 = vmatprep.subr.mxu0 0.0
        %639 = vmatpush1.msra.mxu0 0.0
        %640 = vmatprep.subr.mxu0 0.0
        %641 = vmatpush1.msra.mxu0 0.0
        %642 = vmatprep.subr.mxu0 0.0
        %643 = vmatpush1.msra.mxu0 0.0
        %644 = vmatprep.subr.mxu0 0.0
        %645 = vmatpush1.msra.mxu0 0.0
        %646 = vmatprep.subr.mxu0 0.0
        %647 = vmatpush1.msra.mxu0 0.0
        %648 = vmatprep.subr.mxu0 0.0
        %649 = vmatpush1.msra.mxu0 0.0
        %650 = vmatprep.subr.mxu0 0.0
        %651 = vmatpush1.msra.mxu0 0.0
        %652 = vmatprep.subr.mxu0 0.0
        %653 = vmatpush1.msra.mxu0 0.0
        %654 = vmatprep.subr.mxu0 0.0
        %655 = vmatpush1.msra.mxu0 0.0
        %656 = vmatprep.mubr.f32.mxu0 0.0
        %657 = vmatmul.mubr.f32.gmra.mrb[0].mxu0 %v524
        %v658 = vpop.f32.mrb[0].mxu0
        %v659 = vadd.f32 0.0, %v658
        %v660 = vpop.f32.mrb[0].mxu0
        %661 = vmatprep.mubr.f32.mxu0 0.0
        %662 = vmatmul.mubr.f32.gmra.mrb[0].mxu0 %v526
        %v663 = vpop.f32.mrb[0].mxu0
        %v664 = vadd.f32 0.0, %v663
        %v665 = vpop.f32.mrb[0].mxu0
        %666 = vmatprep.mubr.f32.mxu0 0.0
        %667 = vmatmul.mubr.f32.gmra.mrb[0].mxu0 %v528
        %v668 = vpop.f32.mrb[0].mxu0
        %v669 = vadd.f32 0.0, %v668
        %v670 = vpop.f32.mrb[0].mxu0
        %671 = vmatprep.mubr.f32.mxu0 0.0
        %672 = vmatmul.mubr.f32.gmra.mrb[0].mxu0 %v530
        %v673 = vpop.f32.mrb[0].mxu0
        %v674 = vadd.f32 0.0, %v673
        %v675 = vpop.f32.mrb[0].mxu0
        %676 = vmatprep.mubr.f32.mxu0 0.0
        %677 = vmatmul.mubr.f32.gmra.mrb[0].mxu0 %v532
        %v678 = vpop.f32.mrb[0].mxu0
        %v679 = vadd.f32 0.0, %v678
        %v680 = vpop.f32.mrb[0].mxu0
        %681 = vmatprep.mubr.f32.mxu0 0.0
        %682 = vmatmul.mubr.f32.gmra.mrb[0].mxu0 %v534
        %v683 = vpop.f32.mrb[0].mxu0
        %v684 = vadd.f32 0.0, %v683
        %v685 = vpop.f32.mrb[0].mxu0
        %686 = vmatprep.mubr.f32.mxu0 0.0
        %687 = vmatmul.mubr.f32.gmra.mrb[0].mxu0 %v536
        %v688 = vpop.f32.mrb[0].mxu0
        %v689 = vadd.f32 0.0, %v688
        %v690 = vpop.f32.mrb[0].mxu0
        %691 = vmatprep.mubr.f32.mxu0 0.0
        %692 = vmatmul.mubr.f32.gmra.mrb[0].mxu0 %v538
        %v693 = vpop.f32.mrb[0].mxu0
        %v694 = vadd.f32 0.0, %v693
        %v695 = vpop.f32.mrb[0].mxu0
        %696 = vmatprep.mubr.f32.mxu0 0.0
        %697 = vmatmul.mubr.f32.gmra.mrb[0].mxu0 %v540
        %v698 = vpop.f32.mrb[0].mxu0
        %v699 = vadd.f32 0.0, %v698
        %v700 = vpop.f32.mrb[0].mxu0
        %701 = vmatprep.mubr.f32.mxu0 0.0
        %702 = vmatmul.mubr.f32.gmra.mrb[0].mxu0 %v542
        %v703 = vpop.f32.mrb[0].mxu0
        %v704 = vadd.f32 0.0, %v703
        %v705 = vpop.f32.mrb[0].mxu0
        %706 = vmatprep.mubr.f32.mxu0 0.0
        %707 = vmatmul.mubr.f32.gmra.mrb[0].mxu0 %v544
        %v708 = vpop.f32.mrb[0].mxu0
        %v709 = vadd.f32 0.0, %v708
        %v710 = vpop.f32.mrb[0].mxu0
        %711 = vmatprep.mubr.f32.mxu0 0.0
        %712 = vmatmul.mubr.f32.gmra.mrb[0].mxu0 %v546
        %v713 = vpop.f32.mrb[0].mxu0
        %v714 = vadd.f32 0.0, %v713
        %v715 = vpop.f32.mrb[0].mxu0
        %716 = vmatprep.mubr.f32.mxu0 0.0
        %717 = vmatmul.mubr.f32.gmra.mrb[0].mxu0 %v548
        %v718 = vpop.f32.mrb[0].mxu0
        %v719 = vadd.f32 0.0, %v718
        %v720 = vpop.f32.mrb[0].mxu0
        %721 = vmatprep.mubr.f32.mxu0 0.0
        %722 = vmatmul.mubr.f32.gmra.mrb[0].mxu0 %v550
        %v723 = vpop.f32.mrb[0].mxu0
        %v724 = vadd.f32 0.0, %v723
        %v725 = vpop.f32.mrb[0].mxu0
        %726 = vmatprep.mubr.f32.mxu0 0.0
        %727 = vmatmul.mubr.f32.gmra.mrb[0].mxu0 %v552
        %v728 = vpop.f32.mrb[0].mxu0
        %v729 = vadd.f32 0.0, %v728
        %v730 = vpop.f32.mrb[0].mxu0
        %731 = vmatprep.mubr.f32.mxu0 0.0
        %732 = vmatmul.mubr.f32.gmra.mrb[0].mxu0 %v554
        %v733 = vpop.f32.mrb[0].mxu0
        %v734 = vadd.f32 0.0, %v733
        %v735 = vpop.f32.mrb[0].mxu0
        %736 = vmatprep.mubr.f32.mxu0 0.0
        %737 = vmatmul.mubr.f32.gmra.mrb[0].mxu0 %v556
        %v738 = vpop.f32.mrb[0].mxu0
        %v739 = vadd.f32 0.0, %v738
        %v740 = vpop.f32.mrb[0].mxu0
        %741 = vmatprep.mubr.f32.mxu0 0.0
        %742 = vmatmul.mubr.f32.gmra.mrb[0].mxu0 %v558
        %v743 = vpop.f32.mrb[0].mxu0
        %v744 = vadd.f32 0.0, %v743
        %v745 = vpop.f32.mrb[0].mxu0
        %746 = vmatprep.mubr.f32.mxu0 0.0
        %747 = vmatmul.mubr.f32.gmra.mrb[0].mxu0 %v560
        %v748 = vpop.f32.mrb[0].mxu0
        %v749 = vadd.f32 0.0, %v748
        %v750 = vpop.f32.mrb[0].mxu0
        %751 = vmatprep.mubr.f32.mxu0 0.0
        %752 = vmatmul.mubr.f32.gmra.mrb[0].mxu0 %v562
        %v753 = vpop.f32.mrb[0].mxu0
        %v754 = vadd.f32 0.0, %v753
        %v755 = vpop.f32.mrb[0].mxu0
        %756 = vmatprep.mubr.f32.mxu0 0.0
        %757 = vmatmul.mubr.f32.gmra.mrb[0].mxu0 %v564
        %v758 = vpop.f32.mrb[0].mxu0
        %v759 = vadd.f32 0.0, %v758
        %v760 = vpop.f32.mrb[0].mxu0
        %761 = vmatprep.mubr.f32.mxu0 0.0
        %762 = vmatmul.mubr.f32.gmra.mrb[0].mxu0 %v566
        %v763 = vpop.f32.mrb[0].mxu0
        %v764 = vadd.f32 0.0, %v763
        %v765 = vpop.f32.mrb[0].mxu0
        %766 = vmatprep.mubr.f32.mxu0 0.0
        %767 = vmatmul.mubr.f32.gmra.mrb[0].mxu0 %v568
        %v768 = vpop.f32.mrb[0].mxu0
        %v769 = vadd.f32 0.0, %v768
        %v770 = vpop.f32.mrb[0].mxu0
        %771 = vmatprep.mubr.f32.mxu0 0.0
        %772 = vmatmul.mubr.f32.gmra.mrb[0].mxu0 %v570
        %v773 = vpop.f32.mrb[0].mxu0
        %v774 = vadd.f32 0.0, %v773
        %v775 = vpop.f32.mrb[0].mxu0
        %776 = vmatprep.mubr.f32.mxu0 0.0
        %777 = vmatmul.mubr.f32.gmra.mrb[0].mxu0 %v572
        %v778 = vpop.f32.mrb[0].mxu0
        %v779 = vadd.f32 0.0, %v778
        %v780 = vpop.f32.mrb[0].mxu0
        %781 = vmatprep.mubr.f32.mxu0 0.0
        %782 = vmatmul.mubr.f32.gmra.mrb[0].mxu0 %v574
        %v783 = vpop.f32.mrb[0].mxu0
        %v784 = vadd.f32 0.0, %v783
        %v785 = vpop.f32.mrb[0].mxu0
        %786 = vmatprep.mubr.f32.mxu0 0.0
        %787 = vmatmul.mubr.f32.gmra.mrb[0].mxu0 %v576
        %v788 = vpop.f32.mrb[0].mxu0
        %v789 = vadd.f32 0.0, %v788
        %v790 = vpop.f32.mrb[0].mxu0
        %791 = vmatprep.mubr.f32.mxu0 0.0
        %792 = vmatmul.mubr.f32.gmra.mrb[0].mxu0 %v578
        %v793 = vpop.f32.mrb[0].mxu0
        %v794 = vadd.f32 0.0, %v793
        %v795 = vpop.f32.mrb[0].mxu0
        %796 = vmatprep.mubr.f32.mxu0 0.0
        %797 = vmatmul.mubr.f32.gmra.mrb[0].mxu0 %v580
        %v798 = vpop.f32.mrb[0].mxu0
        %v799 = vadd.f32 0.0, %v798
        %v800 = vpop.f32.mrb[0].mxu0
        %801 = vmatprep.mubr.f32.mxu0 0.0
        %802 = vmatmul.mubr.f32.gmra.mrb[0].mxu0 %v582
        %v803 = vpop.f32.mrb[0].mxu0
        %v804 = vadd.f32 0.0, %v803
        %v805 = vpop.f32.mrb[0].mxu0
        %806 = vmatprep.mubr.f32.mxu0 0.0
        %807 = vmatmul.mubr.f32.gmra.mrb[0].mxu0 %v584
        %v808 = vpop.f32.mrb[0].mxu0
        %v809 = vadd.f32 0.0, %v808
        %v810 = vpop.f32.mrb[0].mxu0
        %811 = vmatprep.mubr.f32.mxu0 0.0
        %812 = vmatmul.mubr.f32.gmra.mrb[0].mxu0 %v586
        %v813 = vpop.f32.mrb[0].mxu0
        %v814 = vadd.f32 0.0, %v813
        %v815 = vpop.f32.mrb[0].mxu0
        %816 = vdwg.mxu0
        %v817 = vsel %vm249, %v338, 0
        %v819 = vsel %vm249, %v339, 0
        %v821 = vsel %vm249, %v341, 0
        %v823 = vsel %vm249, %v342, 0
        %v825 = vsel %vm249, %v344, 0
        %v827 = vsel %vm249, %v345, 0
        %v829 = vsel %vm249, %v347, 0
        %v831 = vsel %vm249, %v348, 0
        %v833 = vsel %vm249, %v350, 0
        %v835 = vsel %vm249, %v351, 0
        %v837 = vsel %vm249, %v353, 0
        %v839 = vsel %vm249, %v354, 0
        %v841 = vsel %vm249, %v356, 0
        %v843 = vsel %vm249, %v357, 0
        %v845 = vsel %vm249, %v359, 0
        %v847 = vsel %vm249, %v360, 0
        %v849 = vsel %vm249, %v362, 0
        %v851 = vsel %vm249, %v363, 0
        %v853 = vsel %vm249, %v365, 0
        %v855 = vsel %vm249, %v366, 0
        %v857 = vsel %vm249, %v368, 0
        %v859 = vsel %vm249, %v369, 0
        %v861 = vsel %vm249, %v371, 0
        %v863 = vsel %vm249, %v372, 0
        %v865 = vsel %vm249, %v374, 0
        %v867 = vsel %vm249, %v375, 0
        %v869 = vsel %vm249, %v377, 0
        %v871 = vsel %vm249, %v378, 0
        %v873 = vsel %vm249, %v380, 0
        %v875 = vsel %vm249, %v381, 0
        %v877 = vsel %vm249, %v383, 0
        %v879 = vsel %vm249, %v384, 0
        %v882 = vsel %vm588, %v392, 0
        %884 = vmatprep.subr.mxu0 0.0
        %885 = vmatpush1.msra.mxu0 %v882
        %886 = vmatprep.subr.mxu0 0.0
        %887 = vmatpush1.msra.mxu0 0.0
        %888 = vmatprep.subr.mxu0 0.0
        %889 = vmatpush1.msra.mxu0 0.0
        %890 = vmatprep.subr.mxu0 0.0
        %891 = vmatpush1.msra.mxu0 0.0
        %892 = vmatprep.subr.mxu0 0.0
        %893 = vmatpush1.msra.mxu0 0.0
        %894 = vmatprep.subr.mxu0 0.0
        %895 = vmatpush1.msra.mxu0 0.0
        %896 = vmatprep.subr.mxu0 0.0
        %897 = vmatpush1.msra.mxu0 0.0
        %898 = vmatprep.subr.mxu0 0.0
        %899 = vmatpush1.msra.mxu0 0.0
        %900 = vmatprep.subr.mxu0 0.0
        %901 = vmatpush1.msra.mxu0 0.0
        %902 = vmatprep.subr.mxu0 0.0
        %903 = vmatpush1.msra.mxu0 0.0
        %904 = vmatprep.subr.mxu0 0.0
        %905 = vmatpush1.msra.mxu0 0.0
        %906 = vmatprep.subr.mxu0 0.0
        %907 = vmatpush1.msra.mxu0 0.0
        %908 = vmatprep.subr.mxu0 0.0
        %909 = vmatpush1.msra.mxu0 0.0
        %910 = vmatprep.subr.mxu0 0.0
        %911 = vmatpush1.msra.mxu0 0.0
        %912 = vmatprep.subr.mxu0 0.0
        %913 = vmatpush1.msra.mxu0 0.0
        %914 = vmatprep.subr.mxu0 0.0
        %915 = vmatpush1.msra.mxu0 0.0
        %916 = vmatprep.subr.mxu0 0.0
        %917 = vmatpush1.msra.mxu0 0.0
        %918 = vmatprep.subr.mxu0 0.0
        %919 = vmatpush1.msra.mxu0 0.0
        %920 = vmatprep.subr.mxu0 0.0
        %921 = vmatpush1.msra.mxu0 0.0
        %922 = vmatprep.subr.mxu0 0.0
        %923 = vmatpush1.msra.mxu0 0.0
        %924 = vmatprep.subr.mxu0 0.0
        %925 = vmatpush1.msra.mxu0 0.0
        %926 = vmatprep.subr.mxu0 0.0
        %927 = vmatpush1.msra.mxu0 0.0
        %928 = vmatprep.subr.mxu0 0.0
        %929 = vmatpush1.msra.mxu0 0.0
        %930 = vmatprep.subr.mxu0 0.0
        %931 = vmatpush1.msra.mxu0 0.0
        %932 = vmatprep.subr.mxu0 0.0
        %933 = vmatpush1.msra.mxu0 0.0
        %934 = vmatprep.subr.mxu0 0.0
        %935 = vmatpush1.msra.mxu0 0.0
        %936 = vmatprep.subr.mxu0 0.0
        %937 = vmatpush1.msra.mxu0 0.0
        %938 = vmatprep.subr.mxu0 0.0
        %939 = vmatpush1.msra.mxu0 0.0
        %940 = vmatprep.subr.mxu0 0.0
        %941 = vmatpush1.msra.mxu0 0.0
        %942 = vmatprep.subr.mxu0 0.0
        %943 = vmatpush1.msra.mxu0 0.0
        %944 = vmatprep.subr.mxu0 0.0
        %945 = vmatpush1.msra.mxu0 0.0
        %946 = vmatprep.subr.mxu0 0.0
        %947 = vmatpush1.msra.mxu0 0.0
        %948 = vmatprep.mubr.f32.mxu0 0.0
        %949 = vmatmul.mubr.f32.gmra.mrb[0].mxu0 %v817
        %v950 = vpop.f32.mrb[0].mxu0
        %v951 = vadd.f32 %v659, %v950
        %v952 = vpop.f32.mrb[0].mxu0
        %953 = vmatprep.mubr.f32.mxu0 0.0
        %954 = vmatmul.mubr.f32.gmra.mrb[0].mxu0 %v819
        %v955 = vpop.f32.mrb[0].mxu0
        %v956 = vadd.f32 %v664, %v955
        %v957 = vpop.f32.mrb[0].mxu0
        %958 = vmatprep.mubr.f32.mxu0 0.0
        %959 = vmatmul.mubr.f32.gmra.mrb[0].mxu0 %v821
        %v960 = vpop.f32.mrb[0].mxu0
        %v961 = vadd.f32 %v669, %v960
        %v962 = vpop.f32.mrb[0].mxu0
        %963 = vmatprep.mubr.f32.mxu0 0.0
        %964 = vmatmul.mubr.f32.gmra.mrb[0].mxu0 %v823
        %v965 = vpop.f32.mrb[0].mxu0
        %v966 = vadd.f32 %v674, %v965
        %v967 = vpop.f32.mrb[0].mxu0
        %968 = vmatprep.mubr.f32.mxu0 0.0
        %969 = vmatmul.mubr.f32.gmra.mrb[0].mxu0 %v825
        %v970 = vpop.f32.mrb[0].mxu0
        %v971 = vadd.f32 %v679, %v970
        %v972 = vpop.f32.mrb[0].mxu0
        %973 = vmatprep.mubr.f32.mxu0 0.0
        %974 = vmatmul.mubr.f32.gmra.mrb[0].mxu0 %v827
        %v975 = vpop.f32.mrb[0].mxu0
        %v976 = vadd.f32 %v684, %v975
        %v977 = vpop.f32.mrb[0].mxu0
        %978 = vmatprep.mubr.f32.mxu0 0.0
        %979 = vmatmul.mubr.f32.gmra.mrb[0].mxu0 %v829
        %v980 = vpop.f32.mrb[0].mxu0
        %v981 = vadd.f32 %v689, %v980
        %v982 = vpop.f32.mrb[0].mxu0
        %983 = vmatprep.mubr.f32.mxu0 0.0
        %984 = vmatmul.mubr.f32.gmra.mrb[0].mxu0 %v831
        %v985 = vpop.f32.mrb[0].mxu0
        %v986 = vadd.f32 %v694, %v985
        %v987 = vpop.f32.mrb[0].mxu0
        %988 = vmatprep.mubr.f32.mxu0 0.0
        %989 = vmatmul.mubr.f32.gmra.mrb[0].mxu0 %v833
        %v990 = vpop.f32.mrb[0].mxu0
        %v991 = vadd.f32 %v699, %v990
        %v992 = vpop.f32.mrb[0].mxu0
        %993 = vmatprep.mubr.f32.mxu0 0.0
        %994 = vmatmul.mubr.f32.gmra.mrb[0].mxu0 %v835
        %v995 = vpop.f32.mrb[0].mxu0
        %v996 = vadd.f32 %v704, %v995
        %v997 = vpop.f32.mrb[0].mxu0
        %998 = vmatprep.mubr.f32.mxu0 0.0
        %999 = vmatmul.mubr.f32.gmra.mrb[0].mxu0 %v837
        %v1000 = vpop.f32.mrb[0].mxu0
        %v1001 = vadd.f32 %v709, %v1000
        %v1002 = vpop.f32.mrb[0].mxu0
        %1003 = vmatprep.mubr.f32.mxu0 0.0
        %1004 = vmatmul.mubr.f32.gmra.mrb[0].mxu0 %v839
        %v1005 = vpop.f32.mrb[0].mxu0
        %v1006 = vadd.f32 %v714, %v1005
        %v1007 = vpop.f32.mrb[0].mxu0
        %1008 = vmatprep.mubr.f32.mxu0 0.0
        %1009 = vmatmul.mubr.f32.gmra.mrb[0].mxu0 %v841
        %v1010 = vpop.f32.mrb[0].mxu0
        %v1011 = vadd.f32 %v719, %v1010
        %v1012 = vpop.f32.mrb[0].mxu0
        %1013 = vmatprep.mubr.f32.mxu0 0.0
        %1014 = vmatmul.mubr.f32.gmra.mrb[0].mxu0 %v843
        %v1015 = vpop.f32.mrb[0].mxu0
        %v1016 = vadd.f32 %v724, %v1015
        %v1017 = vpop.f32.mrb[0].mxu0
        %1018 = vmatprep.mubr.f32.mxu0 0.0
        %1019 = vmatmul.mubr.f32.gmra.mrb[0].mxu0 %v845
        %v1020 = vpop.f32.mrb[0].mxu0
        %v1021 = vadd.f32 %v729, %v1020
        %v1022 = vpop.f32.mrb[0].mxu0
        %1023 = vmatprep.mubr.f32.mxu0 0.0
        %1024 = vmatmul.mubr.f32.gmra.mrb[0].mxu0 %v847
        %v1025 = vpop.f32.mrb[0].mxu0
        %v1026 = vadd.f32 %v734, %v1025
        %v1027 = vpop.f32.mrb[0].mxu0
        %1028 = vmatprep.mubr.f32.mxu0 0.0
        %1029 = vmatmul.mubr.f32.gmra.mrb[0].mxu0 %v849
        %v1030 = vpop.f32.mrb[0].mxu0
        %v1031 = vadd.f32 %v739, %v1030
        %v1032 = vpop.f32.mrb[0].mxu0
        %1033 = vmatprep.mubr.f32.mxu0 0.0
        %1034 = vmatmul.mubr.f32.gmra.mrb[0].mxu0 %v851
        %v1035 = vpop.f32.mrb[0].mxu0
        %v1036 = vadd.f32 %v744, %v1035
        %v1037 = vpop.f32.mrb[0].mxu0
        %1038 = vmatprep.mubr.f32.mxu0 0.0
        %1039 = vmatmul.mubr.f32.gmra.mrb[0].mxu0 %v853
        %v1040 = vpop.f32.mrb[0].mxu0
        %v1041 = vadd.f32 %v749, %v1040
        %v1042 = vpop.f32.mrb[0].mxu0
        %1043 = vmatprep.mubr.f32.mxu0 0.0
        %1044 = vmatmul.mubr.f32.gmra.mrb[0].mxu0 %v855
        %v1045 = vpop.f32.mrb[0].mxu0
        %v1046 = vadd.f32 %v754, %v1045
        %v1047 = vpop.f32.mrb[0].mxu0
        %1048 = vmatprep.mubr.f32.mxu0 0.0
        %1049 = vmatmul.mubr.f32.gmra.mrb[0].mxu0 %v857
        %v1050 = vpop.f32.mrb[0].mxu0
        %v1051 = vadd.f32 %v759, %v1050
        %v1052 = vpop.f32.mrb[0].mxu0
        %1053 = vmatprep.mubr.f32.mxu0 0.0
        %1054 = vmatmul.mubr.f32.gmra.mrb[0].mxu0 %v859
        %v1055 = vpop.f32.mrb[0].mxu0
        %v1056 = vadd.f32 %v764, %v1055
        %v1057 = vpop.f32.mrb[0].mxu0
        %1058 = vmatprep.mubr.f32.mxu0 0.0
        %1059 = vmatmul.mubr.f32.gmra.mrb[0].mxu0 %v861
        %v1060 = vpop.f32.mrb[0].mxu0
        %v1061 = vadd.f32 %v769, %v1060
        %v1062 = vpop.f32.mrb[0].mxu0
        %1063 = vmatprep.mubr.f32.mxu0 0.0
        %1064 = vmatmul.mubr.f32.gmra.mrb[0].mxu0 %v863
        %v1065 = vpop.f32.mrb[0].mxu0
        %v1066 = vadd.f32 %v774, %v1065
        %v1067 = vpop.f32.mrb[0].mxu0
        %1068 = vmatprep.mubr.f32.mxu0 0.0
        %1069 = vmatmul.mubr.f32.gmra.mrb[0].mxu0 %v865
        %v1070 = vpop.f32.mrb[0].mxu0
        %v1071 = vadd.f32 %v779, %v1070
        %v1072 = vpop.f32.mrb[0].mxu0
        %1073 = vmatprep.mubr.f32.mxu0 0.0
        %1074 = vmatmul.mubr.f32.gmra.mrb[0].mxu0 %v867
        %v1075 = vpop.f32.mrb[0].mxu0
        %v1076 = vadd.f32 %v784, %v1075
        %v1077 = vpop.f32.mrb[0].mxu0
        %1078 = vmatprep.mubr.f32.mxu0 0.0
        %1079 = vmatmul.mubr.f32.gmra.mrb[0].mxu0 %v869
        %v1080 = vpop.f32.mrb[0].mxu0
        %v1081 = vadd.f32 %v789, %v1080
        %v1082 = vpop.f32.mrb[0].mxu0
        %1083 = vmatprep.mubr.f32.mxu0 0.0
        %1084 = vmatmul.mubr.f32.gmra.mrb[0].mxu0 %v871
        %v1085 = vpop.f32.mrb[0].mxu0
        %v1086 = vadd.f32 %v794, %v1085
        %v1087 = vpop.f32.mrb[0].mxu0
        %1088 = vmatprep.mubr.f32.mxu0 0.0
        %1089 = vmatmul.mubr.f32.gmra.mrb[0].mxu0 %v873
        %v1090 = vpop.f32.mrb[0].mxu0
        %v1091 = vadd.f32 %v799, %v1090
        %v1092 = vpop.f32.mrb[0].mxu0
        %1093 = vmatprep.mubr.f32.mxu0 0.0
        %1094 = vmatmul.mubr.f32.gmra.mrb[0].mxu0 %v875
        %v1095 = vpop.f32.mrb[0].mxu0
        %v1096 = vadd.f32 %v804, %v1095
        %v1097 = vpop.f32.mrb[0].mxu0
        %1098 = vmatprep.mubr.f32.mxu0 0.0
        %1099 = vmatmul.mubr.f32.gmra.mrb[0].mxu0 %v877
        %v1100 = vpop.f32.mrb[0].mxu0
        %v1101 = vadd.f32 %v809, %v1100
        %v1102 = vpop.f32.mrb[0].mxu0
        %1103 = vmatprep.mubr.f32.mxu0 0.0
        %1104 = vmatmul.mubr.f32.gmra.mrb[0].mxu0 %v879
        %v1105 = vpop.f32.mrb[0].mxu0
        %v1106 = vadd.f32 %v814, %v1105
        %v1107 = vpop.f32.mrb[0].mxu0
        %1108 = vdwg.mxu0
        %vm1109 = vcmask 1045504
        %v1110 = vrot.slane %v338, 2
        %v1111 = vrot.slane %v339, 2
        %v1112 = vsel %vm1109, %v1110, %v1111
        %v1113 = vrot.slane %v340, 2
        %v1114 = vsel %vm1109, %v1111, %v1113
        %v1115 = vrot.slane %v341, 2
        %v1116 = vrot.slane %v342, 2
        %v1117 = vsel %vm1109, %v1115, %v1116
        %v1118 = vrot.slane %v343, 2
        %v1119 = vsel %vm1109, %v1116, %v1118
        %v1120 = vrot.slane %v344, 2
        %v1121 = vrot.slane %v345, 2
        %v1122 = vsel %vm1109, %v1120, %v1121
        %v1123 = vrot.slane %v346, 2
        %v1124 = vsel %vm1109, %v1121, %v1123
        %v1125 = vrot.slane %v347, 2
        %v1126 = vrot.slane %v348, 2
        %v1127 = vsel %vm1109, %v1125, %v1126
        %v1128 = vrot.slane %v349, 2
        %v1129 = vsel %vm1109, %v1126, %v1128
        %v1130 = vrot.slane %v350, 2
        %v1131 = vrot.slane %v351, 2
        %v1132 = vsel %vm1109, %v1130, %v1131
        %v1133 = vrot.slane %v352, 2
        %v1134 = vsel %vm1109, %v1131, %v1133
        %v1135 = vrot.slane %v353, 2
        %v1136 = vrot.slane %v354, 2
        %v1137 = vsel %vm1109, %v1135, %v1136
        %v1138 = vrot.slane %v355, 2
        %v1139 = vsel %vm1109, %v1136, %v1138
        %v1140 = vrot.slane %v356, 2
        %v1141 = vrot.slane %v357, 2
        %v1142 = vsel %vm1109, %v1140, %v1141
        %v1143 = vrot.slane %v358, 2
        %v1144 = vsel %vm1109, %v1141, %v1143
        %v1145 = vrot.slane %v359, 2
        %v1146 = vrot.slane %v360, 2
        %v1147 = vsel %vm1109, %v1145, %v1146
        %v1148 = vrot.slane %v361, 2
        %v1149 = vsel %vm1109, %v1146, %v1148
        %v1150 = vrot.slane %v362, 2
        %v1151 = vrot.slane %v363, 2
        %v1152 = vsel %vm1109, %v1150, %v1151
        %v1153 = vrot.slane %v364, 2
        %v1154 = vsel %vm1109, %v1151, %v1153
        %v1155 = vrot.slane %v365, 2
        %v1156 = vrot.slane %v366, 2
        %v1157 = vsel %vm1109, %v1155, %v1156
        %v1158 = vrot.slane %v367, 2
        %v1159 = vsel %vm1109, %v1156, %v1158
        %v1160 = vrot.slane %v368, 2
        %v1161 = vrot.slane %v369, 2
        %v1162 = vsel %vm1109, %v1160, %v1161
        %v1163 = vrot.slane %v370, 2
        %v1164 = vsel %vm1109, %v1161, %v1163
        %v1165 = vrot.slane %v371, 2
        %v1166 = vrot.slane %v372, 2
        %v1167 = vsel %vm1109, %v1165, %v1166
        %v1168 = vrot.slane %v373, 2
        %v1169 = vsel %vm1109, %v1166, %v1168
        %v1170 = vrot.slane %v374, 2
        %v1171 = vrot.slane %v375, 2
        %v1172 = vsel %vm1109, %v1170, %v1171
        %v1173 = vrot.slane %v376, 2
        %v1174 = vsel %vm1109, %v1171, %v1173
        %v1175 = vrot.slane %v377, 2
        %v1176 = vrot.slane %v378, 2
        %v1177 = vsel %vm1109, %v1175, %v1176
        %v1178 = vrot.slane %v379, 2
        %v1179 = vsel %vm1109, %v1176, %v1178
        %v1180 = vrot.slane %v380, 2
        %v1181 = vrot.slane %v381, 2
        %v1182 = vsel %vm1109, %v1180, %v1181
        %v1183 = vrot.slane %v382, 2
        %v1184 = vsel %vm1109, %v1181, %v1183
        %v1185 = vrot.slane %v383, 2
        %v1186 = vrot.slane %v384, 2
        %v1187 = vsel %vm1109, %v1185, %v1186
        %v1188 = vrot.slane %v385, 2
        %v1189 = vsel %vm1109, %v1186, %v1188
        %s1190 = scalar_lea.vmem %s1, 8
        %v1191 = vld [vmem:[%s1190] sm:$0xf]
        %v1192 = vsel %vm249, %v1112, 0
        %v1194 = vsel %vm249, %v1114, 0
        %v1196 = vsel %vm249, %v1117, 0
        %v1198 = vsel %vm249, %v1119, 0
        %v1200 = vsel %vm249, %v1122, 0
        %v1202 = vsel %vm249, %v1124, 0
        %v1204 = vsel %vm249, %v1127, 0
        %v1206 = vsel %vm249, %v1129, 0
        %v1208 = vsel %vm249, %v1132, 0
        %v1210 = vsel %vm249, %v1134, 0
        %v1212 = vsel %vm249, %v1137, 0
        %v1214 = vsel %vm249, %v1139, 0
        %v1216 = vsel %vm249, %v1142, 0
        %v1218 = vsel %vm249, %v1144, 0
        %v1220 = vsel %vm249, %v1147, 0
        %v1222 = vsel %vm249, %v1149, 0
        %v1224 = vsel %vm249, %v1152, 0
        %v1226 = vsel %vm249, %v1154, 0
        %v1228 = vsel %vm249, %v1157, 0
        %v1230 = vsel %vm249, %v1159, 0
        %v1232 = vsel %vm249, %v1162, 0
        %v1234 = vsel %vm249, %v1164, 0
        %v1236 = vsel %vm249, %v1167, 0
        %v1238 = vsel %vm249, %v1169, 0
        %v1240 = vsel %vm249, %v1172, 0
        %v1242 = vsel %vm249, %v1174, 0
        %v1244 = vsel %vm249, %v1177, 0
        %v1246 = vsel %vm249, %v1179, 0
        %v1248 = vsel %vm249, %v1182, 0
        %v1250 = vsel %vm249, %v1184, 0
        %v1252 = vsel %vm249, %v1187, 0
        %v1254 = vsel %vm249, %v1189, 0
        %v1257 = vsel %vm588, %v1191, 0
        %1259 = vmatprep.subr.mxu0 0.0
        %1260 = vmatpush1.msra.mxu0 %v1257
        %1261 = vmatprep.subr.mxu0 0.0
        %1262 = vmatpush1.msra.mxu0 0.0
        %1263 = vmatprep.subr.mxu0 0.0
        %1264 = vmatpush1.msra.mxu0 0.0
        %1265 = vmatprep.subr.mxu0 0.0
        %1266 = vmatpush1.msra.mxu0 0.0
        %1267 = vmatprep.subr.mxu0 0.0
        %1268 = vmatpush1.msra.mxu0 0.0
        %1269 = vmatprep.subr.mxu0 0.0
        %1270 = vmatpush1.msra.mxu0 0.0
        %1271 = vmatprep.subr.mxu0 0.0
        %1272 = vmatpush1.msra.mxu0 0.0
        %1273 = vmatprep.subr.mxu0 0.0
        %1274 = vmatpush1.msra.mxu0 0.0
        %1275 = vmatprep.subr.mxu0 0.0
        %1276 = vmatpush1.msra.mxu0 0.0
        %1277 = vmatprep.subr.mxu0 0.0
        %1278 = vmatpush1.msra.mxu0 0.0
        %1279 = vmatprep.subr.mxu0 0.0
        %1280 = vmatpush1.msra.mxu0 0.0
        %1281 = vmatprep.subr.mxu0 0.0
        %1282 = vmatpush1.msra.mxu0 0.0
        %1283 = vmatprep.subr.mxu0 0.0
        %1284 = vmatpush1.msra.mxu0 0.0
        %1285 = vmatprep.subr.mxu0 0.0
        %1286 = vmatpush1.msra.mxu0 0.0
        %1287 = vmatprep.subr.mxu0 0.0
        %1288 = vmatpush1.msra.mxu0 0.0
        %1289 = vmatprep.subr.mxu0 0.0
        %1290 = vmatpush1.msra.mxu0 0.0
        %1291 = vmatprep.subr.mxu0 0.0
        %1292 = vmatpush1.msra.mxu0 0.0
        %1293 = vmatprep.subr.mxu0 0.0
        %1294 = vmatpush1.msra.mxu0 0.0
        %1295 = vmatprep.subr.mxu0 0.0
        %1296 = vmatpush1.msra.mxu0 0.0
        %1297 = vmatprep.subr.mxu0 0.0
        %1298 = vmatpush1.msra.mxu0 0.0
        %1299 = vmatprep.subr.mxu0 0.0
        %1300 = vmatpush1.msra.mxu0 0.0
        %1301 = vmatprep.subr.mxu0 0.0
        %1302 = vmatpush1.msra.mxu0 0.0
        %1303 = vmatprep.subr.mxu0 0.0
        %1304 = vmatpush1.msra.mxu0 0.0
        %1305 = vmatprep.subr.mxu0 0.0
        %1306 = vmatpush1.msra.mxu0 0.0
        %1307 = vmatprep.subr.mxu0 0.0
        %1308 = vmatpush1.msra.mxu0 0.0
        %1309 = vmatprep.subr.mxu0 0.0
        %1310 = vmatpush1.msra.mxu0 0.0
        %1311 = vmatprep.subr.mxu0 0.0
        %1312 = vmatpush1.msra.mxu0 0.0
        %1313 = vmatprep.subr.mxu0 0.0
        %1314 = vmatpush1.msra.mxu0 0.0
        %1315 = vmatprep.subr.mxu0 0.0
        %1316 = vmatpush1.msra.mxu0 0.0
        %1317 = vmatprep.subr.mxu0 0.0
        %1318 = vmatpush1.msra.mxu0 0.0
        %1319 = vmatprep.subr.mxu0 0.0
        %1320 = vmatpush1.msra.mxu0 0.0
        %1321 = vmatprep.subr.mxu0 0.0
        %1322 = vmatpush1.msra.mxu0 0.0
        %1323 = vmatprep.mubr.f32.mxu0 0.0
        %1324 = vmatmul.mubr.f32.gmra.mrb[0].mxu0 %v1192
        %v1325 = vpop.f32.mrb[0].mxu0
        %v1326 = vadd.f32 0.0, %v1325
        %v1327 = vpop.f32.mrb[0].mxu0
        %1328 = vmatprep.mubr.f32.mxu0 0.0
        %1329 = vmatmul.mubr.f32.gmra.mrb[0].mxu0 %v1194
        %v1330 = vpop.f32.mrb[0].mxu0
        %v1331 = vadd.f32 0.0, %v1330
        %v1332 = vpop.f32.mrb[0].mxu0
        %1333 = vmatprep.mubr.f32.mxu0 0.0
        %1334 = vmatmul.mubr.f32.gmra.mrb[0].mxu0 %v1196
        %v1335 = vpop.f32.mrb[0].mxu0
        %v1336 = vadd.f32 0.0, %v1335
        %v1337 = vpop.f32.mrb[0].mxu0
        %1338 = vmatprep.mubr.f32.mxu0 0.0
        %1339 = vmatmul.mubr.f32.gmra.mrb[0].mxu0 %v1198
        %v1340 = vpop.f32.mrb[0].mxu0
        %v1341 = vadd.f32 0.0, %v1340
        %v1342 = vpop.f32.mrb[0].mxu0
        %1343 = vmatprep.mubr.f32.mxu0 0.0
        %1344 = vmatmul.mubr.f32.gmra.mrb[0].mxu0 %v1200
        %v1345 = vpop.f32.mrb[0].mxu0
        %v1346 = vadd.f32 0.0, %v1345
        %v1347 = vpop.f32.mrb[0].mxu0
        %1348 = vmatprep.mubr.f32.mxu0 0.0
        %1349 = vmatmul.mubr.f32.gmra.mrb[0].mxu0 %v1202
        %v1350 = vpop.f32.mrb[0].mxu0
        %v1351 = vadd.f32 0.0, %v1350
        %v1352 = vpop.f32.mrb[0].mxu0
        %1353 = vmatprep.mubr.f32.mxu0 0.0
        %1354 = vmatmul.mubr.f32.gmra.mrb[0].mxu0 %v1204
        %v1355 = vpop.f32.mrb[0].mxu0
        %v1356 = vadd.f32 0.0, %v1355
        %v1357 = vpop.f32.mrb[0].mxu0
        %1358 = vmatprep.mubr.f32.mxu0 0.0
        %1359 = vmatmul.mubr.f32.gmra.mrb[0].mxu0 %v1206
        %v1360 = vpop.f32.mrb[0].mxu0
        %v1361 = vadd.f32 0.0, %v1360
        %v1362 = vpop.f32.mrb[0].mxu0
        %1363 = vmatprep.mubr.f32.mxu0 0.0
        %1364 = vmatmul.mubr.f32.gmra.mrb[0].mxu0 %v1208
        %v1365 = vpop.f32.mrb[0].mxu0
        %v1366 = vadd.f32 0.0, %v1365
        %v1367 = vpop.f32.mrb[0].mxu0
        %1368 = vmatprep.mubr.f32.mxu0 0.0
        %1369 = vmatmul.mubr.f32.gmra.mrb[0].mxu0 %v1210
        %v1370 = vpop.f32.mrb[0].mxu0
        %v1371 = vadd.f32 0.0, %v1370
        %v1372 = vpop.f32.mrb[0].mxu0
        %1373 = vmatprep.mubr.f32.mxu0 0.0
        %1374 = vmatmul.mubr.f32.gmra.mrb[0].mxu0 %v1212
        %v1375 = vpop.f32.mrb[0].mxu0
        %v1376 = vadd.f32 0.0, %v1375
        %v1377 = vpop.f32.mrb[0].mxu0
        %1378 = vmatprep.mubr.f32.mxu0 0.0
        %1379 = vmatmul.mubr.f32.gmra.mrb[0].mxu0 %v1214
        %v1380 = vpop.f32.mrb[0].mxu0
        %v1381 = vadd.f32 0.0, %v1380
        %v1382 = vpop.f32.mrb[0].mxu0
        %1383 = vmatprep.mubr.f32.mxu0 0.0
        %1384 = vmatmul.mubr.f32.gmra.mrb[0].mxu0 %v1216
        %v1385 = vpop.f32.mrb[0].mxu0
        %v1386 = vadd.f32 0.0, %v1385
        %v1387 = vpop.f32.mrb[0].mxu0
        %1388 = vmatprep.mubr.f32.mxu0 0.0
        %1389 = vmatmul.mubr.f32.gmra.mrb[0].mxu0 %v1218
        %v1390 = vpop.f32.mrb[0].mxu0
        %v1391 = vadd.f32 0.0, %v1390
        %v1392 = vpop.f32.mrb[0].mxu0
        %1393 = vmatprep.mubr.f32.mxu0 0.0
        %1394 = vmatmul.mubr.f32.gmra.mrb[0].mxu0 %v1220
        %v1395 = vpop.f32.mrb[0].mxu0
        %v1396 = vadd.f32 0.0, %v1395
        %v1397 = vpop.f32.mrb[0].mxu0
        %1398 = vmatprep.mubr.f32.mxu0 0.0
        %1399 = vmatmul.mubr.f32.gmra.mrb[0].mxu0 %v1222
        %v1400 = vpop.f32.mrb[0].mxu0
        %v1401 = vadd.f32 0.0, %v1400
        %v1402 = vpop.f32.mrb[0].mxu0
        %1403 = vmatprep.mubr.f32.mxu0 0.0
        %1404 = vmatmul.mubr.f32.gmra.mrb[0].mxu0 %v1224
        %v1405 = vpop.f32.mrb[0].mxu0
        %v1406 = vadd.f32 0.0, %v1405
        %v1407 = vpop.f32.mrb[0].mxu0
        %1408 = vmatprep.mubr.f32.mxu0 0.0
        %1409 = vmatmul.mubr.f32.gmra.mrb[0].mxu0 %v1226
        %v1410 = vpop.f32.mrb[0].mxu0
        %v1411 = vadd.f32 0.0, %v1410
        %v1412 = vpop.f32.mrb[0].mxu0
        %1413 = vmatprep.mubr.f32.mxu0 0.0
        %1414 = vmatmul.mubr.f32.gmra.mrb[0].mxu0 %v1228
        %v1415 = vpop.f32.mrb[0].mxu0
        %v1416 = vadd.f32 0.0, %v1415
        %v1417 = vpop.f32.mrb[0].mxu0
        %1418 = vmatprep.mubr.f32.mxu0 0.0
        %1419 = vmatmul.mubr.f32.gmra.mrb[0].mxu0 %v1230
        %v1420 = vpop.f32.mrb[0].mxu0
        %v1421 = vadd.f32 0.0, %v1420
        %v1422 = vpop.f32.mrb[0].mxu0
        %1423 = vmatprep.mubr.f32.mxu0 0.0
        %1424 = vmatmul.mubr.f32.gmra.mrb[0].mxu0 %v1232
        %v1425 = vpop.f32.mrb[0].mxu0
        %v1426 = vadd.f32 0.0, %v1425
        %v1427 = vpop.f32.mrb[0].mxu0
        %1428 = vmatprep.mubr.f32.mxu0 0.0
        %1429 = vmatmul.mubr.f32.gmra.mrb[0].mxu0 %v1234
        %v1430 = vpop.f32.mrb[0].mxu0
        %v1431 = vadd.f32 0.0, %v1430
        %v1432 = vpop.f32.mrb[0].mxu0
        %1433 = vmatprep.mubr.f32.mxu0 0.0
        %1434 = vmatmul.mubr.f32.gmra.mrb[0].mxu0 %v1236
        %v1435 = vpop.f32.mrb[0].mxu0
        %v1436 = vadd.f32 0.0, %v1435
        %v1437 = vpop.f32.mrb[0].mxu0
        %1438 = vmatprep.mubr.f32.mxu0 0.0
        %1439 = vmatmul.mubr.f32.gmra.mrb[0].mxu0 %v1238
        %v1440 = vpop.f32.mrb[0].mxu0
        %v1441 = vadd.f32 0.0, %v1440
        %v1442 = vpop.f32.mrb[0].mxu0
        %1443 = vmatprep.mubr.f32.mxu0 0.0
        %1444 = vmatmul.mubr.f32.gmra.mrb[0].mxu0 %v1240
        %v1445 = vpop.f32.mrb[0].mxu0
        %v1446 = vadd.f32 0.0, %v1445
        %v1447 = vpop.f32.mrb[0].mxu0
        %1448 = vmatprep.mubr.f32.mxu0 0.0
        %1449 = vmatmul.mubr.f32.gmra.mrb[0].mxu0 %v1242
        %v1450 = vpop.f32.mrb[0].mxu0
        %v1451 = vadd.f32 0.0, %v1450
        %v1452 = vpop.f32.mrb[0].mxu0
        %1453 = vmatprep.mubr.f32.mxu0 0.0
        %1454 = vmatmul.mubr.f32.gmra.mrb[0].mxu0 %v1244
        %v1455 = vpop.f32.mrb[0].mxu0
        %v1456 = vadd.f32 0.0, %v1455
        %v1457 = vpop.f32.mrb[0].mxu0
        %1458 = vmatprep.mubr.f32.mxu0 0.0
        %1459 = vmatmul.mubr.f32.gmra.mrb[0].mxu0 %v1246
        %v1460 = vpop.f32.mrb[0].mxu0
        %v1461 = vadd.f32 0.0, %v1460
        %v1462 = vpop.f32.mrb[0].mxu0
        %1463 = vmatprep.mubr.f32.mxu0 0.0
        %1464 = vmatmul.mubr.f32.gmra.mrb[0].mxu0 %v1248
        %v1465 = vpop.f32.mrb[0].mxu0
        %v1466 = vadd.f32 0.0, %v1465
        %v1467 = vpop.f32.mrb[0].mxu0
        %1468 = vmatprep.mubr.f32.mxu0 0.0
        %1469 = vmatmul.mubr.f32.gmra.mrb[0].mxu0 %v1250
        %v1470 = vpop.f32.mrb[0].mxu0
        %v1471 = vadd.f32 0.0, %v1470
        %v1472 = vpop.f32.mrb[0].mxu0
        %1473 = vmatprep.mubr.f32.mxu0 0.0
        %1474 = vmatmul.mubr.f32.gmra.mrb[0].mxu0 %v1252
        %v1475 = vpop.f32.mrb[0].mxu0
        %v1476 = vadd.f32 0.0, %v1475
        %v1477 = vpop.f32.mrb[0].mxu0
        %1478 = vmatprep.mubr.f32.mxu0 0.0
        %1479 = vmatmul.mubr.f32.gmra.mrb[0].mxu0 %v1254
        %v1480 = vpop.f32.mrb[0].mxu0
        %v1481 = vadd.f32 0.0, %v1480
        %v1482 = vpop.f32.mrb[0].mxu0
        %1483 = vdwg.mxu0
        %v1484 = vadd.f32 %v951, %v1326
        %v1485 = vadd.f32 %v956, %v1331
        %v1486 = vadd.f32 %v961, %v1336
        %v1487 = vadd.f32 %v966, %v1341
        %v1488 = vadd.f32 %v971, %v1346
        %v1489 = vadd.f32 %v976, %v1351
        %v1490 = vadd.f32 %v981, %v1356
        %v1491 = vadd.f32 %v986, %v1361
        %v1492 = vadd.f32 %v991, %v1366
        %v1493 = vadd.f32 %v996, %v1371
        %v1494 = vadd.f32 %v1001, %v1376
        %v1495 = vadd.f32 %v1006, %v1381
        %v1496 = vadd.f32 %v1011, %v1386
        %v1497 = vadd.f32 %v1016, %v1391
        %v1498 = vadd.f32 %v1021, %v1396
        %v1499 = vadd.f32 %v1026, %v1401
        %v1500 = vadd.f32 %v1031, %v1406
        %v1501 = vadd.f32 %v1036, %v1411
        %v1502 = vadd.f32 %v1041, %v1416
        %v1503 = vadd.f32 %v1046, %v1421
        %v1504 = vadd.f32 %v1051, %v1426
        %v1505 = vadd.f32 %v1056, %v1431
        %v1506 = vadd.f32 %v1061, %v1436
        %v1507 = vadd.f32 %v1066, %v1441
        %v1508 = vadd.f32 %v1071, %v1446
        %v1509 = vadd.f32 %v1076, %v1451
        %v1510 = vadd.f32 %v1081, %v1456
        %v1511 = vadd.f32 %v1086, %v1461
        %v1512 = vadd.f32 %v1091, %v1466
        %v1513 = vadd.f32 %v1096, %v1471
        %v1514 = vadd.f32 %v1101, %v1476
        %v1515 = vadd.f32 %v1106, %v1481
        %s1516 = scalar_lea.vmem %s1, 12
        %v1517 = vld [vmem:[%s1516] sm:$0xf]
        %v1519 = vsel %vm249, %v386, 0
        %v1522 = vsel %vm249, %v387, 0
        %v1525 = vsel %vm588, %v1517, 0
        %1527 = vmatprep.subr.mxu0 0.0
        %1528 = vmatpush1.msra.mxu0 %v1525
        %1529 = vmatprep.subr.mxu0 0.0
        %1530 = vmatpush1.msra.mxu0 0.0
        %1531 = vmatprep.subr.mxu0 0.0
        %1532 = vmatpush1.msra.mxu0 0.0
        %1533 = vmatprep.subr.mxu0 0.0
        %1534 = vmatpush1.msra.mxu0 0.0
        %1535 = vmatprep.subr.mxu0 0.0
        %1536 = vmatpush1.msra.mxu0 0.0
        %1537 = vmatprep.subr.mxu0 0.0
        %1538 = vmatpush1.msra.mxu0 0.0
        %1539 = vmatprep.subr.mxu0 0.0
        %1540 = vmatpush1.msra.mxu0 0.0
        %1541 = vmatprep.subr.mxu0 0.0
        %1542 = vmatpush1.msra.mxu0 0.0
        %1543 = vmatprep.subr.mxu0 0.0
        %1544 = vmatpush1.msra.mxu0 0.0
        %1545 = vmatprep.subr.mxu0 0.0
        %1546 = vmatpush1.msra.mxu0 0.0
        %1547 = vmatprep.subr.mxu0 0.0
        %1548 = vmatpush1.msra.mxu0 0.0
        %1549 = vmatprep.subr.mxu0 0.0
        %1550 = vmatpush1.msra.mxu0 0.0
        %1551 = vmatprep.subr.mxu0 0.0
        %1552 = vmatpush1.msra.mxu0 0.0
        %1553 = vmatprep.subr.mxu0 0.0
        %1554 = vmatpush1.msra.mxu0 0.0
        %1555 = vmatprep.subr.mxu0 0.0
        %1556 = vmatpush1.msra.mxu0 0.0
        %1557 = vmatprep.subr.mxu0 0.0
        %1558 = vmatpush1.msra.mxu0 0.0
        %1559 = vmatprep.subr.mxu0 0.0
        %1560 = vmatpush1.msra.mxu0 0.0
        %1561 = vmatprep.subr.mxu0 0.0
        %1562 = vmatpush1.msra.mxu0 0.0
        %1563 = vmatprep.subr.mxu0 0.0
        %1564 = vmatpush1.msra.mxu0 0.0
        %1565 = vmatprep.subr.mxu0 0.0
        %1566 = vmatpush1.msra.mxu0 0.0
        %1567 = vmatprep.subr.mxu0 0.0
        %1568 = vmatpush1.msra.mxu0 0.0
        %1569 = vmatprep.subr.mxu0 0.0
        %1570 = vmatpush1.msra.mxu0 0.0
        %1571 = vmatprep.subr.mxu0 0.0
        %1572 = vmatpush1.msra.mxu0 0.0
        %1573 = vmatprep.subr.mxu0 0.0
        %1574 = vmatpush1.msra.mxu0 0.0
        %1575 = vmatprep.subr.mxu0 0.0
        %1576 = vmatpush1.msra.mxu0 0.0
        %1577 = vmatprep.subr.mxu0 0.0
        %1578 = vmatpush1.msra.mxu0 0.0
        %1579 = vmatprep.subr.mxu0 0.0
        %1580 = vmatpush1.msra.mxu0 0.0
        %1581 = vmatprep.subr.mxu0 0.0
        %1582 = vmatpush1.msra.mxu0 0.0
        %1583 = vmatprep.subr.mxu0 0.0
        %1584 = vmatpush1.msra.mxu0 0.0
        %1585 = vmatprep.subr.mxu0 0.0
        %1586 = vmatpush1.msra.mxu0 0.0
        %1587 = vmatprep.subr.mxu0 0.0
        %1588 = vmatpush1.msra.mxu0 0.0
        %1589 = vmatprep.subr.mxu0 0.0
        %1590 = vmatpush1.msra.mxu0 0.0
        %1591 = vmatprep.mubr.f32.mxu0 0.0
        %1592 = vmatmul.mubr.f32.gmra.mrb[0].mxu0 %v821
        %v1593 = vpop.f32.mrb[0].mxu0
        %v1594 = vadd.f32 0.0, %v1593
        %v1595 = vpop.f32.mrb[0].mxu0
        %1596 = vmatprep.mubr.f32.mxu0 0.0
        %1597 = vmatmul.mubr.f32.gmra.mrb[0].mxu0 %v823
        %v1598 = vpop.f32.mrb[0].mxu0
        %v1599 = vadd.f32 0.0, %v1598
        %v1600 = vpop.f32.mrb[0].mxu0
        %1601 = vmatprep.mubr.f32.mxu0 0.0
        %1602 = vmatmul.mubr.f32.gmra.mrb[0].mxu0 %v825
        %v1603 = vpop.f32.mrb[0].mxu0
        %v1604 = vadd.f32 0.0, %v1603
        %v1605 = vpop.f32.mrb[0].mxu0
        %1606 = vmatprep.mubr.f32.mxu0 0.0
        %1607 = vmatmul.mubr.f32.gmra.mrb[0].mxu0 %v827
        %v1608 = vpop.f32.mrb[0].mxu0
        %v1609 = vadd.f32 0.0, %v1608
        %v1610 = vpop.f32.mrb[0].mxu0
        %1611 = vmatprep.mubr.f32.mxu0 0.0
        %1612 = vmatmul.mubr.f32.gmra.mrb[0].mxu0 %v829
        %v1613 = vpop.f32.mrb[0].mxu0
        %v1614 = vadd.f32 0.0, %v1613
        %v1615 = vpop.f32.mrb[0].mxu0
        %1616 = vmatprep.mubr.f32.mxu0 0.0
        %1617 = vmatmul.mubr.f32.gmra.mrb[0].mxu0 %v831
        %v1618 = vpop.f32.mrb[0].mxu0
        %v1619 = vadd.f32 0.0, %v1618
        %v1620 = vpop.f32.mrb[0].mxu0
        %1621 = vmatprep.mubr.f32.mxu0 0.0
        %1622 = vmatmul.mubr.f32.gmra.mrb[0].mxu0 %v833
        %v1623 = vpop.f32.mrb[0].mxu0
        %v1624 = vadd.f32 0.0, %v1623
        %v1625 = vpop.f32.mrb[0].mxu0
        %1626 = vmatprep.mubr.f32.mxu0 0.0
        %1627 = vmatmul.mubr.f32.gmra.mrb[0].mxu0 %v835
        %v1628 = vpop.f32.mrb[0].mxu0
        %v1629 = vadd.f32 0.0, %v1628
        %v1630 = vpop.f32.mrb[0].mxu0
        %1631 = vmatprep.mubr.f32.mxu0 0.0
        %1632 = vmatmul.mubr.f32.gmra.mrb[0].mxu0 %v837
        %v1633 = vpop.f32.mrb[0].mxu0
        %v1634 = vadd.f32 0.0, %v1633
        %v1635 = vpop.f32.mrb[0].mxu0
        %1636 = vmatprep.mubr.f32.mxu0 0.0
        %1637 = vmatmul.mubr.f32.gmra.mrb[0].mxu0 %v839
        %v1638 = vpop.f32.mrb[0].mxu0
        %v1639 = vadd.f32 0.0, %v1638
        %v1640 = vpop.f32.mrb[0].mxu0
        %1641 = vmatprep.mubr.f32.mxu0 0.0
        %1642 = vmatmul.mubr.f32.gmra.mrb[0].mxu0 %v841
        %v1643 = vpop.f32.mrb[0].mxu0
        %v1644 = vadd.f32 0.0, %v1643
        %v1645 = vpop.f32.mrb[0].mxu0
        %1646 = vmatprep.mubr.f32.mxu0 0.0
        %1647 = vmatmul.mubr.f32.gmra.mrb[0].mxu0 %v843
        %v1648 = vpop.f32.mrb[0].mxu0
        %v1649 = vadd.f32 0.0, %v1648
        %v1650 = vpop.f32.mrb[0].mxu0
        %1651 = vmatprep.mubr.f32.mxu0 0.0
        %1652 = vmatmul.mubr.f32.gmra.mrb[0].mxu0 %v845
        %v1653 = vpop.f32.mrb[0].mxu0
        %v1654 = vadd.f32 0.0, %v1653
        %v1655 = vpop.f32.mrb[0].mxu0
        %1656 = vmatprep.mubr.f32.mxu0 0.0
        %1657 = vmatmul.mubr.f32.gmra.mrb[0].mxu0 %v847
        %v1658 = vpop.f32.mrb[0].mxu0
        %v1659 = vadd.f32 0.0, %v1658
        %v1660 = vpop.f32.mrb[0].mxu0
        %1661 = vmatprep.mubr.f32.mxu0 0.0
        %1662 = vmatmul.mubr.f32.gmra.mrb[0].mxu0 %v849
        %v1663 = vpop.f32.mrb[0].mxu0
        %v1664 = vadd.f32 0.0, %v1663
        %v1665 = vpop.f32.mrb[0].mxu0
        %1666 = vmatprep.mubr.f32.mxu0 0.0
        %1667 = vmatmul.mubr.f32.gmra.mrb[0].mxu0 %v851
        %v1668 = vpop.f32.mrb[0].mxu0
        %v1669 = vadd.f32 0.0, %v1668
        %v1670 = vpop.f32.mrb[0].mxu0
        %1671 = vmatprep.mubr.f32.mxu0 0.0
        %1672 = vmatmul.mubr.f32.gmra.mrb[0].mxu0 %v853
        %v1673 = vpop.f32.mrb[0].mxu0
        %v1674 = vadd.f32 0.0, %v1673
        %v1675 = vpop.f32.mrb[0].mxu0
        %1676 = vmatprep.mubr.f32.mxu0 0.0
        %1677 = vmatmul.mubr.f32.gmra.mrb[0].mxu0 %v855
        %v1678 = vpop.f32.mrb[0].mxu0
        %v1679 = vadd.f32 0.0, %v1678
        %v1680 = vpop.f32.mrb[0].mxu0
        %1681 = vmatprep.mubr.f32.mxu0 0.0
        %1682 = vmatmul.mubr.f32.gmra.mrb[0].mxu0 %v857
        %v1683 = vpop.f32.mrb[0].mxu0
        %v1684 = vadd.f32 0.0, %v1683
        %v1685 = vpop.f32.mrb[0].mxu0
        %1686 = vmatprep.mubr.f32.mxu0 0.0
        %1687 = vmatmul.mubr.f32.gmra.mrb[0].mxu0 %v859
        %v1688 = vpop.f32.mrb[0].mxu0
        %v1689 = vadd.f32 0.0, %v1688
        %v1690 = vpop.f32.mrb[0].mxu0
        %1691 = vmatprep.mubr.f32.mxu0 0.0
        %1692 = vmatmul.mubr.f32.gmra.mrb[0].mxu0 %v861
        %v1693 = vpop.f32.mrb[0].mxu0
        %v1694 = vadd.f32 0.0, %v1693
        %v1695 = vpop.f32.mrb[0].mxu0
        %1696 = vmatprep.mubr.f32.mxu0 0.0
        %1697 = vmatmul.mubr.f32.gmra.mrb[0].mxu0 %v863
        %v1698 = vpop.f32.mrb[0].mxu0
        %v1699 = vadd.f32 0.0, %v1698
        %v1700 = vpop.f32.mrb[0].mxu0
        %1701 = vmatprep.mubr.f32.mxu0 0.0
        %1702 = vmatmul.mubr.f32.gmra.mrb[0].mxu0 %v865
        %v1703 = vpop.f32.mrb[0].mxu0
        %v1704 = vadd.f32 0.0, %v1703
        %v1705 = vpop.f32.mrb[0].mxu0
        %1706 = vmatprep.mubr.f32.mxu0 0.0
        %1707 = vmatmul.mubr.f32.gmra.mrb[0].mxu0 %v867
        %v1708 = vpop.f32.mrb[0].mxu0
        %v1709 = vadd.f32 0.0, %v1708
        %v1710 = vpop.f32.mrb[0].mxu0
        %1711 = vmatprep.mubr.f32.mxu0 0.0
        %1712 = vmatmul.mubr.f32.gmra.mrb[0].mxu0 %v869
        %v1713 = vpop.f32.mrb[0].mxu0
        %v1714 = vadd.f32 0.0, %v1713
        %v1715 = vpop.f32.mrb[0].mxu0
        %1716 = vmatprep.mubr.f32.mxu0 0.0
        %1717 = vmatmul.mubr.f32.gmra.mrb[0].mxu0 %v871
        %v1718 = vpop.f32.mrb[0].mxu0
        %v1719 = vadd.f32 0.0, %v1718
        %v1720 = vpop.f32.mrb[0].mxu0
        %1721 = vmatprep.mubr.f32.mxu0 0.0
        %1722 = vmatmul.mubr.f32.gmra.mrb[0].mxu0 %v873
        %v1723 = vpop.f32.mrb[0].mxu0
        %v1724 = vadd.f32 0.0, %v1723
        %v1725 = vpop.f32.mrb[0].mxu0
        %1726 = vmatprep.mubr.f32.mxu0 0.0
        %1727 = vmatmul.mubr.f32.gmra.mrb[0].mxu0 %v875
        %v1728 = vpop.f32.mrb[0].mxu0
        %v1729 = vadd.f32 0.0, %v1728
        %v1730 = vpop.f32.mrb[0].mxu0
        %1731 = vmatprep.mubr.f32.mxu0 0.0
        %1732 = vmatmul.mubr.f32.gmra.mrb[0].mxu0 %v877
        %v1733 = vpop.f32.mrb[0].mxu0
        %v1734 = vadd.f32 0.0, %v1733
        %v1735 = vpop.f32.mrb[0].mxu0
        %1736 = vmatprep.mubr.f32.mxu0 0.0
        %1737 = vmatmul.mubr.f32.gmra.mrb[0].mxu0 %v879
        %v1738 = vpop.f32.mrb[0].mxu0
        %v1739 = vadd.f32 0.0, %v1738
        %v1740 = vpop.f32.mrb[0].mxu0
        %1741 = vmatprep.mubr.f32.mxu0 0.0
        %1742 = vmatmul.mubr.f32.gmra.mrb[0].mxu0 %v1519
        %v1743 = vpop.f32.mrb[0].mxu0
        %v1744 = vadd.f32 0.0, %v1743
        %v1745 = vpop.f32.mrb[0].mxu0
        %1746 = vmatprep.mubr.f32.mxu0 0.0
        %1747 = vmatmul.mubr.f32.gmra.mrb[0].mxu0 %v1522
        %v1748 = vpop.f32.mrb[0].mxu0
        %v1749 = vadd.f32 0.0, %v1748
        %v1750 = vpop.f32.mrb[0].mxu0
        %1751 = vdwg.mxu0
        %v1752 = vadd.f32 %v1484, %v1594
        %v1753 = vadd.f32 %v1485, %v1599
        %v1754 = vadd.f32 %v1486, %v1604
        %v1755 = vadd.f32 %v1487, %v1609
        %v1756 = vadd.f32 %v1488, %v1614
        %v1757 = vadd.f32 %v1489, %v1619
        %v1758 = vadd.f32 %v1490, %v1624
        %v1759 = vadd.f32 %v1491, %v1629
        %v1760 = vadd.f32 %v1492, %v1634
        %v1761 = vadd.f32 %v1493, %v1639
        %v1762 = vadd.f32 %v1494, %v1644
        %v1763 = vadd.f32 %v1495, %v1649
        %v1764 = vadd.f32 %v1496, %v1654
        %v1765 = vadd.f32 %v1497, %v1659
        %v1766 = vadd.f32 %v1498, %v1664
        %v1767 = vadd.f32 %v1499, %v1669
        %v1768 = vadd.f32 %v1500, %v1674
        %v1769 = vadd.f32 %v1501, %v1679
        %v1770 = vadd.f32 %v1502, %v1684
        %v1771 = vadd.f32 %v1503, %v1689
        %v1772 = vadd.f32 %v1504, %v1694
        %v1773 = vadd.f32 %v1505, %v1699
        %v1774 = vadd.f32 %v1506, %v1704
        %v1775 = vadd.f32 %v1507, %v1709
        %v1776 = vadd.f32 %v1508, %v1714
        %v1777 = vadd.f32 %v1509, %v1719
        %v1778 = vadd.f32 %v1510, %v1724
        %v1779 = vadd.f32 %v1511, %v1729
        %v1780 = vadd.f32 %v1512, %v1734
        %v1781 = vadd.f32 %v1513, %v1739
        %v1782 = vadd.f32 %v1514, %v1744
        %v1783 = vadd.f32 %v1515, %v1749
        %v1785 = vrot.slane %v386, 1
        %v1786 = vrot.slane %v387, 1
        %v1787 = vsel %vm441, %v1785, %v1786
        %v1788 = vrot.slane %v388, 1
        %v1789 = vsel %vm441, %v1786, %v1788
        %s1790 = scalar_lea.vmem %s1, 16
        %v1791 = vld [vmem:[%s1790] sm:$0xf]
        %v1792 = vsel %vm249, %v1787, 0
        %v1794 = vsel %vm249, %v1789, 0
        %v1797 = vsel %vm588, %v1791, 0
        %1799 = vmatprep.subr.mxu0 0.0
        %1800 = vmatpush1.msra.mxu0 %v1797
        %1801 = vmatprep.subr.mxu0 0.0
        %1802 = vmatpush1.msra.mxu0 0.0
        %1803 = vmatprep.subr.mxu0 0.0
        %1804 = vmatpush1.msra.mxu0 0.0
        %1805 = vmatprep.subr.mxu0 0.0
        %1806 = vmatpush1.msra.mxu0 0.0
        %1807 = vmatprep.subr.mxu0 0.0
        %1808 = vmatpush1.msra.mxu0 0.0
        %1809 = vmatprep.subr.mxu0 0.0
        %1810 = vmatpush1.msra.mxu0 0.0
        %1811 = vmatprep.subr.mxu0 0.0
        %1812 = vmatpush1.msra.mxu0 0.0
        %1813 = vmatprep.subr.mxu0 0.0
        %1814 = vmatpush1.msra.mxu0 0.0
        %1815 = vmatprep.subr.mxu0 0.0
        %1816 = vmatpush1.msra.mxu0 0.0
        %1817 = vmatprep.subr.mxu0 0.0
        %1818 = vmatpush1.msra.mxu0 0.0
        %1819 = vmatprep.subr.mxu0 0.0
        %1820 = vmatpush1.msra.mxu0 0.0
        %1821 = vmatprep.subr.mxu0 0.0
        %1822 = vmatpush1.msra.mxu0 0.0
        %1823 = vmatprep.subr.mxu0 0.0
        %1824 = vmatpush1.msra.mxu0 0.0
        %1825 = vmatprep.subr.mxu0 0.0
        %1826 = vmatpush1.msra.mxu0 0.0
        %1827 = vmatprep.subr.mxu0 0.0
        %1828 = vmatpush1.msra.mxu0 0.0
        %1829 = vmatprep.subr.mxu0 0.0
        %1830 = vmatpush1.msra.mxu0 0.0
        %1831 = vmatprep.subr.mxu0 0.0
        %1832 = vmatpush1.msra.mxu0 0.0
        %1833 = vmatprep.subr.mxu0 0.0
        %1834 = vmatpush1.msra.mxu0 0.0
        %1835 = vmatprep.subr.mxu0 0.0
        %1836 = vmatpush1.msra.mxu0 0.0
        %1837 = vmatprep.subr.mxu0 0.0
        %1838 = vmatpush1.msra.mxu0 0.0
        %1839 = vmatprep.subr.mxu0 0.0
        %1840 = vmatpush1.msra.mxu0 0.0
        %1841 = vmatprep.subr.mxu0 0.0
        %1842 = vmatpush1.msra.mxu0 0.0
        %1843 = vmatprep.subr.mxu0 0.0
        %1844 = vmatpush1.msra.mxu0 0.0
        %1845 = vmatprep.subr.mxu0 0.0
        %1846 = vmatpush1.msra.mxu0 0.0
        %1847 = vmatprep.subr.mxu0 0.0
        %1848 = vmatpush1.msra.mxu0 0.0
        %1849 = vmatprep.subr.mxu0 0.0
        %1850 = vmatpush1.msra.mxu0 0.0
        %1851 = vmatprep.subr.mxu0 0.0
        %1852 = vmatpush1.msra.mxu0 0.0
        %1853 = vmatprep.subr.mxu0 0.0
        %1854 = vmatpush1.msra.mxu0 0.0
        %1855 = vmatprep.subr.mxu0 0.0
        %1856 = vmatpush1.msra.mxu0 0.0
        %1857 = vmatprep.subr.mxu0 0.0
        %1858 = vmatpush1.msra.mxu0 0.0
        %1859 = vmatprep.subr.mxu0 0.0
        %1860 = vmatpush1.msra.mxu0 0.0
        %1861 = vmatprep.subr.mxu0 0.0
        %1862 = vmatpush1.msra.mxu0 0.0
        %1863 = vmatprep.mubr.f32.mxu0 0.0
        %1864 = vmatmul.mubr.f32.gmra.mrb[0].mxu0 %v528
        %v1865 = vpop.f32.mrb[0].mxu0
        %v1866 = vadd.f32 0.0, %v1865
        %v1867 = vpop.f32.mrb[0].mxu0
        %1868 = vmatprep.mubr.f32.mxu0 0.0
        %1869 = vmatmul.mubr.f32.gmra.mrb[0].mxu0 %v530
        %v1870 = vpop.f32.mrb[0].mxu0
        %v1871 = vadd.f32 0.0, %v1870
        %v1872 = vpop.f32.mrb[0].mxu0
        %1873 = vmatprep.mubr.f32.mxu0 0.0
        %1874 = vmatmul.mubr.f32.gmra.mrb[0].mxu0 %v532
        %v1875 = vpop.f32.mrb[0].mxu0
        %v1876 = vadd.f32 0.0, %v1875
        %v1877 = vpop.f32.mrb[0].mxu0
        %1878 = vmatprep.mubr.f32.mxu0 0.0
        %1879 = vmatmul.mubr.f32.gmra.mrb[0].mxu0 %v534
        %v1880 = vpop.f32.mrb[0].mxu0
        %v1881 = vadd.f32 0.0, %v1880
        %v1882 = vpop.f32.mrb[0].mxu0
        %1883 = vmatprep.mubr.f32.mxu0 0.0
        %1884 = vmatmul.mubr.f32.gmra.mrb[0].mxu0 %v536
        %v1885 = vpop.f32.mrb[0].mxu0
        %v1886 = vadd.f32 0.0, %v1885
        %v1887 = vpop.f32.mrb[0].mxu0
        %1888 = vmatprep.mubr.f32.mxu0 0.0
        %1889 = vmatmul.mubr.f32.gmra.mrb[0].mxu0 %v538
        %v1890 = vpop.f32.mrb[0].mxu0
        %v1891 = vadd.f32 0.0, %v1890
        %v1892 = vpop.f32.mrb[0].mxu0
        %1893 = vmatprep.mubr.f32.mxu0 0.0
        %1894 = vmatmul.mubr.f32.gmra.mrb[0].mxu0 %v540
        %v1895 = vpop.f32.mrb[0].mxu0
        %v1896 = vadd.f32 0.0, %v1895
        %v1897 = vpop.f32.mrb[0].mxu0
        %1898 = vmatprep.mubr.f32.mxu0 0.0
        %1899 = vmatmul.mubr.f32.gmra.mrb[0].mxu0 %v542
        %v1900 = vpop.f32.mrb[0].mxu0
        %v1901 = vadd.f32 0.0, %v1900
        %v1902 = vpop.f32.mrb[0].mxu0
        %1903 = vmatprep.mubr.f32.mxu0 0.0
        %1904 = vmatmul.mubr.f32.gmra.mrb[0].mxu0 %v544
        %v1905 = vpop.f32.mrb[0].mxu0
        %v1906 = vadd.f32 0.0, %v1905
        %v1907 = vpop.f32.mrb[0].mxu0
        %1908 = vmatprep.mubr.f32.mxu0 0.0
        %1909 = vmatmul.mubr.f32.gmra.mrb[0].mxu0 %v546
        %v1910 = vpop.f32.mrb[0].mxu0
        %v1911 = vadd.f32 0.0, %v1910
        %v1912 = vpop.f32.mrb[0].mxu0
        %1913 = vmatprep.mubr.f32.mxu0 0.0
        %1914 = vmatmul.mubr.f32.gmra.mrb[0].mxu0 %v548
        %v1915 = vpop.f32.mrb[0].mxu0
        %v1916 = vadd.f32 0.0, %v1915
        %v1917 = vpop.f32.mrb[0].mxu0
        %1918 = vmatprep.mubr.f32.mxu0 0.0
        %1919 = vmatmul.mubr.f32.gmra.mrb[0].mxu0 %v550
        %v1920 = vpop.f32.mrb[0].mxu0
        %v1921 = vadd.f32 0.0, %v1920
        %v1922 = vpop.f32.mrb[0].mxu0
        %1923 = vmatprep.mubr.f32.mxu0 0.0
        %1924 = vmatmul.mubr.f32.gmra.mrb[0].mxu0 %v552
        %v1925 = vpop.f32.mrb[0].mxu0
        %v1926 = vadd.f32 0.0, %v1925
        %v1927 = vpop.f32.mrb[0].mxu0
        %1928 = vmatprep.mubr.f32.mxu0 0.0
        %1929 = vmatmul.mubr.f32.gmra.mrb[0].mxu0 %v554
        %v1930 = vpop.f32.mrb[0].mxu0
        %v1931 = vadd.f32 0.0, %v1930
        %v1932 = vpop.f32.mrb[0].mxu0
        %1933 = vmatprep.mubr.f32.mxu0 0.0
        %1934 = vmatmul.mubr.f32.gmra.mrb[0].mxu0 %v556
        %v1935 = vpop.f32.mrb[0].mxu0
        %v1936 = vadd.f32 0.0, %v1935
        %v1937 = vpop.f32.mrb[0].mxu0
        %1938 = vmatprep.mubr.f32.mxu0 0.0
        %1939 = vmatmul.mubr.f32.gmra.mrb[0].mxu0 %v558
        %v1940 = vpop.f32.mrb[0].mxu0
        %v1941 = vadd.f32 0.0, %v1940
        %v1942 = vpop.f32.mrb[0].mxu0
        %1943 = vmatprep.mubr.f32.mxu0 0.0
        %1944 = vmatmul.mubr.f32.gmra.mrb[0].mxu0 %v560
        %v1945 = vpop.f32.mrb[0].mxu0
        %v1946 = vadd.f32 0.0, %v1945
        %v1947 = vpop.f32.mrb[0].mxu0
        %1948 = vmatprep.mubr.f32.mxu0 0.0
        %1949 = vmatmul.mubr.f32.gmra.mrb[0].mxu0 %v562
        %v1950 = vpop.f32.mrb[0].mxu0
        %v1951 = vadd.f32 0.0, %v1950
        %v1952 = vpop.f32.mrb[0].mxu0
        %1953 = vmatprep.mubr.f32.mxu0 0.0
        %1954 = vmatmul.mubr.f32.gmra.mrb[0].mxu0 %v564
        %v1955 = vpop.f32.mrb[0].mxu0
        %v1956 = vadd.f32 0.0, %v1955
        %v1957 = vpop.f32.mrb[0].mxu0
        %1958 = vmatprep.mubr.f32.mxu0 0.0
        %1959 = vmatmul.mubr.f32.gmra.mrb[0].mxu0 %v566
        %v1960 = vpop.f32.mrb[0].mxu0
        %v1961 = vadd.f32 0.0, %v1960
        %v1962 = vpop.f32.mrb[0].mxu0
        %1963 = vmatprep.mubr.f32.mxu0 0.0
        %1964 = vmatmul.mubr.f32.gmra.mrb[0].mxu0 %v568
        %v1965 = vpop.f32.mrb[0].mxu0
        %v1966 = vadd.f32 0.0, %v1965
        %v1967 = vpop.f32.mrb[0].mxu0
        %1968 = vmatprep.mubr.f32.mxu0 0.0
        %1969 = vmatmul.mubr.f32.gmra.mrb[0].mxu0 %v570
        %v1970 = vpop.f32.mrb[0].mxu0
        %v1971 = vadd.f32 0.0, %v1970
        %v1972 = vpop.f32.mrb[0].mxu0
        %1973 = vmatprep.mubr.f32.mxu0 0.0
        %1974 = vmatmul.mubr.f32.gmra.mrb[0].mxu0 %v572
        %v1975 = vpop.f32.mrb[0].mxu0
        %v1976 = vadd.f32 0.0, %v1975
        %v1977 = vpop.f32.mrb[0].mxu0
        %1978 = vmatprep.mubr.f32.mxu0 0.0
        %1979 = vmatmul.mubr.f32.gmra.mrb[0].mxu0 %v574
        %v1980 = vpop.f32.mrb[0].mxu0
        %v1981 = vadd.f32 0.0, %v1980
        %v1982 = vpop.f32.mrb[0].mxu0
        %1983 = vmatprep.mubr.f32.mxu0 0.0
        %1984 = vmatmul.mubr.f32.gmra.mrb[0].mxu0 %v576
        %v1985 = vpop.f32.mrb[0].mxu0
        %v1986 = vadd.f32 0.0, %v1985
        %v1987 = vpop.f32.mrb[0].mxu0
        %1988 = vmatprep.mubr.f32.mxu0 0.0
        %1989 = vmatmul.mubr.f32.gmra.mrb[0].mxu0 %v578
        %v1990 = vpop.f32.mrb[0].mxu0
        %v1991 = vadd.f32 0.0, %v1990
        %v1992 = vpop.f32.mrb[0].mxu0
        %1993 = vmatprep.mubr.f32.mxu0 0.0
        %1994 = vmatmul.mubr.f32.gmra.mrb[0].mxu0 %v580
        %v1995 = vpop.f32.mrb[0].mxu0
        %v1996 = vadd.f32 0.0, %v1995
        %v1997 = vpop.f32.mrb[0].mxu0
        %1998 = vmatprep.mubr.f32.mxu0 0.0
        %1999 = vmatmul.mubr.f32.gmra.mrb[0].mxu0 %v582
        %v2000 = vpop.f32.mrb[0].mxu0
        %v2001 = vadd.f32 0.0, %v2000
        %v2002 = vpop.f32.mrb[0].mxu0
        %2003 = vmatprep.mubr.f32.mxu0 0.0
        %2004 = vmatmul.mubr.f32.gmra.mrb[0].mxu0 %v584
        %v2005 = vpop.f32.mrb[0].mxu0
        %v2006 = vadd.f32 0.0, %v2005
        %v2007 = vpop.f32.mrb[0].mxu0
        %2008 = vmatprep.mubr.f32.mxu0 0.0
        %2009 = vmatmul.mubr.f32.gmra.mrb[0].mxu0 %v586
        %v2010 = vpop.f32.mrb[0].mxu0
        %v2011 = vadd.f32 0.0, %v2010
        %v2012 = vpop.f32.mrb[0].mxu0
        %2013 = vmatprep.mubr.f32.mxu0 0.0
        %2014 = vmatmul.mubr.f32.gmra.mrb[0].mxu0 %v1792
        %v2015 = vpop.f32.mrb[0].mxu0
        %v2016 = vadd.f32 0.0, %v2015
        %v2017 = vpop.f32.mrb[0].mxu0
        %2018 = vmatprep.mubr.f32.mxu0 0.0
        %2019 = vmatmul.mubr.f32.gmra.mrb[0].mxu0 %v1794
        %v2020 = vpop.f32.mrb[0].mxu0
        %v2021 = vadd.f32 0.0, %v2020
        %v2022 = vpop.f32.mrb[0].mxu0
        %2023 = vdwg.mxu0
        %v2024 = vadd.f32 %v1752, %v1866
        %v2025 = vadd.f32 %v1753, %v1871
        %v2026 = vadd.f32 %v1754, %v1876
        %v2027 = vadd.f32 %v1755, %v1881
        %v2028 = vadd.f32 %v1756, %v1886
        %v2029 = vadd.f32 %v1757, %v1891
        %v2030 = vadd.f32 %v1758, %v1896
        %v2031 = vadd.f32 %v1759, %v1901
        %v2032 = vadd.f32 %v1760, %v1906
        %v2033 = vadd.f32 %v1761, %v1911
        %v2034 = vadd.f32 %v1762, %v1916
        %v2035 = vadd.f32 %v1763, %v1921
        %v2036 = vadd.f32 %v1764, %v1926
        %v2037 = vadd.f32 %v1765, %v1931
        %v2038 = vadd.f32 %v1766, %v1936
        %v2039 = vadd.f32 %v1767, %v1941
        %v2040 = vadd.f32 %v1768, %v1946
        %v2041 = vadd.f32 %v1769, %v1951
        %v2042 = vadd.f32 %v1770, %v1956
        %v2043 = vadd.f32 %v1771, %v1961
        %v2044 = vadd.f32 %v1772, %v1966
        %v2045 = vadd.f32 %v1773, %v1971
        %v2046 = vadd.f32 %v1774, %v1976
        %v2047 = vadd.f32 %v1775, %v1981
        %v2048 = vadd.f32 %v1776, %v1986
        %v2049 = vadd.f32 %v1777, %v1991
        %v2050 = vadd.f32 %v1778, %v1996
        %v2051 = vadd.f32 %v1779, %v2001
        %v2052 = vadd.f32 %v1780, %v2006
        %v2053 = vadd.f32 %v1781, %v2011
        %v2054 = vadd.f32 %v1782, %v2016
        %v2055 = vadd.f32 %v1783, %v2021
        %v2056 = vrot.slane %v386, 2
        %v2057 = vrot.slane %v387, 2
        %v2058 = vsel %vm1109, %v2056, %v2057
        %v2059 = vrot.slane %v388, 2
        %v2060 = vsel %vm1109, %v2057, %v2059
        %s2061 = scalar_lea.vmem %s1, 20
        %v2062 = vld [vmem:[%s2061] sm:$0xf]
        %v2063 = vsel %vm249, %v2058, 0
        %v2065 = vsel %vm249, %v2060, 0
        %v2068 = vsel %vm588, %v2062, 0
        %2070 = vmatprep.subr.mxu0 0.0
        %2071 = vmatpush1.msra.mxu0 %v2068
        %2072 = vmatprep.subr.mxu0 0.0
        %2073 = vmatpush1.msra.mxu0 0.0
        %2074 = vmatprep.subr.mxu0 0.0
        %2075 = vmatpush1.msra.mxu0 0.0
        %2076 = vmatprep.subr.mxu0 0.0
        %2077 = vmatpush1.msra.mxu0 0.0
        %2078 = vmatprep.subr.mxu0 0.0
        %2079 = vmatpush1.msra.mxu0 0.0
        %2080 = vmatprep.subr.mxu0 0.0
        %2081 = vmatpush1.msra.mxu0 0.0
        %2082 = vmatprep.subr.mxu0 0.0
        %2083 = vmatpush1.msra.mxu0 0.0
        %2084 = vmatprep.subr.mxu0 0.0
        %2085 = vmatpush1.msra.mxu0 0.0
        %2086 = vmatprep.subr.mxu0 0.0
        %2087 = vmatpush1.msra.mxu0 0.0
        %2088 = vmatprep.subr.mxu0 0.0
        %2089 = vmatpush1.msra.mxu0 0.0
        %2090 = vmatprep.subr.mxu0 0.0
        %2091 = vmatpush1.msra.mxu0 0.0
        %2092 = vmatprep.subr.mxu0 0.0
        %2093 = vmatpush1.msra.mxu0 0.0
        %2094 = vmatprep.subr.mxu0 0.0
        %2095 = vmatpush1.msra.mxu0 0.0
        %2096 = vmatprep.subr.mxu0 0.0
        %2097 = vmatpush1.msra.mxu0 0.0
        %2098 = vmatprep.subr.mxu0 0.0
        %2099 = vmatpush1.msra.mxu0 0.0
        %2100 = vmatprep.subr.mxu0 0.0
        %2101 = vmatpush1.msra.mxu0 0.0
        %2102 = vmatprep.subr.mxu0 0.0
        %2103 = vmatpush1.msra.mxu0 0.0
        %2104 = vmatprep.subr.mxu0 0.0
        %2105 = vmatpush1.msra.mxu0 0.0
        %2106 = vmatprep.subr.mxu0 0.0
        %2107 = vmatpush1.msra.mxu0 0.0
        %2108 = vmatprep.subr.mxu0 0.0
        %2109 = vmatpush1.msra.mxu0 0.0
        %2110 = vmatprep.subr.mxu0 0.0
        %2111 = vmatpush1.msra.mxu0 0.0
        %2112 = vmatprep.subr.mxu0 0.0
        %2113 = vmatpush1.msra.mxu0 0.0
        %2114 = vmatprep.subr.mxu0 0.0
        %2115 = vmatpush1.msra.mxu0 0.0
        %2116 = vmatprep.subr.mxu0 0.0
        %2117 = vmatpush1.msra.mxu0 0.0
        %2118 = vmatprep.subr.mxu0 0.0
        %2119 = vmatpush1.msra.mxu0 0.0
        %2120 = vmatprep.subr.mxu0 0.0
        %2121 = vmatpush1.msra.mxu0 0.0
        %2122 = vmatprep.subr.mxu0 0.0
        %2123 = vmatpush1.msra.mxu0 0.0
        %2124 = vmatprep.subr.mxu0 0.0
        %2125 = vmatpush1.msra.mxu0 0.0
        %2126 = vmatprep.subr.mxu0 0.0
        %2127 = vmatpush1.msra.mxu0 0.0
        %2128 = vmatprep.subr.mxu0 0.0
        %2129 = vmatpush1.msra.mxu0 0.0
        %2130 = vmatprep.subr.mxu0 0.0
        %2131 = vmatpush1.msra.mxu0 0.0
        %2132 = vmatprep.subr.mxu0 0.0
        %2133 = vmatpush1.msra.mxu0 0.0
        %2134 = vmatprep.mubr.f32.mxu0 0.0
        %2135 = vmatmul.mubr.f32.gmra.mrb[0].mxu0 %v1196
        %v2136 = vpop.f32.mrb[0].mxu0
        %v2137 = vadd.f32 0.0, %v2136
        %v2138 = vpop.f32.mrb[0].mxu0
        %2139 = vmatprep.mubr.f32.mxu0 0.0
        %2140 = vmatmul.mubr.f32.gmra.mrb[0].mxu0 %v1198
        %v2141 = vpop.f32.mrb[0].mxu0
        %v2142 = vadd.f32 0.0, %v2141
        %v2143 = vpop.f32.mrb[0].mxu0
        %2144 = vmatprep.mubr.f32.mxu0 0.0
        %2145 = vmatmul.mubr.f32.gmra.mrb[0].mxu0 %v1200
        %v2146 = vpop.f32.mrb[0].mxu0
        %v2147 = vadd.f32 0.0, %v2146
        %v2148 = vpop.f32.mrb[0].mxu0
        %2149 = vmatprep.mubr.f32.mxu0 0.0
        %2150 = vmatmul.mubr.f32.gmra.mrb[0].mxu0 %v1202
        %v2151 = vpop.f32.mrb[0].mxu0
        %v2152 = vadd.f32 0.0, %v2151
        %v2153 = vpop.f32.mrb[0].mxu0
        %2154 = vmatprep.mubr.f32.mxu0 0.0
        %2155 = vmatmul.mubr.f32.gmra.mrb[0].mxu0 %v1204
        %v2156 = vpop.f32.mrb[0].mxu0
        %v2157 = vadd.f32 0.0, %v2156
        %v2158 = vpop.f32.mrb[0].mxu0
        %2159 = vmatprep.mubr.f32.mxu0 0.0
        %2160 = vmatmul.mubr.f32.gmra.mrb[0].mxu0 %v1206
        %v2161 = vpop.f32.mrb[0].mxu0
        %v2162 = vadd.f32 0.0, %v2161
        %v2163 = vpop.f32.mrb[0].mxu0
        %2164 = vmatprep.mubr.f32.mxu0 0.0
        %2165 = vmatmul.mubr.f32.gmra.mrb[0].mxu0 %v1208
        %v2166 = vpop.f32.mrb[0].mxu0
        %v2167 = vadd.f32 0.0, %v2166
        %v2168 = vpop.f32.mrb[0].mxu0
        %2169 = vmatprep.mubr.f32.mxu0 0.0
        %2170 = vmatmul.mubr.f32.gmra.mrb[0].mxu0 %v1210
        %v2171 = vpop.f32.mrb[0].mxu0
        %v2172 = vadd.f32 0.0, %v2171
        %v2173 = vpop.f32.mrb[0].mxu0
        %2174 = vmatprep.mubr.f32.mxu0 0.0
        %2175 = vmatmul.mubr.f32.gmra.mrb[0].mxu0 %v1212
        %v2176 = vpop.f32.mrb[0].mxu0
        %v2177 = vadd.f32 0.0, %v2176
        %v2178 = vpop.f32.mrb[0].mxu0
        %2179 = vmatprep.mubr.f32.mxu0 0.0
        %2180 = vmatmul.mubr.f32.gmra.mrb[0].mxu0 %v1214
        %v2181 = vpop.f32.mrb[0].mxu0
        %v2182 = vadd.f32 0.0, %v2181
        %v2183 = vpop.f32.mrb[0].mxu0
        %2184 = vmatprep.mubr.f32.mxu0 0.0
        %2185 = vmatmul.mubr.f32.gmra.mrb[0].mxu0 %v1216
        %v2186 = vpop.f32.mrb[0].mxu0
        %v2187 = vadd.f32 0.0, %v2186
        %v2188 = vpop.f32.mrb[0].mxu0
        %2189 = vmatprep.mubr.f32.mxu0 0.0
        %2190 = vmatmul.mubr.f32.gmra.mrb[0].mxu0 %v1218
        %v2191 = vpop.f32.mrb[0].mxu0
        %v2192 = vadd.f32 0.0, %v2191
        %v2193 = vpop.f32.mrb[0].mxu0
        %2194 = vmatprep.mubr.f32.mxu0 0.0
        %2195 = vmatmul.mubr.f32.gmra.mrb[0].mxu0 %v1220
        %v2196 = vpop.f32.mrb[0].mxu0
        %v2197 = vadd.f32 0.0, %v2196
        %v2198 = vpop.f32.mrb[0].mxu0
        %2199 = vmatprep.mubr.f32.mxu0 0.0
        %2200 = vmatmul.mubr.f32.gmra.mrb[0].mxu0 %v1222
        %v2201 = vpop.f32.mrb[0].mxu0
        %v2202 = vadd.f32 0.0, %v2201
        %v2203 = vpop.f32.mrb[0].mxu0
        %2204 = vmatprep.mubr.f32.mxu0 0.0
        %2205 = vmatmul.mubr.f32.gmra.mrb[0].mxu0 %v1224
        %v2206 = vpop.f32.mrb[0].mxu0
        %v2207 = vadd.f32 0.0, %v2206
        %v2208 = vpop.f32.mrb[0].mxu0
        %2209 = vmatprep.mubr.f32.mxu0 0.0
        %2210 = vmatmul.mubr.f32.gmra.mrb[0].mxu0 %v1226
        %v2211 = vpop.f32.mrb[0].mxu0
        %v2212 = vadd.f32 0.0, %v2211
        %v2213 = vpop.f32.mrb[0].mxu0
        %2214 = vmatprep.mubr.f32.mxu0 0.0
        %2215 = vmatmul.mubr.f32.gmra.mrb[0].mxu0 %v1228
        %v2216 = vpop.f32.mrb[0].mxu0
        %v2217 = vadd.f32 0.0, %v2216
        %v2218 = vpop.f32.mrb[0].mxu0
        %2219 = vmatprep.mubr.f32.mxu0 0.0
        %2220 = vmatmul.mubr.f32.gmra.mrb[0].mxu0 %v1230
        %v2221 = vpop.f32.mrb[0].mxu0
        %v2222 = vadd.f32 0.0, %v2221
        %v2223 = vpop.f32.mrb[0].mxu0
        %2224 = vmatprep.mubr.f32.mxu0 0.0
        %2225 = vmatmul.mubr.f32.gmra.mrb[0].mxu0 %v1232
        %v2226 = vpop.f32.mrb[0].mxu0
        %v2227 = vadd.f32 0.0, %v2226
        %v2228 = vpop.f32.mrb[0].mxu0
        %2229 = vmatprep.mubr.f32.mxu0 0.0
        %2230 = vmatmul.mubr.f32.gmra.mrb[0].mxu0 %v1234
        %v2231 = vpop.f32.mrb[0].mxu0
        %v2232 = vadd.f32 0.0, %v2231
        %v2233 = vpop.f32.mrb[0].mxu0
        %2234 = vmatprep.mubr.f32.mxu0 0.0
        %2235 = vmatmul.mubr.f32.gmra.mrb[0].mxu0 %v1236
        %v2236 = vpop.f32.mrb[0].mxu0
        %v2237 = vadd.f32 0.0, %v2236
        %v2238 = vpop.f32.mrb[0].mxu0
        %2239 = vmatprep.mubr.f32.mxu0 0.0
        %2240 = vmatmul.mubr.f32.gmra.mrb[0].mxu0 %v1238
        %v2241 = vpop.f32.mrb[0].mxu0
        %v2242 = vadd.f32 0.0, %v2241
        %v2243 = vpop.f32.mrb[0].mxu0
        %2244 = vmatprep.mubr.f32.mxu0 0.0
        %2245 = vmatmul.mubr.f32.gmra.mrb[0].mxu0 %v1240
        %v2246 = vpop.f32.mrb[0].mxu0
        %v2247 = vadd.f32 0.0, %v2246
        %v2248 = vpop.f32.mrb[0].mxu0
        %2249 = vmatprep.mubr.f32.mxu0 0.0
        %2250 = vmatmul.mubr.f32.gmra.mrb[0].mxu0 %v1242
        %v2251 = vpop.f32.mrb[0].mxu0
        %v2252 = vadd.f32 0.0, %v2251
        %v2253 = vpop.f32.mrb[0].mxu0
        %2254 = vmatprep.mubr.f32.mxu0 0.0
        %2255 = vmatmul.mubr.f32.gmra.mrb[0].mxu0 %v1244
        %v2256 = vpop.f32.mrb[0].mxu0
        %v2257 = vadd.f32 0.0, %v2256
        %v2258 = vpop.f32.mrb[0].mxu0
        %2259 = vmatprep.mubr.f32.mxu0 0.0
        %2260 = vmatmul.mubr.f32.gmra.mrb[0].mxu0 %v1246
        %v2261 = vpop.f32.mrb[0].mxu0
        %v2262 = vadd.f32 0.0, %v2261
        %v2263 = vpop.f32.mrb[0].mxu0
        %2264 = vmatprep.mubr.f32.mxu0 0.0
        %2265 = vmatmul.mubr.f32.gmra.mrb[0].mxu0 %v1248
        %v2266 = vpop.f32.mrb[0].mxu0
        %v2267 = vadd.f32 0.0, %v2266
        %v2268 = vpop.f32.mrb[0].mxu0
        %2269 = vmatprep.mubr.f32.mxu0 0.0
        %2270 = vmatmul.mubr.f32.gmra.mrb[0].mxu0 %v1250
        %v2271 = vpop.f32.mrb[0].mxu0
        %v2272 = vadd.f32 0.0, %v2271
        %v2273 = vpop.f32.mrb[0].mxu0
        %2274 = vmatprep.mubr.f32.mxu0 0.0
        %2275 = vmatmul.mubr.f32.gmra.mrb[0].mxu0 %v1252
        %v2276 = vpop.f32.mrb[0].mxu0
        %v2277 = vadd.f32 0.0, %v2276
        %v2278 = vpop.f32.mrb[0].mxu0
        %2279 = vmatprep.mubr.f32.mxu0 0.0
        %2280 = vmatmul.mubr.f32.gmra.mrb[0].mxu0 %v1254
        %v2281 = vpop.f32.mrb[0].mxu0
        %v2282 = vadd.f32 0.0, %v2281
        %v2283 = vpop.f32.mrb[0].mxu0
        %2284 = vmatprep.mubr.f32.mxu0 0.0
        %2285 = vmatmul.mubr.f32.gmra.mrb[0].mxu0 %v2063
        %v2286 = vpop.f32.mrb[0].mxu0
        %v2287 = vadd.f32 0.0, %v2286
        %v2288 = vpop.f32.mrb[0].mxu0
        %2289 = vmatprep.mubr.f32.mxu0 0.0
        %2290 = vmatmul.mubr.f32.gmra.mrb[0].mxu0 %v2065
        %v2291 = vpop.f32.mrb[0].mxu0
        %v2292 = vadd.f32 0.0, %v2291
        %v2293 = vpop.f32.mrb[0].mxu0
        %2294 = vdwg.mxu0
        %v2295 = vadd.f32 %v2024, %v2137
        %v2296 = vadd.f32 %v2025, %v2142
        %v2297 = vadd.f32 %v2026, %v2147
        %v2298 = vadd.f32 %v2027, %v2152
        %v2299 = vadd.f32 %v2028, %v2157
        %v2300 = vadd.f32 %v2029, %v2162
        %v2301 = vadd.f32 %v2030, %v2167
        %v2302 = vadd.f32 %v2031, %v2172
        %v2303 = vadd.f32 %v2032, %v2177
        %v2304 = vadd.f32 %v2033, %v2182
        %v2305 = vadd.f32 %v2034, %v2187
        %v2306 = vadd.f32 %v2035, %v2192
        %v2307 = vadd.f32 %v2036, %v2197
        %v2308 = vadd.f32 %v2037, %v2202
        %v2309 = vadd.f32 %v2038, %v2207
        %v2310 = vadd.f32 %v2039, %v2212
        %v2311 = vadd.f32 %v2040, %v2217
        %v2312 = vadd.f32 %v2041, %v2222
        %v2313 = vadd.f32 %v2042, %v2227
        %v2314 = vadd.f32 %v2043, %v2232
        %v2315 = vadd.f32 %v2044, %v2237
        %v2316 = vadd.f32 %v2045, %v2242
        %v2317 = vadd.f32 %v2046, %v2247
        %v2318 = vadd.f32 %v2047, %v2252
        %v2319 = vadd.f32 %v2048, %v2257
        %v2320 = vadd.f32 %v2049, %v2262
        %v2321 = vadd.f32 %v2050, %v2267
        %v2322 = vadd.f32 %v2051, %v2272
        %v2323 = vadd.f32 %v2052, %v2277
        %v2324 = vadd.f32 %v2053, %v2282
        %v2325 = vadd.f32 %v2054, %v2287
        %v2326 = vadd.f32 %v2055, %v2292
        %s2327 = scalar_lea.vmem %s1, 24
        %v2328 = vld [vmem:[%s2327] sm:$0xf]
        %v2330 = vsel %vm249, %v389, 0
        %v2333 = vsel %vm249, %v390, 0
        %v2336 = vsel %vm588, %v2328, 0
        %2338 = vmatprep.subr.mxu0 0.0
        %2339 = vmatpush1.msra.mxu0 %v2336
        %2340 = vmatprep.subr.mxu0 0.0
        %2341 = vmatpush1.msra.mxu0 0.0
        %2342 = vmatprep.subr.mxu0 0.0
        %2343 = vmatpush1.msra.mxu0 0.0
        %2344 = vmatprep.subr.mxu0 0.0
        %2345 = vmatpush1.msra.mxu0 0.0
        %2346 = vmatprep.subr.mxu0 0.0
        %2347 = vmatpush1.msra.mxu0 0.0
        %2348 = vmatprep.subr.mxu0 0.0
        %2349 = vmatpush1.msra.mxu0 0.0
        %2350 = vmatprep.subr.mxu0 0.0
        %2351 = vmatpush1.msra.mxu0 0.0
        %2352 = vmatprep.subr.mxu0 0.0
        %2353 = vmatpush1.msra.mxu0 0.0
        %2354 = vmatprep.subr.mxu0 0.0
        %2355 = vmatpush1.msra.mxu0 0.0
        %2356 = vmatprep.subr.mxu0 0.0
        %2357 = vmatpush1.msra.mxu0 0.0
        %2358 = vmatprep.subr.mxu0 0.0
        %2359 = vmatpush1.msra.mxu0 0.0
        %2360 = vmatprep.subr.mxu0 0.0
        %2361 = vmatpush1.msra.mxu0 0.0
        %2362 = vmatprep.subr.mxu0 0.0
        %2363 = vmatpush1.msra.mxu0 0.0
        %2364 = vmatprep.subr.mxu0 0.0
        %2365 = vmatpush1.msra.mxu0 0.0
        %2366 = vmatprep.subr.mxu0 0.0
        %2367 = vmatpush1.msra.mxu0 0.0
        %2368 = vmatprep.subr.mxu0 0.0
        %2369 = vmatpush1.msra.mxu0 0.0
        %2370 = vmatprep.subr.mxu0 0.0
        %2371 = vmatpush1.msra.mxu0 0.0
        %2372 = vmatprep.subr.mxu0 0.0
        %2373 = vmatpush1.msra.mxu0 0.0
        %2374 = vmatprep.subr.mxu0 0.0
        %2375 = vmatpush1.msra.mxu0 0.0
        %2376 = vmatprep.subr.mxu0 0.0
        %2377 = vmatpush1.msra.mxu0 0.0
        %2378 = vmatprep.subr.mxu0 0.0
        %2379 = vmatpush1.msra.mxu0 0.0
        %2380 = vmatprep.subr.mxu0 0.0
        %2381 = vmatpush1.msra.mxu0 0.0
        %2382 = vmatprep.subr.mxu0 0.0
        %2383 = vmatpush1.msra.mxu0 0.0
        %2384 = vmatprep.subr.mxu0 0.0
        %2385 = vmatpush1.msra.mxu0 0.0
        %2386 = vmatprep.subr.mxu0 0.0
        %2387 = vmatpush1.msra.mxu0 0.0
        %2388 = vmatprep.subr.mxu0 0.0
        %2389 = vmatpush1.msra.mxu0 0.0
        %2390 = vmatprep.subr.mxu0 0.0
        %2391 = vmatpush1.msra.mxu0 0.0
        %2392 = vmatprep.subr.mxu0 0.0
        %2393 = vmatpush1.msra.mxu0 0.0
        %2394 = vmatprep.subr.mxu0 0.0
        %2395 = vmatpush1.msra.mxu0 0.0
        %2396 = vmatprep.subr.mxu0 0.0
        %2397 = vmatpush1.msra.mxu0 0.0
        %2398 = vmatprep.subr.mxu0 0.0
        %2399 = vmatpush1.msra.mxu0 0.0
        %2400 = vmatprep.subr.mxu0 0.0
        %2401 = vmatpush1.msra.mxu0 0.0
        %2402 = vmatprep.mubr.f32.mxu0 0.0
        %2403 = vmatmul.mubr.f32.gmra.mrb[0].mxu0 %v825
        %v2404 = vpop.f32.mrb[0].mxu0
        %v2405 = vadd.f32 0.0, %v2404
        %v2406 = vpop.f32.mrb[0].mxu0
        %2407 = vmatprep.mubr.f32.mxu0 0.0
        %2408 = vmatmul.mubr.f32.gmra.mrb[0].mxu0 %v827
        %v2409 = vpop.f32.mrb[0].mxu0
        %v2410 = vadd.f32 0.0, %v2409
        %v2411 = vpop.f32.mrb[0].mxu0
        %2412 = vmatprep.mubr.f32.mxu0 0.0
        %2413 = vmatmul.mubr.f32.gmra.mrb[0].mxu0 %v829
        %v2414 = vpop.f32.mrb[0].mxu0
        %v2415 = vadd.f32 0.0, %v2414
        %v2416 = vpop.f32.mrb[0].mxu0
        %2417 = vmatprep.mubr.f32.mxu0 0.0
        %2418 = vmatmul.mubr.f32.gmra.mrb[0].mxu0 %v831
        %v2419 = vpop.f32.mrb[0].mxu0
        %v2420 = vadd.f32 0.0, %v2419
        %v2421 = vpop.f32.mrb[0].mxu0
        %2422 = vmatprep.mubr.f32.mxu0 0.0
        %2423 = vmatmul.mubr.f32.gmra.mrb[0].mxu0 %v833
        %v2424 = vpop.f32.mrb[0].mxu0
        %v2425 = vadd.f32 0.0, %v2424
        %v2426 = vpop.f32.mrb[0].mxu0
        %2427 = vmatprep.mubr.f32.mxu0 0.0
        %2428 = vmatmul.mubr.f32.gmra.mrb[0].mxu0 %v835
        %v2429 = vpop.f32.mrb[0].mxu0
        %v2430 = vadd.f32 0.0, %v2429
        %v2431 = vpop.f32.mrb[0].mxu0
        %2432 = vmatprep.mubr.f32.mxu0 0.0
        %2433 = vmatmul.mubr.f32.gmra.mrb[0].mxu0 %v837
        %v2434 = vpop.f32.mrb[0].mxu0
        %v2435 = vadd.f32 0.0, %v2434
        %v2436 = vpop.f32.mrb[0].mxu0
        %2437 = vmatprep.mubr.f32.mxu0 0.0
        %2438 = vmatmul.mubr.f32.gmra.mrb[0].mxu0 %v839
        %v2439 = vpop.f32.mrb[0].mxu0
        %v2440 = vadd.f32 0.0, %v2439
        %v2441 = vpop.f32.mrb[0].mxu0
        %2442 = vmatprep.mubr.f32.mxu0 0.0
        %2443 = vmatmul.mubr.f32.gmra.mrb[0].mxu0 %v841
        %v2444 = vpop.f32.mrb[0].mxu0
        %v2445 = vadd.f32 0.0, %v2444
        %v2446 = vpop.f32.mrb[0].mxu0
        %2447 = vmatprep.mubr.f32.mxu0 0.0
        %2448 = vmatmul.mubr.f32.gmra.mrb[0].mxu0 %v843
        %v2449 = vpop.f32.mrb[0].mxu0
        %v2450 = vadd.f32 0.0, %v2449
        %v2451 = vpop.f32.mrb[0].mxu0
        %2452 = vmatprep.mubr.f32.mxu0 0.0
        %2453 = vmatmul.mubr.f32.gmra.mrb[0].mxu0 %v845
        %v2454 = vpop.f32.mrb[0].mxu0
        %v2455 = vadd.f32 0.0, %v2454
        %v2456 = vpop.f32.mrb[0].mxu0
        %2457 = vmatprep.mubr.f32.mxu0 0.0
        %2458 = vmatmul.mubr.f32.gmra.mrb[0].mxu0 %v847
        %v2459 = vpop.f32.mrb[0].mxu0
        %v2460 = vadd.f32 0.0, %v2459
        %v2461 = vpop.f32.mrb[0].mxu0
        %2462 = vmatprep.mubr.f32.mxu0 0.0
        %2463 = vmatmul.mubr.f32.gmra.mrb[0].mxu0 %v849
        %v2464 = vpop.f32.mrb[0].mxu0
        %v2465 = vadd.f32 0.0, %v2464
        %v2466 = vpop.f32.mrb[0].mxu0
        %2467 = vmatprep.mubr.f32.mxu0 0.0
        %2468 = vmatmul.mubr.f32.gmra.mrb[0].mxu0 %v851
        %v2469 = vpop.f32.mrb[0].mxu0
        %v2470 = vadd.f32 0.0, %v2469
        %v2471 = vpop.f32.mrb[0].mxu0
        %2472 = vmatprep.mubr.f32.mxu0 0.0
        %2473 = vmatmul.mubr.f32.gmra.mrb[0].mxu0 %v853
        %v2474 = vpop.f32.mrb[0].mxu0
        %v2475 = vadd.f32 0.0, %v2474
        %v2476 = vpop.f32.mrb[0].mxu0
        %2477 = vmatprep.mubr.f32.mxu0 0.0
        %2478 = vmatmul.mubr.f32.gmra.mrb[0].mxu0 %v855
        %v2479 = vpop.f32.mrb[0].mxu0
        %v2480 = vadd.f32 0.0, %v2479
        %v2481 = vpop.f32.mrb[0].mxu0
        %2482 = vmatprep.mubr.f32.mxu0 0.0
        %2483 = vmatmul.mubr.f32.gmra.mrb[0].mxu0 %v857
        %v2484 = vpop.f32.mrb[0].mxu0
        %v2485 = vadd.f32 0.0, %v2484
        %v2486 = vpop.f32.mrb[0].mxu0
        %2487 = vmatprep.mubr.f32.mxu0 0.0
        %2488 = vmatmul.mubr.f32.gmra.mrb[0].mxu0 %v859
        %v2489 = vpop.f32.mrb[0].mxu0
        %v2490 = vadd.f32 0.0, %v2489
        %v2491 = vpop.f32.mrb[0].mxu0
        %2492 = vmatprep.mubr.f32.mxu0 0.0
        %2493 = vmatmul.mubr.f32.gmra.mrb[0].mxu0 %v861
        %v2494 = vpop.f32.mrb[0].mxu0
        %v2495 = vadd.f32 0.0, %v2494
        %v2496 = vpop.f32.mrb[0].mxu0
        %2497 = vmatprep.mubr.f32.mxu0 0.0
        %2498 = vmatmul.mubr.f32.gmra.mrb[0].mxu0 %v863
        %v2499 = vpop.f32.mrb[0].mxu0
        %v2500 = vadd.f32 0.0, %v2499
        %v2501 = vpop.f32.mrb[0].mxu0
        %2502 = vmatprep.mubr.f32.mxu0 0.0
        %2503 = vmatmul.mubr.f32.gmra.mrb[0].mxu0 %v865
        %v2504 = vpop.f32.mrb[0].mxu0
        %v2505 = vadd.f32 0.0, %v2504
        %v2506 = vpop.f32.mrb[0].mxu0
        %2507 = vmatprep.mubr.f32.mxu0 0.0
        %2508 = vmatmul.mubr.f32.gmra.mrb[0].mxu0 %v867
        %v2509 = vpop.f32.mrb[0].mxu0
        %v2510 = vadd.f32 0.0, %v2509
        %v2511 = vpop.f32.mrb[0].mxu0
        %2512 = vmatprep.mubr.f32.mxu0 0.0
        %2513 = vmatmul.mubr.f32.gmra.mrb[0].mxu0 %v869
        %v2514 = vpop.f32.mrb[0].mxu0
        %v2515 = vadd.f32 0.0, %v2514
        %v2516 = vpop.f32.mrb[0].mxu0
        %2517 = vmatprep.mubr.f32.mxu0 0.0
        %2518 = vmatmul.mubr.f32.gmra.mrb[0].mxu0 %v871
        %v2519 = vpop.f32.mrb[0].mxu0
        %v2520 = vadd.f32 0.0, %v2519
        %v2521 = vpop.f32.mrb[0].mxu0
        %2522 = vmatprep.mubr.f32.mxu0 0.0
        %2523 = vmatmul.mubr.f32.gmra.mrb[0].mxu0 %v873
        %v2524 = vpop.f32.mrb[0].mxu0
        %v2525 = vadd.f32 0.0, %v2524
        %v2526 = vpop.f32.mrb[0].mxu0
        %2527 = vmatprep.mubr.f32.mxu0 0.0
        %2528 = vmatmul.mubr.f32.gmra.mrb[0].mxu0 %v875
        %v2529 = vpop.f32.mrb[0].mxu0
        %v2530 = vadd.f32 0.0, %v2529
        %v2531 = vpop.f32.mrb[0].mxu0
        %2532 = vmatprep.mubr.f32.mxu0 0.0
        %2533 = vmatmul.mubr.f32.gmra.mrb[0].mxu0 %v877
        %v2534 = vpop.f32.mrb[0].mxu0
        %v2535 = vadd.f32 0.0, %v2534
        %v2536 = vpop.f32.mrb[0].mxu0
        %2537 = vmatprep.mubr.f32.mxu0 0.0
        %2538 = vmatmul.mubr.f32.gmra.mrb[0].mxu0 %v879
        %v2539 = vpop.f32.mrb[0].mxu0
        %v2540 = vadd.f32 0.0, %v2539
        %v2541 = vpop.f32.mrb[0].mxu0
        %2542 = vmatprep.mubr.f32.mxu0 0.0
        %2543 = vmatmul.mubr.f32.gmra.mrb[0].mxu0 %v1519
        %v2544 = vpop.f32.mrb[0].mxu0
        %v2545 = vadd.f32 0.0, %v2544
        %v2546 = vpop.f32.mrb[0].mxu0
        %2547 = vmatprep.mubr.f32.mxu0 0.0
        %2548 = vmatmul.mubr.f32.gmra.mrb[0].mxu0 %v1522
        %v2549 = vpop.f32.mrb[0].mxu0
        %v2550 = vadd.f32 0.0, %v2549
        %v2551 = vpop.f32.mrb[0].mxu0
        %2552 = vmatprep.mubr.f32.mxu0 0.0
        %2553 = vmatmul.mubr.f32.gmra.mrb[0].mxu0 %v2330
        %v2554 = vpop.f32.mrb[0].mxu0
        %v2555 = vadd.f32 0.0, %v2554
        %v2556 = vpop.f32.mrb[0].mxu0
        %2557 = vmatprep.mubr.f32.mxu0 0.0
        %2558 = vmatmul.mubr.f32.gmra.mrb[0].mxu0 %v2333
        %v2559 = vpop.f32.mrb[0].mxu0
        %v2560 = vadd.f32 0.0, %v2559
        %v2561 = vpop.f32.mrb[0].mxu0
        %2562 = vdwg.mxu0
        %v2563 = vadd.f32 %v2295, %v2405
        %v2564 = vadd.f32 %v2296, %v2410
        %v2565 = vadd.f32 %v2297, %v2415
        %v2566 = vadd.f32 %v2298, %v2420
        %v2567 = vadd.f32 %v2299, %v2425
        %v2568 = vadd.f32 %v2300, %v2430
        %v2569 = vadd.f32 %v2301, %v2435
        %v2570 = vadd.f32 %v2302, %v2440
        %v2571 = vadd.f32 %v2303, %v2445
        %v2572 = vadd.f32 %v2304, %v2450
        %v2573 = vadd.f32 %v2305, %v2455
        %v2574 = vadd.f32 %v2306, %v2460
        %v2575 = vadd.f32 %v2307, %v2465
        %v2576 = vadd.f32 %v2308, %v2470
        %v2577 = vadd.f32 %v2309, %v2475
        %v2578 = vadd.f32 %v2310, %v2480
        %v2579 = vadd.f32 %v2311, %v2485
        %v2580 = vadd.f32 %v2312, %v2490
        %v2581 = vadd.f32 %v2313, %v2495
        %v2582 = vadd.f32 %v2314, %v2500
        %v2583 = vadd.f32 %v2315, %v2505
        %v2584 = vadd.f32 %v2316, %v2510
        %v2585 = vadd.f32 %v2317, %v2515
        %v2586 = vadd.f32 %v2318, %v2520
        %v2587 = vadd.f32 %v2319, %v2525
        %v2588 = vadd.f32 %v2320, %v2530
        %v2589 = vadd.f32 %v2321, %v2535
        %v2590 = vadd.f32 %v2322, %v2540
        %v2591 = vadd.f32 %v2323, %v2545
        %v2592 = vadd.f32 %v2324, %v2550
        %v2593 = vadd.f32 %v2325, %v2555
        %v2594 = vadd.f32 %v2326, %v2560
        %v2596 = vrot.slane %v389, 1
        %v2597 = vrot.slane %v390, 1
        %v2598 = vsel %vm441, %v2596, %v2597
        %v2599 = vrot.slane %v391, 1
        %v2600 = vsel %vm441, %v2597, %v2599
        %s2601 = scalar_lea.vmem %s1, 28
        %v2602 = vld [vmem:[%s2601] sm:$0xf]
        %v2603 = vsel %vm249, %v2598, 0
        %v2605 = vsel %vm249, %v2600, 0
        %v2608 = vsel %vm588, %v2602, 0
        %2610 = vmatprep.subr.mxu0 0.0
        %2611 = vmatpush1.msra.mxu0 %v2608
        %2612 = vmatprep.subr.mxu0 0.0
        %2613 = vmatpush1.msra.mxu0 0.0
        %2614 = vmatprep.subr.mxu0 0.0
        %2615 = vmatpush1.msra.mxu0 0.0
        %2616 = vmatprep.subr.mxu0 0.0
        %2617 = vmatpush1.msra.mxu0 0.0
        %2618 = vmatprep.subr.mxu0 0.0
        %2619 = vmatpush1.msra.mxu0 0.0
        %2620 = vmatprep.subr.mxu0 0.0
        %2621 = vmatpush1.msra.mxu0 0.0
        %2622 = vmatprep.subr.mxu0 0.0
        %2623 = vmatpush1.msra.mxu0 0.0
        %2624 = vmatprep.subr.mxu0 0.0
        %2625 = vmatpush1.msra.mxu0 0.0
        %2626 = vmatprep.subr.mxu0 0.0
        %2627 = vmatpush1.msra.mxu0 0.0
        %2628 = vmatprep.subr.mxu0 0.0
        %2629 = vmatpush1.msra.mxu0 0.0
        %2630 = vmatprep.subr.mxu0 0.0
        %2631 = vmatpush1.msra.mxu0 0.0
        %2632 = vmatprep.subr.mxu0 0.0
        %2633 = vmatpush1.msra.mxu0 0.0
        %2634 = vmatprep.subr.mxu0 0.0
        %2635 = vmatpush1.msra.mxu0 0.0
        %2636 = vmatprep.subr.mxu0 0.0
        %2637 = vmatpush1.msra.mxu0 0.0
        %2638 = vmatprep.subr.mxu0 0.0
        %2639 = vmatpush1.msra.mxu0 0.0
        %2640 = vmatprep.subr.mxu0 0.0
        %2641 = vmatpush1.msra.mxu0 0.0
        %2642 = vmatprep.subr.mxu0 0.0
        %2643 = vmatpush1.msra.mxu0 0.0
        %2644 = vmatprep.subr.mxu0 0.0
        %2645 = vmatpush1.msra.mxu0 0.0
        %2646 = vmatprep.subr.mxu0 0.0
        %2647 = vmatpush1.msra.mxu0 0.0
        %2648 = vmatprep.subr.mxu0 0.0
        %2649 = vmatpush1.msra.mxu0 0.0
        %2650 = vmatprep.subr.mxu0 0.0
        %2651 = vmatpush1.msra.mxu0 0.0
        %2652 = vmatprep.subr.mxu0 0.0
        %2653 = vmatpush1.msra.mxu0 0.0
        %2654 = vmatprep.subr.mxu0 0.0
        %2655 = vmatpush1.msra.mxu0 0.0
        %2656 = vmatprep.subr.mxu0 0.0
        %2657 = vmatpush1.msra.mxu0 0.0
        %2658 = vmatprep.subr.mxu0 0.0
        %2659 = vmatpush1.msra.mxu0 0.0
        %2660 = vmatprep.subr.mxu0 0.0
        %2661 = vmatpush1.msra.mxu0 0.0
        %2662 = vmatprep.subr.mxu0 0.0
        %2663 = vmatpush1.msra.mxu0 0.0
        %2664 = vmatprep.subr.mxu0 0.0
        %2665 = vmatpush1.msra.mxu0 0.0
        %2666 = vmatprep.subr.mxu0 0.0
        %2667 = vmatpush1.msra.mxu0 0.0
        %2668 = vmatprep.subr.mxu0 0.0
        %2669 = vmatpush1.msra.mxu0 0.0
        %2670 = vmatprep.subr.mxu0 0.0
        %2671 = vmatpush1.msra.mxu0 0.0
        %2672 = vmatprep.subr.mxu0 0.0
        %2673 = vmatpush1.msra.mxu0 0.0
        %2674 = vmatprep.mubr.f32.mxu0 0.0
        %2675 = vmatmul.mubr.f32.gmra.mrb[0].mxu0 %v532
        %v2676 = vpop.f32.mrb[0].mxu0
        %v2677 = vadd.f32 0.0, %v2676
        %v2678 = vpop.f32.mrb[0].mxu0
        %2679 = vmatprep.mubr.f32.mxu0 0.0
        %2680 = vmatmul.mubr.f32.gmra.mrb[0].mxu0 %v534
        %v2681 = vpop.f32.mrb[0].mxu0
        %v2682 = vadd.f32 0.0, %v2681
        %v2683 = vpop.f32.mrb[0].mxu0
        %2684 = vmatprep.mubr.f32.mxu0 0.0
        %2685 = vmatmul.mubr.f32.gmra.mrb[0].mxu0 %v536
        %v2686 = vpop.f32.mrb[0].mxu0
        %v2687 = vadd.f32 0.0, %v2686
        %v2688 = vpop.f32.mrb[0].mxu0
        %2689 = vmatprep.mubr.f32.mxu0 0.0
        %2690 = vmatmul.mubr.f32.gmra.mrb[0].mxu0 %v538
        %v2691 = vpop.f32.mrb[0].mxu0
        %v2692 = vadd.f32 0.0, %v2691
        %v2693 = vpop.f32.mrb[0].mxu0
        %2694 = vmatprep.mubr.f32.mxu0 0.0
        %2695 = vmatmul.mubr.f32.gmra.mrb[0].mxu0 %v540
        %v2696 = vpop.f32.mrb[0].mxu0
        %v2697 = vadd.f32 0.0, %v2696
        %v2698 = vpop.f32.mrb[0].mxu0
        %2699 = vmatprep.mubr.f32.mxu0 0.0
        %2700 = vmatmul.mubr.f32.gmra.mrb[0].mxu0 %v542
        %v2701 = vpop.f32.mrb[0].mxu0
        %v2702 = vadd.f32 0.0, %v2701
        %v2703 = vpop.f32.mrb[0].mxu0
        %2704 = vmatprep.mubr.f32.mxu0 0.0
        %2705 = vmatmul.mubr.f32.gmra.mrb[0].mxu0 %v544
        %v2706 = vpop.f32.mrb[0].mxu0
        %v2707 = vadd.f32 0.0, %v2706
        %v2708 = vpop.f32.mrb[0].mxu0
        %2709 = vmatprep.mubr.f32.mxu0 0.0
        %2710 = vmatmul.mubr.f32.gmra.mrb[0].mxu0 %v546
        %v2711 = vpop.f32.mrb[0].mxu0
        %v2712 = vadd.f32 0.0, %v2711
        %v2713 = vpop.f32.mrb[0].mxu0
        %2714 = vmatprep.mubr.f32.mxu0 0.0
        %2715 = vmatmul.mubr.f32.gmra.mrb[0].mxu0 %v548
        %v2716 = vpop.f32.mrb[0].mxu0
        %v2717 = vadd.f32 0.0, %v2716
        %v2718 = vpop.f32.mrb[0].mxu0
        %2719 = vmatprep.mubr.f32.mxu0 0.0
        %2720 = vmatmul.mubr.f32.gmra.mrb[0].mxu0 %v550
        %v2721 = vpop.f32.mrb[0].mxu0
        %v2722 = vadd.f32 0.0, %v2721
        %v2723 = vpop.f32.mrb[0].mxu0
        %2724 = vmatprep.mubr.f32.mxu0 0.0
        %2725 = vmatmul.mubr.f32.gmra.mrb[0].mxu0 %v552
        %v2726 = vpop.f32.mrb[0].mxu0
        %v2727 = vadd.f32 0.0, %v2726
        %v2728 = vpop.f32.mrb[0].mxu0
        %2729 = vmatprep.mubr.f32.mxu0 0.0
        %2730 = vmatmul.mubr.f32.gmra.mrb[0].mxu0 %v554
        %v2731 = vpop.f32.mrb[0].mxu0
        %v2732 = vadd.f32 0.0, %v2731
        %v2733 = vpop.f32.mrb[0].mxu0
        %2734 = vmatprep.mubr.f32.mxu0 0.0
        %2735 = vmatmul.mubr.f32.gmra.mrb[0].mxu0 %v556
        %v2736 = vpop.f32.mrb[0].mxu0
        %v2737 = vadd.f32 0.0, %v2736
        %v2738 = vpop.f32.mrb[0].mxu0
        %2739 = vmatprep.mubr.f32.mxu0 0.0
        %2740 = vmatmul.mubr.f32.gmra.mrb[0].mxu0 %v558
        %v2741 = vpop.f32.mrb[0].mxu0
        %v2742 = vadd.f32 0.0, %v2741
        %v2743 = vpop.f32.mrb[0].mxu0
        %2744 = vmatprep.mubr.f32.mxu0 0.0
        %2745 = vmatmul.mubr.f32.gmra.mrb[0].mxu0 %v560
        %v2746 = vpop.f32.mrb[0].mxu0
        %v2747 = vadd.f32 0.0, %v2746
        %v2748 = vpop.f32.mrb[0].mxu0
        %2749 = vmatprep.mubr.f32.mxu0 0.0
        %2750 = vmatmul.mubr.f32.gmra.mrb[0].mxu0 %v562
        %v2751 = vpop.f32.mrb[0].mxu0
        %v2752 = vadd.f32 0.0, %v2751
        %v2753 = vpop.f32.mrb[0].mxu0
        %2754 = vmatprep.mubr.f32.mxu0 0.0
        %2755 = vmatmul.mubr.f32.gmra.mrb[0].mxu0 %v564
        %v2756 = vpop.f32.mrb[0].mxu0
        %v2757 = vadd.f32 0.0, %v2756
        %v2758 = vpop.f32.mrb[0].mxu0
        %2759 = vmatprep.mubr.f32.mxu0 0.0
        %2760 = vmatmul.mubr.f32.gmra.mrb[0].mxu0 %v566
        %v2761 = vpop.f32.mrb[0].mxu0
        %v2762 = vadd.f32 0.0, %v2761
        %v2763 = vpop.f32.mrb[0].mxu0
        %2764 = vmatprep.mubr.f32.mxu0 0.0
        %2765 = vmatmul.mubr.f32.gmra.mrb[0].mxu0 %v568
        %v2766 = vpop.f32.mrb[0].mxu0
        %v2767 = vadd.f32 0.0, %v2766
        %v2768 = vpop.f32.mrb[0].mxu0
        %2769 = vmatprep.mubr.f32.mxu0 0.0
        %2770 = vmatmul.mubr.f32.gmra.mrb[0].mxu0 %v570
        %v2771 = vpop.f32.mrb[0].mxu0
        %v2772 = vadd.f32 0.0, %v2771
        %v2773 = vpop.f32.mrb[0].mxu0
        %2774 = vmatprep.mubr.f32.mxu0 0.0
        %2775 = vmatmul.mubr.f32.gmra.mrb[0].mxu0 %v572
        %v2776 = vpop.f32.mrb[0].mxu0
        %v2777 = vadd.f32 0.0, %v2776
        %v2778 = vpop.f32.mrb[0].mxu0
        %2779 = vmatprep.mubr.f32.mxu0 0.0
        %2780 = vmatmul.mubr.f32.gmra.mrb[0].mxu0 %v574
        %v2781 = vpop.f32.mrb[0].mxu0
        %v2782 = vadd.f32 0.0, %v2781
        %v2783 = vpop.f32.mrb[0].mxu0
        %2784 = vmatprep.mubr.f32.mxu0 0.0
        %2785 = vmatmul.mubr.f32.gmra.mrb[0].mxu0 %v576
        %v2786 = vpop.f32.mrb[0].mxu0
        %v2787 = vadd.f32 0.0, %v2786
        %v2788 = vpop.f32.mrb[0].mxu0
        %2789 = vmatprep.mubr.f32.mxu0 0.0
        %2790 = vmatmul.mubr.f32.gmra.mrb[0].mxu0 %v578
        %v2791 = vpop.f32.mrb[0].mxu0
        %v2792 = vadd.f32 0.0, %v2791
        %v2793 = vpop.f32.mrb[0].mxu0
        %2794 = vmatprep.mubr.f32.mxu0 0.0
        %2795 = vmatmul.mubr.f32.gmra.mrb[0].mxu0 %v580
        %v2796 = vpop.f32.mrb[0].mxu0
        %v2797 = vadd.f32 0.0, %v2796
        %v2798 = vpop.f32.mrb[0].mxu0
        %2799 = vmatprep.mubr.f32.mxu0 0.0
        %2800 = vmatmul.mubr.f32.gmra.mrb[0].mxu0 %v582
        %v2801 = vpop.f32.mrb[0].mxu0
        %v2802 = vadd.f32 0.0, %v2801
        %v2803 = vpop.f32.mrb[0].mxu0
        %2804 = vmatprep.mubr.f32.mxu0 0.0
        %2805 = vmatmul.mubr.f32.gmra.mrb[0].mxu0 %v584
        %v2806 = vpop.f32.mrb[0].mxu0
        %v2807 = vadd.f32 0.0, %v2806
        %v2808 = vpop.f32.mrb[0].mxu0
        %2809 = vmatprep.mubr.f32.mxu0 0.0
        %2810 = vmatmul.mubr.f32.gmra.mrb[0].mxu0 %v586
        %v2811 = vpop.f32.mrb[0].mxu0
        %v2812 = vadd.f32 0.0, %v2811
        %v2813 = vpop.f32.mrb[0].mxu0
        %2814 = vmatprep.mubr.f32.mxu0 0.0
        %2815 = vmatmul.mubr.f32.gmra.mrb[0].mxu0 %v1792
        %v2816 = vpop.f32.mrb[0].mxu0
        %v2817 = vadd.f32 0.0, %v2816
        %v2818 = vpop.f32.mrb[0].mxu0
        %2819 = vmatprep.mubr.f32.mxu0 0.0
        %2820 = vmatmul.mubr.f32.gmra.mrb[0].mxu0 %v1794
        %v2821 = vpop.f32.mrb[0].mxu0
        %v2822 = vadd.f32 0.0, %v2821
        %v2823 = vpop.f32.mrb[0].mxu0
        %2824 = vmatprep.mubr.f32.mxu0 0.0
        %2825 = vmatmul.mubr.f32.gmra.mrb[0].mxu0 %v2603
        %v2826 = vpop.f32.mrb[0].mxu0
        %v2827 = vadd.f32 0.0, %v2826
        %v2828 = vpop.f32.mrb[0].mxu0
        %2829 = vmatprep.mubr.f32.mxu0 0.0
        %2830 = vmatmul.mubr.f32.gmra.mrb[0].mxu0 %v2605
        %v2831 = vpop.f32.mrb[0].mxu0
        %v2832 = vadd.f32 0.0, %v2831
        %v2833 = vpop.f32.mrb[0].mxu0
        %2834 = vdwg.mxu0
        %v2835 = vadd.f32 %v2563, %v2677
        %v2836 = vadd.f32 %v2564, %v2682
        %v2837 = vadd.f32 %v2565, %v2687
        %v2838 = vadd.f32 %v2566, %v2692
        %v2839 = vadd.f32 %v2567, %v2697
        %v2840 = vadd.f32 %v2568, %v2702
        %v2841 = vadd.f32 %v2569, %v2707
        %v2842 = vadd.f32 %v2570, %v2712
        %v2843 = vadd.f32 %v2571, %v2717
        %v2844 = vadd.f32 %v2572, %v2722
        %v2845 = vadd.f32 %v2573, %v2727
        %v2846 = vadd.f32 %v2574, %v2732
        %v2847 = vadd.f32 %v2575, %v2737
        %v2848 = vadd.f32 %v2576, %v2742
        %v2849 = vadd.f32 %v2577, %v2747
        %v2850 = vadd.f32 %v2578, %v2752
        %v2851 = vadd.f32 %v2579, %v2757
        %v2852 = vadd.f32 %v2580, %v2762
        %v2853 = vadd.f32 %v2581, %v2767
        %v2854 = vadd.f32 %v2582, %v2772
        %v2855 = vadd.f32 %v2583, %v2777
        %v2856 = vadd.f32 %v2584, %v2782
        %v2857 = vadd.f32 %v2585, %v2787
        %v2858 = vadd.f32 %v2586, %v2792
        %v2859 = vadd.f32 %v2587, %v2797
        %v2860 = vadd.f32 %v2588, %v2802
        %v2861 = vadd.f32 %v2589, %v2807
        %v2862 = vadd.f32 %v2590, %v2812
        %v2863 = vadd.f32 %v2591, %v2817
        %v2864 = vadd.f32 %v2592, %v2822
        %v2865 = vadd.f32 %v2593, %v2827
        %v2866 = vadd.f32 %v2594, %v2832
        %v2867 = vrot.slane %v389, 2
        %v2868 = vrot.slane %v390, 2
        %v2869 = vsel %vm1109, %v2867, %v2868
        %v2870 = vrot.slane %v391, 2
        %v2871 = vsel %vm1109, %v2868, %v2870
        %s2872 = scalar_lea.vmem %s1, 32
        %v2873 = vld [vmem:[%s2872] sm:$0xf]
        %v2874 = vsel %vm249, %v2869, 0
        %v2876 = vsel %vm249, %v2871, 0
        %v2879 = vsel %vm588, %v2873, 0
        %2881 = vmatprep.subr.mxu0 0.0
        %2882 = vmatpush1.msra.mxu0 %v2879
        %2883 = vmatprep.subr.mxu0 0.0
        %2884 = vmatpush1.msra.mxu0 0.0
        %2885 = vmatprep.subr.mxu0 0.0
        %2886 = vmatpush1.msra.mxu0 0.0
        %2887 = vmatprep.subr.mxu0 0.0
        %2888 = vmatpush1.msra.mxu0 0.0
        %2889 = vmatprep.subr.mxu0 0.0
        %2890 = vmatpush1.msra.mxu0 0.0
        %2891 = vmatprep.subr.mxu0 0.0
        %2892 = vmatpush1.msra.mxu0 0.0
        %2893 = vmatprep.subr.mxu0 0.0
        %2894 = vmatpush1.msra.mxu0 0.0
        %2895 = vmatprep.subr.mxu0 0.0
        %2896 = vmatpush1.msra.mxu0 0.0
        %2897 = vmatprep.subr.mxu0 0.0
        %2898 = vmatpush1.msra.mxu0 0.0
        %2899 = vmatprep.subr.mxu0 0.0
        %2900 = vmatpush1.msra.mxu0 0.0
        %2901 = vmatprep.subr.mxu0 0.0
        %2902 = vmatpush1.msra.mxu0 0.0
        %2903 = vmatprep.subr.mxu0 0.0
        %2904 = vmatpush1.msra.mxu0 0.0
        %2905 = vmatprep.subr.mxu0 0.0
        %2906 = vmatpush1.msra.mxu0 0.0
        %2907 = vmatprep.subr.mxu0 0.0
        %2908 = vmatpush1.msra.mxu0 0.0
        %2909 = vmatprep.subr.mxu0 0.0
        %2910 = vmatpush1.msra.mxu0 0.0
        %2911 = vmatprep.subr.mxu0 0.0
        %2912 = vmatpush1.msra.mxu0 0.0
        %2913 = vmatprep.subr.mxu0 0.0
        %2914 = vmatpush1.msra.mxu0 0.0
        %2915 = vmatprep.subr.mxu0 0.0
        %2916 = vmatpush1.msra.mxu0 0.0
        %2917 = vmatprep.subr.mxu0 0.0
        %2918 = vmatpush1.msra.mxu0 0.0
        %2919 = vmatprep.subr.mxu0 0.0
        %2920 = vmatpush1.msra.mxu0 0.0
        %2921 = vmatprep.subr.mxu0 0.0
        %2922 = vmatpush1.msra.mxu0 0.0
        %2923 = vmatprep.subr.mxu0 0.0
        %2924 = vmatpush1.msra.mxu0 0.0
        %2925 = vmatprep.subr.mxu0 0.0
        %2926 = vmatpush1.msra.mxu0 0.0
        %2927 = vmatprep.subr.mxu0 0.0
        %2928 = vmatpush1.msra.mxu0 0.0
        %2929 = vmatprep.subr.mxu0 0.0
        %2930 = vmatpush1.msra.mxu0 0.0
        %2931 = vmatprep.subr.mxu0 0.0
        %2932 = vmatpush1.msra.mxu0 0.0
        %2933 = vmatprep.subr.mxu0 0.0
        %2934 = vmatpush1.msra.mxu0 0.0
        %2935 = vmatprep.subr.mxu0 0.0
        %2936 = vmatpush1.msra.mxu0 0.0
        %2937 = vmatprep.subr.mxu0 0.0
        %2938 = vmatpush1.msra.mxu0 0.0
        %2939 = vmatprep.subr.mxu0 0.0
        %2940 = vmatpush1.msra.mxu0 0.0
        %2941 = vmatprep.subr.mxu0 0.0
        %2942 = vmatpush1.msra.mxu0 0.0
        %2943 = vmatprep.subr.mxu0 0.0
        %2944 = vmatpush1.msra.mxu0 0.0
        %2945 = vmatprep.mubr.f32.mxu0 0.0
        %2946 = vmatmul.mubr.f32.gmra.mrb[0].mxu0 %v1200
        %v2947 = vpop.f32.mrb[0].mxu0
        %v2948 = vadd.f32 0.0, %v2947
        %v2949 = vpop.f32.mrb[0].mxu0
        %2950 = vmatprep.mubr.f32.mxu0 0.0
        %2951 = vmatmul.mubr.f32.gmra.mrb[0].mxu0 %v1202
        %v2952 = vpop.f32.mrb[0].mxu0
        %v2953 = vadd.f32 0.0, %v2952
        %v2954 = vpop.f32.mrb[0].mxu0
        %2955 = vmatprep.mubr.f32.mxu0 0.0
        %2956 = vmatmul.mubr.f32.gmra.mrb[0].mxu0 %v1204
        %v2957 = vpop.f32.mrb[0].mxu0
        %v2958 = vadd.f32 0.0, %v2957
        %v2959 = vpop.f32.mrb[0].mxu0
        %2960 = vmatprep.mubr.f32.mxu0 0.0
        %2961 = vmatmul.mubr.f32.gmra.mrb[0].mxu0 %v1206
        %v2962 = vpop.f32.mrb[0].mxu0
        %v2963 = vadd.f32 0.0, %v2962
        %v2964 = vpop.f32.mrb[0].mxu0
        %2965 = vmatprep.mubr.f32.mxu0 0.0
        %2966 = vmatmul.mubr.f32.gmra.mrb[0].mxu0 %v1208
        %v2967 = vpop.f32.mrb[0].mxu0
        %v2968 = vadd.f32 0.0, %v2967
        %v2969 = vpop.f32.mrb[0].mxu0
        %2970 = vmatprep.mubr.f32.mxu0 0.0
        %2971 = vmatmul.mubr.f32.gmra.mrb[0].mxu0 %v1210
        %v2972 = vpop.f32.mrb[0].mxu0
        %v2973 = vadd.f32 0.0, %v2972
        %v2974 = vpop.f32.mrb[0].mxu0
        %2975 = vmatprep.mubr.f32.mxu0 0.0
        %2976 = vmatmul.mubr.f32.gmra.mrb[0].mxu0 %v1212
        %v2977 = vpop.f32.mrb[0].mxu0
        %v2978 = vadd.f32 0.0, %v2977
        %v2979 = vpop.f32.mrb[0].mxu0
        %2980 = vmatprep.mubr.f32.mxu0 0.0
        %2981 = vmatmul.mubr.f32.gmra.mrb[0].mxu0 %v1214
        %v2982 = vpop.f32.mrb[0].mxu0
        %v2983 = vadd.f32 0.0, %v2982
        %v2984 = vpop.f32.mrb[0].mxu0
        %2985 = vmatprep.mubr.f32.mxu0 0.0
        %2986 = vmatmul.mubr.f32.gmra.mrb[0].mxu0 %v1216
        %v2987 = vpop.f32.mrb[0].mxu0
        %v2988 = vadd.f32 0.0, %v2987
        %v2989 = vpop.f32.mrb[0].mxu0
        %2990 = vmatprep.mubr.f32.mxu0 0.0
        %2991 = vmatmul.mubr.f32.gmra.mrb[0].mxu0 %v1218
        %v2992 = vpop.f32.mrb[0].mxu0
        %v2993 = vadd.f32 0.0, %v2992
        %v2994 = vpop.f32.mrb[0].mxu0
        %2995 = vmatprep.mubr.f32.mxu0 0.0
        %2996 = vmatmul.mubr.f32.gmra.mrb[0].mxu0 %v1220
        %v2997 = vpop.f32.mrb[0].mxu0
        %v2998 = vadd.f32 0.0, %v2997
        %v2999 = vpop.f32.mrb[0].mxu0
        %3000 = vmatprep.mubr.f32.mxu0 0.0
        %3001 = vmatmul.mubr.f32.gmra.mrb[0].mxu0 %v1222
        %v3002 = vpop.f32.mrb[0].mxu0
        %v3003 = vadd.f32 0.0, %v3002
        %v3004 = vpop.f32.mrb[0].mxu0
        %3005 = vmatprep.mubr.f32.mxu0 0.0
        %3006 = vmatmul.mubr.f32.gmra.mrb[0].mxu0 %v1224
        %v3007 = vpop.f32.mrb[0].mxu0
        %v3008 = vadd.f32 0.0, %v3007
        %v3009 = vpop.f32.mrb[0].mxu0
        %3010 = vmatprep.mubr.f32.mxu0 0.0
        %3011 = vmatmul.mubr.f32.gmra.mrb[0].mxu0 %v1226
        %v3012 = vpop.f32.mrb[0].mxu0
        %v3013 = vadd.f32 0.0, %v3012
        %v3014 = vpop.f32.mrb[0].mxu0
        %3015 = vmatprep.mubr.f32.mxu0 0.0
        %3016 = vmatmul.mubr.f32.gmra.mrb[0].mxu0 %v1228
        %v3017 = vpop.f32.mrb[0].mxu0
        %v3018 = vadd.f32 0.0, %v3017
        %v3019 = vpop.f32.mrb[0].mxu0
        %3020 = vmatprep.mubr.f32.mxu0 0.0
        %3021 = vmatmul.mubr.f32.gmra.mrb[0].mxu0 %v1230
        %v3022 = vpop.f32.mrb[0].mxu0
        %v3023 = vadd.f32 0.0, %v3022
        %v3024 = vpop.f32.mrb[0].mxu0
        %3025 = vmatprep.mubr.f32.mxu0 0.0
        %3026 = vmatmul.mubr.f32.gmra.mrb[0].mxu0 %v1232
        %v3027 = vpop.f32.mrb[0].mxu0
        %v3028 = vadd.f32 0.0, %v3027
        %v3029 = vpop.f32.mrb[0].mxu0
        %3030 = vmatprep.mubr.f32.mxu0 0.0
        %3031 = vmatmul.mubr.f32.gmra.mrb[0].mxu0 %v1234
        %v3032 = vpop.f32.mrb[0].mxu0
        %v3033 = vadd.f32 0.0, %v3032
        %v3034 = vpop.f32.mrb[0].mxu0
        %3035 = vmatprep.mubr.f32.mxu0 0.0
        %3036 = vmatmul.mubr.f32.gmra.mrb[0].mxu0 %v1236
        %v3037 = vpop.f32.mrb[0].mxu0
        %v3038 = vadd.f32 0.0, %v3037
        %v3039 = vpop.f32.mrb[0].mxu0
        %3040 = vmatprep.mubr.f32.mxu0 0.0
        %3041 = vmatmul.mubr.f32.gmra.mrb[0].mxu0 %v1238
        %v3042 = vpop.f32.mrb[0].mxu0
        %v3043 = vadd.f32 0.0, %v3042
        %v3044 = vpop.f32.mrb[0].mxu0
        %3045 = vmatprep.mubr.f32.mxu0 0.0
        %3046 = vmatmul.mubr.f32.gmra.mrb[0].mxu0 %v1240
        %v3047 = vpop.f32.mrb[0].mxu0
        %v3048 = vadd.f32 0.0, %v3047
        %v3049 = vpop.f32.mrb[0].mxu0
        %3050 = vmatprep.mubr.f32.mxu0 0.0
        %3051 = vmatmul.mubr.f32.gmra.mrb[0].mxu0 %v1242
        %v3052 = vpop.f32.mrb[0].mxu0
        %v3053 = vadd.f32 0.0, %v3052
        %v3054 = vpop.f32.mrb[0].mxu0
        %3055 = vmatprep.mubr.f32.mxu0 0.0
        %3056 = vmatmul.mubr.f32.gmra.mrb[0].mxu0 %v1244
        %v3057 = vpop.f32.mrb[0].mxu0
        %v3058 = vadd.f32 0.0, %v3057
        %v3059 = vpop.f32.mrb[0].mxu0
        %3060 = vmatprep.mubr.f32.mxu0 0.0
        %3061 = vmatmul.mubr.f32.gmra.mrb[0].mxu0 %v1246
        %v3062 = vpop.f32.mrb[0].mxu0
        %v3063 = vadd.f32 0.0, %v3062
        %v3064 = vpop.f32.mrb[0].mxu0
        %3065 = vmatprep.mubr.f32.mxu0 0.0
        %3066 = vmatmul.mubr.f32.gmra.mrb[0].mxu0 %v1248
        %v3067 = vpop.f32.mrb[0].mxu0
        %v3068 = vadd.f32 0.0, %v3067
        %v3069 = vpop.f32.mrb[0].mxu0
        %3070 = vmatprep.mubr.f32.mxu0 0.0
        %3071 = vmatmul.mubr.f32.gmra.mrb[0].mxu0 %v1250
        %v3072 = vpop.f32.mrb[0].mxu0
        %v3073 = vadd.f32 0.0, %v3072
        %v3074 = vpop.f32.mrb[0].mxu0
        %3075 = vmatprep.mubr.f32.mxu0 0.0
        %3076 = vmatmul.mubr.f32.gmra.mrb[0].mxu0 %v1252
        %v3077 = vpop.f32.mrb[0].mxu0
        %v3078 = vadd.f32 0.0, %v3077
        %v3079 = vpop.f32.mrb[0].mxu0
        %3080 = vmatprep.mubr.f32.mxu0 0.0
        %3081 = vmatmul.mubr.f32.gmra.mrb[0].mxu0 %v1254
        %v3082 = vpop.f32.mrb[0].mxu0
        %v3083 = vadd.f32 0.0, %v3082
        %v3084 = vpop.f32.mrb[0].mxu0
        %3085 = vmatprep.mubr.f32.mxu0 0.0
        %3086 = vmatmul.mubr.f32.gmra.mrb[0].mxu0 %v2063
        %v3087 = vpop.f32.mrb[0].mxu0
        %v3088 = vadd.f32 0.0, %v3087
        %v3089 = vpop.f32.mrb[0].mxu0
        %3090 = vmatprep.mubr.f32.mxu0 0.0
        %3091 = vmatmul.mubr.f32.gmra.mrb[0].mxu0 %v2065
        %v3092 = vpop.f32.mrb[0].mxu0
        %v3093 = vadd.f32 0.0, %v3092
        %v3094 = vpop.f32.mrb[0].mxu0
        %3095 = vmatprep.mubr.f32.mxu0 0.0
        %3096 = vmatmul.mubr.f32.gmra.mrb[0].mxu0 %v2874
        %v3097 = vpop.f32.mrb[0].mxu0
        %v3098 = vadd.f32 0.0, %v3097
        %v3099 = vpop.f32.mrb[0].mxu0
        %3100 = vmatprep.mubr.f32.mxu0 0.0
        %3101 = vmatmul.mubr.f32.gmra.mrb[0].mxu0 %v2876
        %v3102 = vpop.f32.mrb[0].mxu0
        %v3103 = vadd.f32 0.0, %v3102
        %v3104 = vpop.f32.mrb[0].mxu0
        %3105 = vdwg.mxu0
        %v3106 = vadd.f32 %v2835, %v2948
        %v3107 = vadd.f32 %v2836, %v2953
        %v3108 = vadd.f32 %v2837, %v2958
        %v3109 = vadd.f32 %v2838, %v2963
        %v3110 = vadd.f32 %v2839, %v2968
        %v3111 = vadd.f32 %v2840, %v2973
        %v3112 = vadd.f32 %v2841, %v2978
        %v3113 = vadd.f32 %v2842, %v2983
        %v3114 = vadd.f32 %v2843, %v2988
        %v3115 = vadd.f32 %v2844, %v2993
        %v3116 = vadd.f32 %v2845, %v2998
        %v3117 = vadd.f32 %v2846, %v3003
        %v3118 = vadd.f32 %v2847, %v3008
        %v3119 = vadd.f32 %v2848, %v3013
        %v3120 = vadd.f32 %v2849, %v3018
        %v3121 = vadd.f32 %v2850, %v3023
        %v3122 = vadd.f32 %v2851, %v3028
        %v3123 = vadd.f32 %v2852, %v3033
        %v3124 = vadd.f32 %v2853, %v3038
        %v3125 = vadd.f32 %v2854, %v3043
        %v3126 = vadd.f32 %v2855, %v3048
        %v3127 = vadd.f32 %v2856, %v3053
        %v3128 = vadd.f32 %v2857, %v3058
        %v3129 = vadd.f32 %v2858, %v3063
        %v3130 = vadd.f32 %v2859, %v3068
        %v3131 = vadd.f32 %v2860, %v3073
        %v3132 = vadd.f32 %v2861, %v3078
        %v3133 = vadd.f32 %v2862, %v3083
        %v3134 = vadd.f32 %v2863, %v3088
        %v3135 = vadd.f32 %v2864, %v3093
        %v3136 = vadd.f32 %v2865, %v3098
        %v3137 = vadd.f32 %v2866, %v3103
        %vm3138 = vcmask 64512
        %3139 = vst.msk [vmem:[%s216] sm:$0xff] %vm3138, %v3106
        %3140 = vst.msk [vmem:[%s216 + $0x8] sm:$0xff] %vm3138, %v3107
        %3141 = vst.msk [vmem:[%s216 + $0x10] sm:$0xff] %vm3138, %v3108
        %3142 = vst.msk [vmem:[%s216 + $0x18] sm:$0xff] %vm3138, %v3109
        %3143 = vst.msk [vmem:[%s216 + $0x20] sm:$0xff] %vm3138, %v3110
        %3144 = vst.msk [vmem:[%s216 + $0x28] sm:$0xff] %vm3138, %v3111
        %3145 = vst.msk [vmem:[%s216 + $0x30] sm:$0xff] %vm3138, %v3112
        %3146 = vst.msk [vmem:[%s216 + $0x38] sm:$0xff] %vm3138, %v3113
        %3147 = vst.msk [vmem:[%s216 + $0x40] sm:$0xff] %vm3138, %v3114
        %3148 = vst.msk [vmem:[%s216 + $0x48] sm:$0xff] %vm3138, %v3115
        %3149 = vst.msk [vmem:[%s216 + $0x50] sm:$0xff] %vm3138, %v3116
        %3150 = vst.msk [vmem:[%s216 + $0x58] sm:$0xff] %vm3138, %v3117
        %3151 = vst.msk [vmem:[%s216 + $0x60] sm:$0xff] %vm3138, %v3118
        %3152 = vst.msk [vmem:[%s216 + $0x68] sm:$0xff] %vm3138, %v3119
        %3153 = vst.msk [vmem:[%s216 + $0x70] sm:$0xff] %vm3138, %v3120
        %3154 = vst.msk [vmem:[%s216 + $0x78] sm:$0xff] %vm3138, %v3121
        %3155 = vst.msk [vmem:[%s216 + $0x80] sm:$0xff] %vm3138, %v3122
        %3156 = vst.msk [vmem:[%s216 + $0x88] sm:$0xff] %vm3138, %v3123
        %3157 = vst.msk [vmem:[%s216 + $0x90] sm:$0xff] %vm3138, %v3124
        %3158 = vst.msk [vmem:[%s216 + $0x98] sm:$0xff] %vm3138, %v3125
        %3159 = vst.msk [vmem:[%s216 + $0xa0] sm:$0xff] %vm3138, %v3126
        %3160 = vst.msk [vmem:[%s216 + $0xa8] sm:$0xff] %vm3138, %v3127
        %3161 = vst.msk [vmem:[%s216 + $0xb0] sm:$0xff] %vm3138, %v3128
        %3162 = vst.msk [vmem:[%s216 + $0xb8] sm:$0xff] %vm3138, %v3129
        %3163 = vst.msk [vmem:[%s216 + $0xc0] sm:$0xff] %vm3138, %v3130
        %3164 = vst.msk [vmem:[%s216 + $0xc8] sm:$0xff] %vm3138, %v3131
        %3165 = vst.msk [vmem:[%s216 + $0xd0] sm:$0xff] %vm3138, %v3132
        %3166 = vst.msk [vmem:[%s216 + $0xd8] sm:$0xff] %vm3138, %v3133
        %3167 = vst.msk [vmem:[%s216 + $0xe0] sm:$0xff] %vm3138, %v3134
        %3168 = vst.msk [vmem:[%s216 + $0xe8] sm:$0xff] %vm3138, %v3135
        %3169 = vst.msk [vmem:[%s216 + $0xf0] sm:$0xff] %vm3138, %v3136
        %3170 = vst.msk [vmem:[%s216 + $0xf8] sm:$0xff] %vm3138, %v3137
        %v3171 = vsel %vm3138, %v3106, 0.0
        %v3172 = vsel %vm3138, %v3107, 0.0
        %v3173 = vadd.f32 %v3171, %v3172
        %v3174 = vsel %vm3138, %v3108, 0.0
        %v3175 = vadd.f32 %v3173, %v3174
        %v3176 = vsel %vm3138, %v3109, 0.0
        %v3177 = vadd.f32 %v3175, %v3176
        %v3178 = vsel %vm3138, %v3110, 0.0
        %v3179 = vadd.f32 %v3177, %v3178
        %v3180 = vsel %vm3138, %v3111, 0.0
        %v3181 = vadd.f32 %v3179, %v3180
        %v3182 = vsel %vm3138, %v3112, 0.0
        %v3183 = vadd.f32 %v3181, %v3182
        %v3184 = vsel %vm3138, %v3113, 0.0
        %v3185 = vadd.f32 %v3183, %v3184
        %v3186 = vsel %vm3138, %v3114, 0.0
        %v3187 = vadd.f32 %v3185, %v3186
        %v3188 = vsel %vm3138, %v3115, 0.0
        %v3189 = vadd.f32 %v3187, %v3188
        %v3190 = vsel %vm3138, %v3116, 0.0
        %v3191 = vadd.f32 %v3189, %v3190
        %v3192 = vsel %vm3138, %v3117, 0.0
        %v3193 = vadd.f32 %v3191, %v3192
        %v3194 = vsel %vm3138, %v3118, 0.0
        %v3195 = vadd.f32 %v3193, %v3194
        %v3196 = vsel %vm3138, %v3119, 0.0
        %v3197 = vadd.f32 %v3195, %v3196
        %v3198 = vsel %vm3138, %v3120, 0.0
        %v3199 = vadd.f32 %v3197, %v3198
        %v3200 = vsel %vm3138, %v3121, 0.0
        %v3201 = vadd.f32 %v3199, %v3200
        %v3202 = vsel %vm3138, %v3122, 0.0
        %v3203 = vadd.f32 %v3201, %v3202
        %v3204 = vsel %vm3138, %v3123, 0.0
        %v3205 = vadd.f32 %v3203, %v3204
        %v3206 = vsel %vm3138, %v3124, 0.0
        %v3207 = vadd.f32 %v3205, %v3206
        %v3208 = vsel %vm3138, %v3125, 0.0
        %v3209 = vadd.f32 %v3207, %v3208
        %v3210 = vsel %vm3138, %v3126, 0.0
        %v3211 = vadd.f32 %v3209, %v3210
        %v3212 = vsel %vm3138, %v3127, 0.0
        %v3213 = vadd.f32 %v3211, %v3212
        %v3214 = vsel %vm3138, %v3128, 0.0
        %v3215 = vadd.f32 %v3213, %v3214
        %v3216 = vsel %vm3138, %v3129, 0.0
        %v3217 = vadd.f32 %v3215, %v3216
        %v3218 = vsel %vm3138, %v3130, 0.0
        %v3219 = vadd.f32 %v3217, %v3218
        %v3220 = vsel %vm3138, %v3131, 0.0
        %v3221 = vadd.f32 %v3219, %v3220
        %v3222 = vsel %vm3138, %v3132, 0.0
        %v3223 = vadd.f32 %v3221, %v3222
        %v3224 = vsel %vm3138, %v3133, 0.0
        %v3225 = vadd.f32 %v3223, %v3224
        %v3226 = vsel %vm3138, %v3134, 0.0
        %v3227 = vadd.f32 %v3225, %v3226
        %v3228 = vsel %vm3138, %v3135, 0.0
        %v3229 = vadd.f32 %v3227, %v3228
        %v3230 = vsel %vm3138, %v3136, 0.0
        %v3231 = vadd.f32 %v3229, %v3230
        %v3232 = vsel %vm3138, %v3137, 0.0
        %v3233 = vadd.f32 %v3231, %v3232
        %v3234 = vrot.slane %v3233, 4
        %v3235 = vadd.f32 %v3233, %v3234
        %v3236 = vrot.slane %v3235, 2
        %v3237 = vadd.f32 %v3235, %v3236
        %v3238 = vrot.slane %v3237, 1
        %v3239 = vadd.f32 %v3237, %v3238
        %vm3240 = vcmask 57344
        %3241 = vst.msk [vmem:[%s200] sm:$0x1] %vm3240, %v3239
        %v3242 = vmul.f32 %v3106, %v3106
        %v3243 = vmul.f32 %v3107, %v3107
        %v3244 = vmul.f32 %v3108, %v3108
        %v3245 = vmul.f32 %v3109, %v3109
        %v3246 = vmul.f32 %v3110, %v3110
        %v3247 = vmul.f32 %v3111, %v3111
        %v3248 = vmul.f32 %v3112, %v3112
        %v3249 = vmul.f32 %v3113, %v3113
        %v3250 = vmul.f32 %v3114, %v3114
        %v3251 = vmul.f32 %v3115, %v3115
        %v3252 = vmul.f32 %v3116, %v3116
        %v3253 = vmul.f32 %v3117, %v3117
        %v3254 = vmul.f32 %v3118, %v3118
        %v3255 = vmul.f32 %v3119, %v3119
        %v3256 = vmul.f32 %v3120, %v3120
        %v3257 = vmul.f32 %v3121, %v3121
        %v3258 = vmul.f32 %v3122, %v3122
        %v3259 = vmul.f32 %v3123, %v3123
        %v3260 = vmul.f32 %v3124, %v3124
        %v3261 = vmul.f32 %v3125, %v3125
        %v3262 = vmul.f32 %v3126, %v3126
        %v3263 = vmul.f32 %v3127, %v3127
        %v3264 = vmul.f32 %v3128, %v3128
        %v3265 = vmul.f32 %v3129, %v3129
        %v3266 = vmul.f32 %v3130, %v3130
        %v3267 = vmul.f32 %v3131, %v3131
        %v3268 = vmul.f32 %v3132, %v3132
        %v3269 = vmul.f32 %v3133, %v3133
        %v3270 = vmul.f32 %v3134, %v3134
        %v3271 = vmul.f32 %v3135, %v3135
        %v3272 = vmul.f32 %v3136, %v3136
        %v3273 = vmul.f32 %v3137, %v3137
        %v3274 = vsel %vm3138, %v3242, 0.0
        %v3275 = vsel %vm3138, %v3243, 0.0
        %v3276 = vadd.f32 %v3274, %v3275
        %v3277 = vsel %vm3138, %v3244, 0.0
        %v3278 = vadd.f32 %v3276, %v3277
        %v3279 = vsel %vm3138, %v3245, 0.0
        %v3280 = vadd.f32 %v3278, %v3279
        %v3281 = vsel %vm3138, %v3246, 0.0
        %v3282 = vadd.f32 %v3280, %v3281
        %v3283 = vsel %vm3138, %v3247, 0.0
        %v3284 = vadd.f32 %v3282, %v3283
        %v3285 = vsel %vm3138, %v3248, 0.0
        %v3286 = vadd.f32 %v3284, %v3285
        %v3287 = vsel %vm3138, %v3249, 0.0
        %v3288 = vadd.f32 %v3286, %v3287
        %v3289 = vsel %vm3138, %v3250, 0.0
        %v3290 = vadd.f32 %v3288, %v3289
        %v3291 = vsel %vm3138, %v3251, 0.0
        %v3292 = vadd.f32 %v3290, %v3291
        %v3293 = vsel %vm3138, %v3252, 0.0
        %v3294 = vadd.f32 %v3292, %v3293
        %v3295 = vsel %vm3138, %v3253, 0.0
        %v3296 = vadd.f32 %v3294, %v3295
        %v3297 = vsel %vm3138, %v3254, 0.0
        %v3298 = vadd.f32 %v3296, %v3297
        %v3299 = vsel %vm3138, %v3255, 0.0
        %v3300 = vadd.f32 %v3298, %v3299
        %v3301 = vsel %vm3138, %v3256, 0.0
        %v3302 = vadd.f32 %v3300, %v3301
        %v3303 = vsel %vm3138, %v3257, 0.0
        %v3304 = vadd.f32 %v3302, %v3303
        %v3305 = vsel %vm3138, %v3258, 0.0
        %v3306 = vadd.f32 %v3304, %v3305
        %v3307 = vsel %vm3138, %v3259, 0.0
        %v3308 = vadd.f32 %v3306, %v3307
        %v3309 = vsel %vm3138, %v3260, 0.0
        %v3310 = vadd.f32 %v3308, %v3309
        %v3311 = vsel %vm3138, %v3261, 0.0
        %v3312 = vadd.f32 %v3310, %v3311
        %v3313 = vsel %vm3138, %v3262, 0.0
        %v3314 = vadd.f32 %v3312, %v3313
        %v3315 = vsel %vm3138, %v3263, 0.0
        %v3316 = vadd.f32 %v3314, %v3315
        %v3317 = vsel %vm3138, %v3264, 0.0
        %v3318 = vadd.f32 %v3316, %v3317
        %v3319 = vsel %vm3138, %v3265, 0.0
        %v3320 = vadd.f32 %v3318, %v3319
        %v3321 = vsel %vm3138, %v3266, 0.0
        %v3322 = vadd.f32 %v3320, %v3321
        %v3323 = vsel %vm3138, %v3267, 0.0
        %v3324 = vadd.f32 %v3322, %v3323
        %v3325 = vsel %vm3138, %v3268, 0.0
        %v3326 = vadd.f32 %v3324, %v3325
        %v3327 = vsel %vm3138, %v3269, 0.0
        %v3328 = vadd.f32 %v3326, %v3327
        %v3329 = vsel %vm3138, %v3270, 0.0
        %v3330 = vadd.f32 %v3328, %v3329
        %v3331 = vsel %vm3138, %v3271, 0.0
        %v3332 = vadd.f32 %v3330, %v3331
        %v3333 = vsel %vm3138, %v3272, 0.0
        %v3334 = vadd.f32 %v3332, %v3333
        %v3335 = vsel %vm3138, %v3273, 0.0
        %v3336 = vadd.f32 %v3334, %v3335
        %v3337 = vrot.slane %v3336, 4
        %v3338 = vadd.f32 %v3336, %v3337
        %v3339 = vrot.slane %v3338, 2
        %v3340 = vadd.f32 %v3338, %v3339
        %v3341 = vrot.slane %v3340, 1
        %v3342 = vadd.f32 %v3340, %v3341
        %3343 = vst.msk [vmem:[%s206] sm:$0x1] %vm3240, %v3342
        %p3344 = scmp.lt.s32.totalorder %s22, 1
        %s3345 = scalar_select %p3344, %s22, 1
        %s3346 = smul.addr %s3345, 32
        %s3347 = smul.addr %s3346, 8
        %s3348 = scalar_lea.vmem %s2, %s3347
        %s3349 = sand.u32 %s103, 1
        %s3350 = scalar_lea.sflag [#allocation4], %s3349
        %s3351 = sand.u32 %s103, 1
        %s3352 = scalar_lea.vmem [#allocation3], %s3351
        %s3353 = sand.u32 %s129, 1
        %s3354 = scalar_lea.sflag [#allocation6], %s3353
        %s3355 = sand.u32 %s129, 1
        %s3356 = scalar_lea.vmem [#allocation5], %s3355
        // Predicated region
        $region29: #{tpu_custom_call.1} parent=27 // pred_check
          %p3357 = pneg %p87
        $region30: #{tpu_custom_call.1} parent=27 // pred_check_branch
          %3359 = sbr.rel (%p3357) target = $region32
        $region31: #{tpu_custom_call.1} parent=27 // pred_region
          _
        $region32: #{tpu_custom_call.1} parent=27 // pred_fallthru
          _
        // Predicated region
        $region33: #{tpu_custom_call.1} parent=27 // pred_check
          %p3360 = pneg %p113
        $region34: #{tpu_custom_call.1} parent=27 // pred_check_branch
          %3362 = sbr.rel (%p3360) target = $region36
        $region35: #{tpu_custom_call.1} parent=27 // pred_region
          %s3364 = ssub.s32 16, 16
          %3365 = vsyncadd %s3350, %s3364
          %s3366 = smul.addr %s22, 16
          %s3367 = scalar_lea.hbm %s3, %s3366
          %s3369 = sshll.u32 %s3352, 4
          %s3370 = int_to_ptr.vmem [resolvable:$true] %s3369
          %3372 = dma.vmem_to_hbm [thread:$0]  %s3370, 16, %s3367, %s3350
        $region36: #{tpu_custom_call.1} parent=27 // pred_fallthru
          _
        // Predicated region
        $region37: #{tpu_custom_call.1} parent=27 // pred_check
          %p3373 = pneg %p139
        $region38: #{tpu_custom_call.1} parent=27 // pred_check_branch
          %3375 = sbr.rel (%p3373) target = $region40
        $region39: #{tpu_custom_call.1} parent=27 // pred_region
          %s3377 = ssub.s32 16, 16
          %3378 = vsyncadd %s3354, %s3377
          %s3379 = smul.addr %s22, 16
          %s3380 = scalar_lea.hbm %s4, %s3379
          %s3382 = sshll.u32 %s3356, 4
          %s3383 = int_to_ptr.vmem [resolvable:$true] %s3382
          %3385 = dma.vmem_to_hbm [thread:$0]  %s3383, 16, %s3380, %s3354
        $region40: #{tpu_custom_call.1} parent=27 // pred_fallthru
          _
      $region28: #{tpu_custom_call.1} parent=5 // pred_fallthru
        _
      %p3386 = scmp.le.s32.totalorder 2, %s17
      // Predicated region
      $region41: #{tpu_custom_call.1} parent=5 // pred_check
        %p3387 = pneg %p3386
      $region42: #{tpu_custom_call.1} parent=5 // pred_check_branch
        %3389 = sbr.rel (%p3387) target = $region44
      $region43: #{tpu_custom_call.1} parent=5 // pred_region
        %s3390 = ssub.s32 %s17, 2
        // Predicated region
        $region45: #{tpu_custom_call.1} parent=43 // pred_check
          %p3391 = pneg %p93
        $region46: #{tpu_custom_call.1} parent=43 // pred_check_branch
          %3393 = sbr.rel (%p3391) target = $region48
        $region47: #{tpu_custom_call.1} parent=43 // pred_region
          %p3394 = scmp.lt.s32.totalorder %s23, 1
          %s3395 = scalar_select %p3394, %s23, 1
          %s3396 = smul.addr %s3395, 32
          %s3397 = smul.addr %s3396, 8
          %s3398 = scalar_lea.vmem %s2, %s3397
        $region48: #{tpu_custom_call.1} parent=43 // pred_fallthru
          _
        // Predicated region
        $region49: #{tpu_custom_call.1} parent=43 // pred_check
          %p3399 = pneg %p119
        $region50: #{tpu_custom_call.1} parent=43 // pred_check_branch
          %3401 = sbr.rel (%p3399) target = $region52
        $region51: #{tpu_custom_call.1} parent=43 // pred_region
          %s3402 = sand.u32 %s104, 1
          %s3403 = scalar_lea.sflag [#allocation4], %s3402
          %s3404 = sand.u32 %s104, 1
          %s3405 = scalar_lea.vmem [#allocation3], %s3404
          %3406 = dma.done %s3403, 16
        $region52: #{tpu_custom_call.1} parent=43 // pred_fallthru
          _
        // Predicated region
        $region53: #{tpu_custom_call.1} parent=43 // pred_check
          %p3407 = pneg %p145
        $region54: #{tpu_custom_call.1} parent=43 // pred_check_branch
          %3409 = sbr.rel (%p3407) target = $region56
        $region55: #{tpu_custom_call.1} parent=43 // pred_region
          %s3410 = sand.u32 %s130, 1
          %s3411 = scalar_lea.sflag [#allocation6], %s3410
          %s3412 = sand.u32 %s130, 1
          %s3413 = scalar_lea.vmem [#allocation5], %s3412
          %3414 = dma.done %s3411, 16
        $region56: #{tpu_custom_call.1} parent=43 // pred_fallthru
          _
      $region44: #{tpu_custom_call.1} parent=5 // pred_fallthru
        _
    $region6: #{tpu_custom_call.1} parent=1 // loop_footer
      %s21 = sadd.s32 1, %s17
    $region7: #{tpu_custom_call.1} parent=1 // loop_footer_branch
      %16 = sbr.rel target = $region3
    $region8: #{tpu_custom_call.1} parent=1 // loop_exit
      _
    %3415 = vsyncpa [#allocation4], 1
    %s3416 = scalar_lea.sflag [#allocation4], 1
    %3417 = vsyncpa %s3416, 1
    %3418 = vsyncpa [#allocation6], 1
    %s3419 = scalar_lea.sflag [#allocation6], 1
    %3420 = vsyncpa %s3419, 1

</llo_original>
